<compile_context>
chip_gen: v7x
topology: tpu7x:2x2x1
jax: 0.10.0
libtpu: 0.0.40
codegen_flags: <defaults>
</compile_context>

<pallas_src>
import math

import jax
import jax.numpy as jnp
import numpy as np
from jax.experimental import pallas as pl
from jax.experimental.pallas import tpu as pltpu

# ---- module hyperparameters (small, consistent with the forward pass) ----
EMBED_DIM = 32
N_LAYERS = 2
ATTN_HEADS = 4
SEQ_LEN = 8            # flow length (<= max_flow_length -> one fraction)
BATCH = 2
MASK_PROB = 0.15
LN_EPS = 1e-5
COS_EPS = 1e-8
LOSS_ROWS = 8          # sublane-aligned rows holding the per-flow MPM loss


def _layernorm(x, g, b):
    mu = jnp.mean(x, axis=-1, keepdims=True)
    var = jnp.mean((x - mu) ** 2, axis=-1, keepdims=True)
    return (x - mu) * jax.lax.rsqrt(var + LN_EPS) * g + b


def _bmm(eq, a, b):
    # Single-pass bf16 MXU matmul with f32 accumulation.
    return jnp.einsum(eq, a.astype(jnp.bfloat16), b.astype(jnp.bfloat16),
                      preferred_element_type=jnp.float32)


# --------------------------- Pallas kernel --------------------------------
def flow_encoder_kernel(xm_ref, xo_ref,
                        wqkv_ref, bqkv_ref, wo_ref,
                        wffn_ref, b1_ref, vec_ref, pool_ref,
                        out_ref):
    G, S, D = xm_ref.shape                 # G flows per grid step (here 1)
    L = wqkv_ref.shape[0]
    H = wo_ref.shape[1]
    Dh = D // H
    scale = 1.0 / math.sqrt(Dh)

    for g in range(G):
        x = xm_ref[g]                      # (S, D) masked fraction, f32
        orig = xo_ref[g]                   # (S, D) original fraction, f32

        # ---- n_layers of post-norm TransformerEncoderLayer (relu FFN) ----
        for l in range(L):
            # fused q/k/v projection, batched over (3 * heads)
            xb = jnp.broadcast_to(x.astype(jnp.bfloat16), (3 * H, S, D))
            qkv = jnp.einsum('bsd,bdf->bsf', xb, wqkv_ref[l],
                             preferred_element_type=jnp.float32) + bqkv_ref[l]
            q, k, v = qkv[:H], qkv[H:2 * H], qkv[2 * H:]          # (H, S, Dh)

            # scores contract on the feature dim directly (no k transpose)
            s = _bmm('hsf,htf->hst', q, k) * scale                # (H, S, S)
            s = s - jnp.max(s, axis=-1, keepdims=True)
            p = jnp.exp(s)
            p = p * pl.reciprocal(jnp.sum(p, axis=-1, keepdims=True),
                                  approx=True)
            o = _bmm('hst,htf->hsf', p, v)                        # (H, S, Dh)
            # per-head output projection + head reduction (fuses the concat)
            attn = jnp.sum(_bmm('hsf,hfd->hsd', o, wo_ref[l]), axis=0)
            attn = attn + vec_ref[l, 0:1, :]                      # + out bias
            x = _layernorm(x + attn, vec_ref[l, 1:2, :], vec_ref[l, 2:3, :])

            h1 = _bmm('sd,de->se', x, wffn_ref[l, 0]) + b1_ref[l]   # (S, 4D)
            h1 = jnp.maximum(h1, 0.0)
            y2 = _bmm('se,de->sd', h1, wffn_ref[l, 1]) + vec_ref[l, 3:4, :]
            x = _layernorm(x + y2, vec_ref[l, 4:5, :], vec_ref[l, 5:6, :])

        # ---- SelfAttentionPooling (single-fraction path) ----
        m = jnp.tanh(_bmm('sd,de->se', x, pool_ref[0:D, :])
                     + pool_ref[D:D + 1, :])                      # (S, D)
        score = jnp.sum(m * pool_ref[D + 8:D + 9, :], axis=-1,
                        keepdims=True)                            # (S, 1)
        score = score - jnp.max(score, axis=0, keepdims=True)
        w = jnp.exp(score)
        w = w * pl.reciprocal(jnp.sum(w, axis=0, keepdims=True), approx=True)
        out_ref[g, 0:S, :] = x * w                                # (S, D)

        # ---- MPM loss: cosine sim vs original, CE with target index 0 ----
        dotxy = jnp.sum(x * orig, axis=-1, keepdims=True)         # (S, 1)
        nx = jnp.sqrt(jnp.sum(x * x, axis=-1, keepdims=True))
        no = jnp.sqrt(jnp.sum(orig * orig, axis=-1, keepdims=True))
        denom = jnp.maximum(nx, COS_EPS) * jnp.maximum(no, COS_EPS)
        sim = dotxy * pl.reciprocal(denom, approx=True)
        smax = jnp.max(sim)
        loss = smax + jnp.log(jnp.sum(jnp.exp(sim - smax))) - sim[0, 0]
        out_ref[g, S:S + LOSS_ROWS, :] = jnp.full((LOSS_ROWS, D), loss,
                                                  jnp.float32)


# ------------------- one-time parameter packing (host side) ----------------
def pack_params(params):
    """Repack PyTorch-layout params into a few pre-transposed slabs (done once,
    outside the per-call path).  Matmul weights are stored in bf16."""
    (qkv_w, qkv_b, ow, ob, ln1_g, ln1_b, w1, b1, w2, b2,
     ln2_g, ln2_b, wm, bm, wu) = params
    L = qkv_w.shape[0]
    D = qkv_w.shape[2]
    H = ATTN_HEADS
    Dh = D // H

    # q/k/v weights per head, [in, out_head] layout: (L, 3H, D, Dh)
    wqkv = jnp.swapaxes(qkv_w.reshape(L, 3 * H, Dh, D), -1, -2)
    wqkv = wqkv.astype(jnp.bfloat16)
    bqkv = qkv_b.reshape(L, 3 * H, 1, Dh)                         # f32
    # output projection per head: (L, H, Dh, D)
    wo = jnp.transpose(ow.reshape(L, D, H, Dh), (0, 2, 3, 1)).astype(jnp.bfloat16)
    # FFN: slot 0 = w1^T (D, 4D); slot 1 = w2 kept [out, in] = (D, 4D)
    wffn = jnp.stack([jnp.swapaxes(w1, -1, -2), w2], axis=1).astype(jnp.bfloat16)
    # D-wide vectors: 0=out bias, 1/2=ln1 g/b, 3=b2, 4/5=ln2 g/b
    vecs = jnp.concatenate([ob, ln1_g, ln1_b, b2, ln2_g, ln2_b], axis=1)
    # pooling slab: rows [0:D]=wm, row D=bm, row D+8=wu^T (sublane aligned)
    pool = jnp.zeros((D + 16, D), jnp.float32)
    pool = pool.at[:D, :].set(wm)
    pool = pool.at[D, :].set(bm[0])
    pool = pool.at[D + 8, :].set(wu[:, 0])
    return (wqkv, bqkv, wo, wffn, b1, vecs, pool)


# ------------------------------ wrapper ------------------------------------
def _const_map(ndim):
    zeros = (0,) * ndim
    return lambda b: zeros


def flow_level_encoder_pallas(masked_x, orig_x, packed):
    wqkv, bqkv, wo, wffn, b1, vecs, pool = packed
    B, S, D = masked_x.shape
    rows = S + LOSS_ROWS

    weight_specs = [
        pl.BlockSpec(tuple(a.shape), _const_map(a.ndim))
        for a in (wqkv, bqkv, wo, wffn, b1, vecs, pool)
    ]

    out = pl.pallas_call(
        flow_encoder_kernel,
        out_shape=jax.ShapeDtypeStruct((B, rows, D), jnp.float32),
        grid_spec=pltpu.PrefetchScalarGridSpec(
            num_scalar_prefetch=0,
            grid=(B,),
            in_specs=[pl.BlockSpec((1, S, D), lambda b: (b, 0, 0)),
                      pl.BlockSpec((1, S, D), lambda b: (b, 0, 0))]
                     + weight_specs,
            out_specs=pl.BlockSpec((1, rows, D), lambda b: (b, 0, 0)),
        ),
        compiler_params=pltpu.CompilerParams(
            dimension_semantics=("parallel",)),   # v7x: one flow per core
    )(masked_x, orig_x, wqkv, bqkv, wo, wffn, b1, vecs, pool)

    enc = out[:, :S, :]
    mpm_losses = out[:, S, 0]
    return enc, mpm_losses


# ----------------------- deterministic parameter init ----------------------
def init_params(key):
    D, L = EMBED_DIM, N_LAYERS
    ks = jax.random.split(key, 11)

    def unif(k, shape, fan_in):
        bound = 1.0 / math.sqrt(fan_in)
        return jax.random.uniform(k, shape, jnp.float32, -bound, bound)

    qkv_w = unif(ks[0], (L, 3 * D, D), D)
    qkv_b = unif(ks[1], (L, 1, 3 * D), D)
    ow = unif(ks[2], (L, D, D), D)
    ob = unif(ks[3], (L, 1, D), D)
    ln1_g = jnp.ones((L, 1, D), jnp.float32)
    ln1_b = jnp.zeros((L, 1, D), jnp.float32)
    w1 = unif(ks[4], (L, 4 * D, D), D)
    b1 = unif(ks[5], (L, 1, 4 * D), D)
    w2 = unif(ks[6], (L, D, 4 * D), 4 * D)
    b2 = unif(ks[7], (L, 1, D), 4 * D)
    ln2_g = jnp.ones((L, 1, D), jnp.float32)
    ln2_b = jnp.zeros((L, 1, D), jnp.float32)
    # SelfAttentionPooling uses torch.randn initialisation
    wm = jax.random.normal(ks[8], (D, D), jnp.float32)
    bm = jax.random.normal(ks[9], (1, D), jnp.float32)
    wu = jax.random.normal(ks[10], (D, 1), jnp.float32)
    return (qkv_w, qkv_b, ow, ob, ln1_g, ln1_b, w1, b1, w2, b2,
            ln2_g, ln2_b, wm, bm, wu)


# -------------------------- pure-JAX reference -----------------------------
def flow_level_encoder_ref(masked_x, orig_x, params):
    # Mirrors the kernel's bf16-operand / f32-accumulate matmul precision.
    (qkv_w, qkv_b, ow, ob, ln1_g, ln1_b, w1, b1, w2, b2,
     ln2_g, ln2_b, wm, bm, wu) = params
    D, H = EMBED_DIM, ATTN_HEADS
    Dh = D // H
    scale = 1.0 / math.sqrt(Dh)

    def mm(a, b):
        return jnp.dot(a.astype(jnp.bfloat16), b.astype(jnp.bfloat16),
                       preferred_element_type=jnp.float32)

    encs, losses = [], []
    for bi in range(masked_x.shape[0]):
        x = masked_x[bi]
        orig = orig_x[bi]
        for l in range(N_LAYERS):
            qkv = mm(x, qkv_w[l].T) + qkv_b[l][0]
            q, k, v = qkv[:, :D], qkv[:, D:2 * D], qkv[:, 2 * D:]
            outs = []
            for h in range(H):
                qh = q[:, h * Dh:(h + 1) * Dh]
                kh = k[:, h * Dh:(h + 1) * Dh]
                vh = v[:, h * Dh:(h + 1) * Dh]
                p = jax.nn.softmax(mm(qh, kh.T) * scale, axis=-1)
                outs.append(mm(p, vh))
            attn = mm(jnp.concatenate(outs, -1), ow[l].T) + ob[l][0]
            x = _layernorm(x + attn, ln1_g[l][0], ln1_b[l][0])
            ff = mm(jax.nn.relu(mm(x, w1[l].T) + b1[l][0]), w2[l].T) + b2[l][0]
            x = _layernorm(x + ff, ln2_g[l][0], ln2_b[l][0])
        m = jnp.tanh(mm(x, wm) + bm[0])
        score = jnp.sum(m * wu[:, 0], axis=-1)
        w = jax.nn.softmax(score, axis=0)
        encs.append(x * w[:, None])
        sim = jnp.sum(x * orig, -1) / (
            jnp.maximum(jnp.linalg.norm(x, axis=-1), COS_EPS)
            * jnp.maximum(jnp.linalg.norm(orig, axis=-1), COS_EPS))
        losses.append(jax.scipy.special.logsumexp(sim) - sim[0])
    return jnp.stack(encs), jnp.stack(losses)


# --------------------------------- main -------------------------------------
if __name__ == "__main__":
    key = jax.random.PRNGKey(0)
    kx, kmask, knoise, kparams = jax.random.split(key, 4)

    B, S, D = BATCH, SEQ_LEN, EMBED_DIM
    flow_sequences = jax.random.normal(kx, (B, S, D), jnp.float32)
    pad_indices = jnp.zeros((B, S), jnp.bool_).at[:, S - 2:].set(True)

    # apply_mpm_masking (glue: bernoulli on non-pad positions, gaussian replacement)
    eligible = ~pad_indices
    mask = eligible & (jax.random.uniform(kmask, (B, S)) < MASK_PROB)
    noise = jax.random.normal(knoise, (B, S, D), jnp.float32)
    masked_x = jnp.where(mask[..., None], noise, flow_sequences)

    params = init_params(kparams)
    packed = pack_params(params)          # one-time repack, off the call path

    enc, mpm_losses = flow_level_encoder_pallas(masked_x, flow_sequences, packed)
    jax.block_until_ready((enc, mpm_losses))

    enc_ref, loss_ref = flow_level_encoder_ref(masked_x, flow_sequences, params)
    np.testing.assert_allclose(np.asarray(enc), np.asarray(enc_ref),
                               rtol=1e-2, atol=1e-2)
    np.testing.assert_allclose(np.asarray(mpm_losses), np.asarray(loss_ref),
                               rtol=1e-2, atol=1e-2)
    assert enc.shape == (B, S, D) and mpm_losses.shape == (B,)
    assert bool(jnp.all(jnp.isfinite(enc))) and bool(jnp.all(jnp.isfinite(mpm_losses)))
    print("KERNEL_OK")
</pallas_src>

<mosaic_0001>
module attributes {stable_mosaic.version = 11 : i64} {
  func.func @flow_encoder_kernel(%arg0: i32, %arg1: memref<1x8x32xf32, #tpu.memory_space<vmem>>, %arg2: memref<1x8x32xf32, #tpu.memory_space<vmem>>, %arg3: memref<2x12x32x8xbf16, #tpu.memory_space<vmem>>, %arg4: memref<2x12x1x8xf32, #tpu.memory_space<vmem>>, %arg5: memref<2x4x8x32xbf16, #tpu.memory_space<vmem>>, %arg6: memref<2x2x32x128xbf16, #tpu.memory_space<vmem>>, %arg7: memref<2x1x128xf32, #tpu.memory_space<vmem>>, %arg8: memref<2x6x32xf32, #tpu.memory_space<vmem>>, %arg9: memref<48x32xf32, #tpu.memory_space<vmem>>, %arg10: memref<1x16x32xf32, #tpu.memory_space<vmem>>) attributes {dimension_semantics = [#tpu.dimension_semantics<parallel>], iteration_bounds = array<i64: 2>, scalar_prefetch = 0 : i64, scratch_operands = 0 : i64, tpu.core_type = #tpu.core_type<tc>, window_params = [{transform_indices = @transform_0, window_bounds = array<i64: 1, 8, 32>}, {transform_indices = @transform_1, window_bounds = array<i64: 1, 8, 32>}, {pipeline_mode = #tpu.pipeline_mode<synchronous>, transform_indices = @transform_2, window_bounds = array<i64: 2, 12, 32, 8>}, {pipeline_mode = #tpu.pipeline_mode<synchronous>, transform_indices = @transform_3, window_bounds = array<i64: 2, 12, 1, 8>}, {pipeline_mode = #tpu.pipeline_mode<synchronous>, transform_indices = @transform_4, window_bounds = array<i64: 2, 4, 8, 32>}, {pipeline_mode = #tpu.pipeline_mode<synchronous>, transform_indices = @transform_5, window_bounds = array<i64: 2, 2, 32, 128>}, {pipeline_mode = #tpu.pipeline_mode<synchronous>, transform_indices = @transform_6, window_bounds = array<i64: 2, 1, 128>}, {pipeline_mode = #tpu.pipeline_mode<synchronous>, transform_indices = @transform_7, window_bounds = array<i64: 2, 6, 32>}, {pipeline_mode = #tpu.pipeline_mode<synchronous>, transform_indices = @transform_8, window_bounds = array<i64: 48, 32>}, {transform_indices = @transform_9, window_bounds = array<i64: 1, 16, 32>}]} {
    %c0 = arith.constant 0 : index
    %c0_0 = arith.constant 0 : index
    %c0_1 = arith.constant 0 : index
    %0 = vector.load %arg1[%c0, %c0_0, %c0_1] : memref<1x8x32xf32, #tpu.memory_space<vmem>>, vector<1x8x32xf32>
    %1 = vector.shape_cast %0 : vector<1x8x32xf32> to vector<8x32xf32>
    %c0_2 = arith.constant 0 : index
    %c0_3 = arith.constant 0 : index
    %c0_4 = arith.constant 0 : index
    %2 = vector.load %arg2[%c0_2, %c0_3, %c0_4] : memref<1x8x32xf32, #tpu.memory_space<vmem>>, vector<1x8x32xf32>
    %3 = vector.shape_cast %2 : vector<1x8x32xf32> to vector<8x32xf32>
    %4 = arith.truncf %1 : vector<8x32xf32> to vector<8x32xbf16>
    %5 = vector.shape_cast %4 : vector<8x32xbf16> to vector<1x8x32xbf16>
    %6 = vector.broadcast %5 : vector<1x8x32xbf16> to vector<12x8x32xbf16>
    %c0_5 = arith.constant 0 : index
    %c0_6 = arith.constant 0 : index
    %c0_7 = arith.constant 0 : index
    %c0_8 = arith.constant 0 : index
    %7 = vector.load %arg3[%c0_5, %c0_6, %c0_7, %c0_8] : memref<2x12x32x8xbf16, #tpu.memory_space<vmem>>, vector<1x12x32x8xbf16>
    %8 = vector.shape_cast %7 : vector<1x12x32x8xbf16> to vector<12x32x8xbf16>
    "tpu.trace_start"() <{level = 10 : i32, message = "bsd,bdf->bsf"}> : () -> ()
    %cst = arith.constant dense<0.000000e+00> : vector<12x8x8xf32>
    %9 = tpu.matmul %6, %8, %cst {dimension_numbers = #tpu.dot_dimension_numbers<[2], [1], [1], [2], [0, 0, 0, 1, 1, 2], [0], [0]>} : vector<12x8x32xbf16>, vector<12x32x8xbf16>, vector<12x8x8xf32> -> vector<12x8x8xf32>
    "tpu.trace_stop"() : () -> ()
    %c0_9 = arith.constant 0 : index
    %c0_10 = arith.constant 0 : index
    %c0_11 = arith.constant 0 : index
    %c0_12 = arith.constant 0 : index
    %10 = vector.load %arg4[%c0_9, %c0_10, %c0_11, %c0_12] : memref<2x12x1x8xf32, #tpu.memory_space<vmem>>, vector<1x12x1x8xf32>
    %11 = vector.shape_cast %10 : vector<1x12x1x8xf32> to vector<12x1x8xf32>
    %12 = vector.broadcast %11 : vector<12x1x8xf32> to vector<12x8x8xf32>
    %13 = arith.addf %9, %12 : vector<12x8x8xf32>
    %14 = vector.extract_strided_slice %13 {offsets = [0, 0, 0], sizes = [4, 8, 8], strides = [1, 1, 1]} : vector<12x8x8xf32> to vector<4x8x8xf32>
    %15 = vector.extract_strided_slice %13 {offsets = [4, 0, 0], sizes = [4, 8, 8], strides = [1, 1, 1]} : vector<12x8x8xf32> to vector<4x8x8xf32>
    %16 = vector.extract_strided_slice %13 {offsets = [8, 0, 0], sizes = [4, 8, 8], strides = [1, 1, 1]} : vector<12x8x8xf32> to vector<4x8x8xf32>
    %17 = arith.truncf %14 : vector<4x8x8xf32> to vector<4x8x8xbf16>
    %18 = arith.truncf %15 : vector<4x8x8xf32> to vector<4x8x8xbf16>
    "tpu.trace_start"() <{level = 10 : i32, message = "hsf,htf->hst"}> : () -> ()
    %cst_13 = arith.constant dense<0.000000e+00> : vector<4x8x8xf32>
    %19 = tpu.matmul %17, %18, %cst_13 {dimension_numbers = #tpu.dot_dimension_numbers<[2], [2], [1], [1], [0, 0, 0, 1, 1, 1], [0], [0]>} : vector<4x8x8xbf16>, vector<4x8x8xbf16>, vector<4x8x8xf32> -> vector<4x8x8xf32>
    "tpu.trace_stop"() : () -> ()
    %cst_14 = arith.constant 0.353553385 : f32
    %20 = vector.broadcast %cst_14 : f32 to vector<4x8x8xf32>
    %21 = arith.mulf %19, %20 : vector<4x8x8xf32>
    %cst_15 = arith.constant dense<0xFF800000> : vector<4x8xf32>
    %22 = vector.multi_reduction <maximumf>, %21, %cst_15 [2] : vector<4x8x8xf32> to vector<4x8xf32>
    %23 = vector.shape_cast %22 : vector<4x8xf32> to vector<4x8x1xf32>
    %24 = vector.broadcast %23 : vector<4x8x1xf32> to vector<4x8x8xf32>
    %25 = arith.subf %21, %24 : vector<4x8x8xf32>
    %26 = math.exp %25 : vector<4x8x8xf32>
    %cst_16 = arith.constant dense<0.000000e+00> : vector<4x8xf32>
    %27 = vector.multi_reduction <add>, %26, %cst_16 [2] : vector<4x8x8xf32> to vector<4x8xf32>
    %28 = vector.shape_cast %27 : vector<4x8xf32> to vector<4x8x1xf32>
    %29 = tpu.reciprocal %28 {approx = true} : vector<4x8x1xf32> -> vector<4x8x1xf32>
    %30 = vector.broadcast %29 : vector<4x8x1xf32> to vector<4x8x8xf32>
    %31 = arith.mulf %26, %30 : vector<4x8x8xf32>
    %32 = arith.truncf %31 : vector<4x8x8xf32> to vector<4x8x8xbf16>
    %33 = arith.truncf %16 : vector<4x8x8xf32> to vector<4x8x8xbf16>
    "tpu.trace_start"() <{level = 10 : i32, message = "hst,htf->hsf"}> : () -> ()
    %cst_17 = arith.constant dense<0.000000e+00> : vector<4x8x8xf32>
    %34 = tpu.matmul %32, %33, %cst_17 {dimension_numbers = #tpu.dot_dimension_numbers<[2], [1], [1], [2], [0, 0, 0, 1, 1, 2], [0], [0]>} : vector<4x8x8xbf16>, vector<4x8x8xbf16>, vector<4x8x8xf32> -> vector<4x8x8xf32>
    "tpu.trace_stop"() : () -> ()
    %c0_18 = arith.constant 0 : index
    %c0_19 = arith.constant 0 : index
    %c0_20 = arith.constant 0 : index
    %c0_21 = arith.constant 0 : index
    %35 = vector.load %arg5[%c0_18, %c0_19, %c0_20, %c0_21] : memref<2x4x8x32xbf16, #tpu.memory_space<vmem>>, vector<1x4x8x32xbf16>
    %36 = vector.shape_cast %35 : vector<1x4x8x32xbf16> to vector<4x8x32xbf16>
    %37 = arith.truncf %34 : vector<4x8x8xf32> to vector<4x8x8xbf16>
    "tpu.trace_start"() <{level = 10 : i32, message = "hsf,hfd->hsd"}> : () -> ()
    %cst_22 = arith.constant dense<0.000000e+00> : vector<4x8x32xf32>
    %38 = tpu.matmul %37, %36, %cst_22 {dimension_numbers = #tpu.dot_dimension_numbers<[2], [1], [1], [2], [0, 0, 0, 1, 1, 2], [0], [0]>} : vector<4x8x8xbf16>, vector<4x8x32xbf16>, vector<4x8x32xf32> -> vector<4x8x32xf32>
    "tpu.trace_stop"() : () -> ()
    %cst_23 = arith.constant dense<0.000000e+00> : vector<8x32xf32>
    %39 = vector.multi_reduction <add>, %38, %cst_23 [0] : vector<4x8x32xf32> to vector<8x32xf32>
    %c0_24 = arith.constant 0 : index
    %c0_25 = arith.constant 0 : index
    %c0_26 = arith.constant 0 : index
    %40 = vector.load %arg8[%c0_24, %c0_25, %c0_26] : memref<2x6x32xf32, #tpu.memory_space<vmem>>, vector<1x1x32xf32>
    %41 = vector.shape_cast %40 : vector<1x1x32xf32> to vector<1x32xf32>
    %42 = vector.broadcast %41 : vector<1x32xf32> to vector<8x32xf32>
    %43 = arith.addf %39, %42 : vector<8x32xf32>
    %44 = arith.addf %1, %43 : vector<8x32xf32>
    %c0_27 = arith.constant 0 : index
    %c1 = arith.constant 1 : index
    %c0_28 = arith.constant 0 : index
    %45 = vector.load %arg8[%c0_27, %c1, %c0_28] : memref<2x6x32xf32, #tpu.memory_space<vmem>>, vector<1x1x32xf32>
    %46 = vector.shape_cast %45 : vector<1x1x32xf32> to vector<1x32xf32>
    %c0_29 = arith.constant 0 : index
    %c2 = arith.constant 2 : index
    %c0_30 = arith.constant 0 : index
    %47 = vector.load %arg8[%c0_29, %c2, %c0_30] : memref<2x6x32xf32, #tpu.memory_space<vmem>>, vector<1x1x32xf32>
    %48 = vector.shape_cast %47 : vector<1x1x32xf32> to vector<1x32xf32>
    %cst_31 = arith.constant dense<0.000000e+00> : vector<8xf32>
    %49 = vector.multi_reduction <add>, %44, %cst_31 [1] : vector<8x32xf32> to vector<8xf32>
    %50 = vector.shape_cast %49 : vector<8xf32> to vector<8x1xf32>
    %cst_32 = arith.constant 3.200000e+01 : f32
    %51 = vector.broadcast %cst_32 : f32 to vector<8x1xf32>
    %52 = arith.divf %50, %51 : vector<8x1xf32>
    %53 = vector.broadcast %52 : vector<8x1xf32> to vector<8x32xf32>
    %54 = arith.subf %44, %53 : vector<8x32xf32>
    %55 = arith.mulf %54, %54 : vector<8x32xf32>
    %cst_33 = arith.constant dense<0.000000e+00> : vector<8xf32>
    %56 = vector.multi_reduction <add>, %55, %cst_33 [1] : vector<8x32xf32> to vector<8xf32>
    %57 = vector.shape_cast %56 : vector<8xf32> to vector<8x1xf32>
    %cst_34 = arith.constant 3.200000e+01 : f32
    %58 = vector.broadcast %cst_34 : f32 to vector<8x1xf32>
    %59 = arith.divf %57, %58 : vector<8x1xf32>
    %60 = vector.broadcast %52 : vector<8x1xf32> to vector<8x32xf32>
    %61 = arith.subf %44, %60 : vector<8x32xf32>
    %cst_35 = arith.constant 9.99999974E-6 : f32
    %62 = vector.broadcast %cst_35 : f32 to vector<8x1xf32>
    %63 = arith.addf %59, %62 : vector<8x1xf32>
    %64 = math.rsqrt %63 : vector<8x1xf32>
    %65 = vector.broadcast %64 : vector<8x1xf32> to vector<8x32xf32>
    %66 = arith.mulf %61, %65 : vector<8x32xf32>
    %67 = vector.broadcast %46 : vector<1x32xf32> to vector<8x32xf32>
    %68 = arith.mulf %66, %67 : vector<8x32xf32>
    %69 = vector.broadcast %48 : vector<1x32xf32> to vector<8x32xf32>
    %70 = arith.addf %68, %69 : vector<8x32xf32>
    %c0_36 = arith.constant 0 : index
    %c0_37 = arith.constant 0 : index
    %c0_38 = arith.constant 0 : index
    %c0_39 = arith.constant 0 : index
    %71 = vector.load %arg6[%c0_36, %c0_37, %c0_38, %c0_39] : memref<2x2x32x128xbf16, #tpu.memory_space<vmem>>, vector<1x1x32x128xbf16>
    %72 = vector.shape_cast %71 : vector<1x1x32x128xbf16> to vector<32x128xbf16>
    %73 = arith.truncf %70 : vector<8x32xf32> to vector<8x32xbf16>
    "tpu.trace_start"() <{level = 10 : i32, message = "sd,de->se"}> : () -> ()
    %cst_40 = arith.constant dense<0.000000e+00> : vector<8x128xf32>
    %74 = tpu.matmul %73, %72, %cst_40 {dimension_numbers = #tpu.dot_dimension_numbers<[1], [0], [0], [1], [0, 0, 1, 1], [], []>} : vector<8x32xbf16>, vector<32x128xbf16>, vector<8x128xf32> -> vector<8x128xf32>
    "tpu.trace_stop"() : () -> ()
    %c0_41 = arith.constant 0 : index
    %c0_42 = arith.constant 0 : index
    %c0_43 = arith.constant 0 : index
    %75 = vector.load %arg7[%c0_41, %c0_42, %c0_43] : memref<2x1x128xf32, #tpu.memory_space<vmem>>, vector<1x1x128xf32>
    %76 = vector.shape_cast %75 : vector<1x1x128xf32> to vector<1x128xf32>
    %77 = vector.broadcast %76 : vector<1x128xf32> to vector<8x128xf32>
    %78 = arith.addf %74, %77 : vector<8x128xf32>
    %cst_44 = arith.constant 0.000000e+00 : f32
    %79 = vector.broadcast %cst_44 : f32 to vector<8x128xf32>
    %80 = arith.maximumf %78, %79 : vector<8x128xf32>
    %c0_45 = arith.constant 0 : index
    %c1_46 = arith.constant 1 : index
    %c0_47 = arith.constant 0 : index
    %c0_48 = arith.constant 0 : index
    %81 = vector.load %arg6[%c0_45, %c1_46, %c0_47, %c0_48] : memref<2x2x32x128xbf16, #tpu.memory_space<vmem>>, vector<1x1x32x128xbf16>
    %82 = vector.shape_cast %81 : vector<1x1x32x128xbf16> to vector<32x128xbf16>
    %83 = arith.truncf %80 : vector<8x128xf32> to vector<8x128xbf16>
    "tpu.trace_start"() <{level = 10 : i32, message = "se,de->sd"}> : () -> ()
    %cst_49 = arith.constant dense<0.000000e+00> : vector<8x32xf32>
    %84 = tpu.matmul %83, %82, %cst_49 {dimension_numbers = #tpu.dot_dimension_numbers<[1], [1], [0], [0], [0, 0, 1, 0], [], []>} : vector<8x128xbf16>, vector<32x128xbf16>, vector<8x32xf32> -> vector<8x32xf32>
    "tpu.trace_stop"() : () -> ()
    %c0_50 = arith.constant 0 : index
    %c3 = arith.constant 3 : index
    %c0_51 = arith.constant 0 : index
    %85 = vector.load %arg8[%c0_50, %c3, %c0_51] : memref<2x6x32xf32, #tpu.memory_space<vmem>>, vector<1x1x32xf32>
    %86 = vector.shape_cast %85 : vector<1x1x32xf32> to vector<1x32xf32>
    %87 = vector.broadcast %86 : vector<1x32xf32> to vector<8x32xf32>
    %88 = arith.addf %84, %87 : vector<8x32xf32>
    %89 = arith.addf %70, %88 : vector<8x32xf32>
    %c0_52 = arith.constant 0 : index
    %c4 = arith.constant 4 : index
    %c0_53 = arith.constant 0 : index
    %90 = vector.load %arg8[%c0_52, %c4, %c0_53] : memref<2x6x32xf32, #tpu.memory_space<vmem>>, vector<1x1x32xf32>
    %91 = vector.shape_cast %90 : vector<1x1x32xf32> to vector<1x32xf32>
    %c0_54 = arith.constant 0 : index
    %c5 = arith.constant 5 : index
    %c0_55 = arith.constant 0 : index
    %92 = vector.load %arg8[%c0_54, %c5, %c0_55] : memref<2x6x32xf32, #tpu.memory_space<vmem>>, vector<1x1x32xf32>
    %93 = vector.shape_cast %92 : vector<1x1x32xf32> to vector<1x32xf32>
    %cst_56 = arith.constant dense<0.000000e+00> : vector<8xf32>
    %94 = vector.multi_reduction <add>, %89, %cst_56 [1] : vector<8x32xf32> to vector<8xf32>
    %95 = vector.shape_cast %94 : vector<8xf32> to vector<8x1xf32>
    %cst_57 = arith.constant 3.200000e+01 : f32
    %96 = vector.broadcast %cst_57 : f32 to vector<8x1xf32>
    %97 = arith.divf %95, %96 : vector<8x1xf32>
    %98 = vector.broadcast %97 : vector<8x1xf32> to vector<8x32xf32>
    %99 = arith.subf %89, %98 : vector<8x32xf32>
    %100 = arith.mulf %99, %99 : vector<8x32xf32>
    %cst_58 = arith.constant dense<0.000000e+00> : vector<8xf32>
    %101 = vector.multi_reduction <add>, %100, %cst_58 [1] : vector<8x32xf32> to vector<8xf32>
    %102 = vector.shape_cast %101 : vector<8xf32> to vector<8x1xf32>
    %cst_59 = arith.constant 3.200000e+01 : f32
    %103 = vector.broadcast %cst_59 : f32 to vector<8x1xf32>
    %104 = arith.divf %102, %103 : vector<8x1xf32>
    %105 = vector.broadcast %97 : vector<8x1xf32> to vector<8x32xf32>
    %106 = arith.subf %89, %105 : vector<8x32xf32>
    %cst_60 = arith.constant 9.99999974E-6 : f32
    %107 = vector.broadcast %cst_60 : f32 to vector<8x1xf32>
    %108 = arith.addf %104, %107 : vector<8x1xf32>
    %109 = math.rsqrt %108 : vector<8x1xf32>
    %110 = vector.broadcast %109 : vector<8x1xf32> to vector<8x32xf32>
    %111 = arith.mulf %106, %110 : vector<8x32xf32>
    %112 = vector.broadcast %91 : vector<1x32xf32> to vector<8x32xf32>
    %113 = arith.mulf %111, %112 : vector<8x32xf32>
    %114 = vector.broadcast %93 : vector<1x32xf32> to vector<8x32xf32>
    %115 = arith.addf %113, %114 : vector<8x32xf32>
    %116 = arith.truncf %115 : vector<8x32xf32> to vector<8x32xbf16>
    %117 = vector.shape_cast %116 : vector<8x32xbf16> to vector<1x8x32xbf16>
    %118 = vector.broadcast %117 : vector<1x8x32xbf16> to vector<12x8x32xbf16>
    %c1_61 = arith.constant 1 : index
    %c0_62 = arith.constant 0 : index
    %c0_63 = arith.constant 0 : index
    %c0_64 = arith.constant 0 : index
    %119 = vector.load %arg3[%c1_61, %c0_62, %c0_63, %c0_64] : memref<2x12x32x8xbf16, #tpu.memory_space<vmem>>, vector<1x12x32x8xbf16>
    %120 = vector.shape_cast %119 : vector<1x12x32x8xbf16> to vector<12x32x8xbf16>
    "tpu.trace_start"() <{level = 10 : i32, message = "bsd,bdf->bsf"}> : () -> ()
    %cst_65 = arith.constant dense<0.000000e+00> : vector<12x8x8xf32>
    %121 = tpu.matmul %118, %120, %cst_65 {dimension_numbers = #tpu.dot_dimension_numbers<[2], [1], [1], [2], [0, 0, 0, 1, 1, 2], [0], [0]>} : vector<12x8x32xbf16>, vector<12x32x8xbf16>, vector<12x8x8xf32> -> vector<12x8x8xf32>
    "tpu.trace_stop"() : () -> ()
    %c1_66 = arith.constant 1 : index
    %c0_67 = arith.constant 0 : index
    %c0_68 = arith.constant 0 : index
    %c0_69 = arith.constant 0 : index
    %122 = vector.load %arg4[%c1_66, %c0_67, %c0_68, %c0_69] : memref<2x12x1x8xf32, #tpu.memory_space<vmem>>, vector<1x12x1x8xf32>
    %123 = vector.shape_cast %122 : vector<1x12x1x8xf32> to vector<12x1x8xf32>
    %124 = vector.broadcast %123 : vector<12x1x8xf32> to vector<12x8x8xf32>
    %125 = arith.addf %121, %124 : vector<12x8x8xf32>
    %126 = vector.extract_strided_slice %125 {offsets = [0, 0, 0], sizes = [4, 8, 8], strides = [1, 1, 1]} : vector<12x8x8xf32> to vector<4x8x8xf32>
    %127 = vector.extract_strided_slice %125 {offsets = [4, 0, 0], sizes = [4, 8, 8], strides = [1, 1, 1]} : vector<12x8x8xf32> to vector<4x8x8xf32>
    %128 = vector.extract_strided_slice %125 {offsets = [8, 0, 0], sizes = [4, 8, 8], strides = [1, 1, 1]} : vector<12x8x8xf32> to vector<4x8x8xf32>
    %129 = arith.truncf %126 : vector<4x8x8xf32> to vector<4x8x8xbf16>
    %130 = arith.truncf %127 : vector<4x8x8xf32> to vector<4x8x8xbf16>
    "tpu.trace_start"() <{level = 10 : i32, message = "hsf,htf->hst"}> : () -> ()
    %cst_70 = arith.constant dense<0.000000e+00> : vector<4x8x8xf32>
    %131 = tpu.matmul %129, %130, %cst_70 {dimension_numbers = #tpu.dot_dimension_numbers<[2], [2], [1], [1], [0, 0, 0, 1, 1, 1], [0], [0]>} : vector<4x8x8xbf16>, vector<4x8x8xbf16>, vector<4x8x8xf32> -> vector<4x8x8xf32>
    "tpu.trace_stop"() : () -> ()
    %cst_71 = arith.constant 0.353553385 : f32
    %132 = vector.broadcast %cst_71 : f32 to vector<4x8x8xf32>
    %133 = arith.mulf %131, %132 : vector<4x8x8xf32>
    %cst_72 = arith.constant dense<0xFF800000> : vector<4x8xf32>
    %134 = vector.multi_reduction <maximumf>, %133, %cst_72 [2] : vector<4x8x8xf32> to vector<4x8xf32>
    %135 = vector.shape_cast %134 : vector<4x8xf32> to vector<4x8x1xf32>
    %136 = vector.broadcast %135 : vector<4x8x1xf32> to vector<4x8x8xf32>
    %137 = arith.subf %133, %136 : vector<4x8x8xf32>
    %138 = math.exp %137 : vector<4x8x8xf32>
    %cst_73 = arith.constant dense<0.000000e+00> : vector<4x8xf32>
    %139 = vector.multi_reduction <add>, %138, %cst_73 [2] : vector<4x8x8xf32> to vector<4x8xf32>
    %140 = vector.shape_cast %139 : vector<4x8xf32> to vector<4x8x1xf32>
    %141 = tpu.reciprocal %140 {approx = true} : vector<4x8x1xf32> -> vector<4x8x1xf32>
    %142 = vector.broadcast %141 : vector<4x8x1xf32> to vector<4x8x8xf32>
    %143 = arith.mulf %138, %142 : vector<4x8x8xf32>
    %144 = arith.truncf %143 : vector<4x8x8xf32> to vector<4x8x8xbf16>
    %145 = arith.truncf %128 : vector<4x8x8xf32> to vector<4x8x8xbf16>
    "tpu.trace_start"() <{level = 10 : i32, message = "hst,htf->hsf"}> : () -> ()
    %cst_74 = arith.constant dense<0.000000e+00> : vector<4x8x8xf32>
    %146 = tpu.matmul %144, %145, %cst_74 {dimension_numbers = #tpu.dot_dimension_numbers<[2], [1], [1], [2], [0, 0, 0, 1, 1, 2], [0], [0]>} : vector<4x8x8xbf16>, vector<4x8x8xbf16>, vector<4x8x8xf32> -> vector<4x8x8xf32>
    "tpu.trace_stop"() : () -> ()
    %c1_75 = arith.constant 1 : index
    %c0_76 = arith.constant 0 : index
    %c0_77 = arith.constant 0 : index
    %c0_78 = arith.constant 0 : index
    %147 = vector.load %arg5[%c1_75, %c0_76, %c0_77, %c0_78] : memref<2x4x8x32xbf16, #tpu.memory_space<vmem>>, vector<1x4x8x32xbf16>
    %148 = vector.shape_cast %147 : vector<1x4x8x32xbf16> to vector<4x8x32xbf16>
    %149 = arith.truncf %146 : vector<4x8x8xf32> to vector<4x8x8xbf16>
    "tpu.trace_start"() <{level = 10 : i32, message = "hsf,hfd->hsd"}> : () -> ()
    %cst_79 = arith.constant dense<0.000000e+00> : vector<4x8x32xf32>
    %150 = tpu.matmul %149, %148, %cst_79 {dimension_numbers = #tpu.dot_dimension_numbers<[2], [1], [1], [2], [0, 0, 0, 1, 1, 2], [0], [0]>} : vector<4x8x8xbf16>, vector<4x8x32xbf16>, vector<4x8x32xf32> -> vector<4x8x32xf32>
    "tpu.trace_stop"() : () -> ()
    %cst_80 = arith.constant dense<0.000000e+00> : vector<8x32xf32>
    %151 = vector.multi_reduction <add>, %150, %cst_80 [0] : vector<4x8x32xf32> to vector<8x32xf32>
    %c1_81 = arith.constant 1 : index
    %c0_82 = arith.constant 0 : index
    %c0_83 = arith.constant 0 : index
    %152 = vector.load %arg8[%c1_81, %c0_82, %c0_83] : memref<2x6x32xf32, #tpu.memory_space<vmem>>, vector<1x1x32xf32>
    %153 = vector.shape_cast %152 : vector<1x1x32xf32> to vector<1x32xf32>
    %154 = vector.broadcast %153 : vector<1x32xf32> to vector<8x32xf32>
    %155 = arith.addf %151, %154 : vector<8x32xf32>
    %156 = arith.addf %115, %155 : vector<8x32xf32>
    %c1_84 = arith.constant 1 : index
    %c1_85 = arith.constant 1 : index
    %c0_86 = arith.constant 0 : index
    %157 = vector.load %arg8[%c1_84, %c1_85, %c0_86] : memref<2x6x32xf32, #tpu.memory_space<vmem>>, vector<1x1x32xf32>
    %158 = vector.shape_cast %157 : vector<1x1x32xf32> to vector<1x32xf32>
    %c1_87 = arith.constant 1 : index
    %c2_88 = arith.constant 2 : index
    %c0_89 = arith.constant 0 : index
    %159 = vector.load %arg8[%c1_87, %c2_88, %c0_89] : memref<2x6x32xf32, #tpu.memory_space<vmem>>, vector<1x1x32xf32>
    %160 = vector.shape_cast %159 : vector<1x1x32xf32> to vector<1x32xf32>
    %cst_90 = arith.constant dense<0.000000e+00> : vector<8xf32>
    %161 = vector.multi_reduction <add>, %156, %cst_90 [1] : vector<8x32xf32> to vector<8xf32>
    %162 = vector.shape_cast %161 : vector<8xf32> to vector<8x1xf32>
    %cst_91 = arith.constant 3.200000e+01 : f32
    %163 = vector.broadcast %cst_91 : f32 to vector<8x1xf32>
    %164 = arith.divf %162, %163 : vector<8x1xf32>
    %165 = vector.broadcast %164 : vector<8x1xf32> to vector<8x32xf32>
    %166 = arith.subf %156, %165 : vector<8x32xf32>
    %167 = arith.mulf %166, %166 : vector<8x32xf32>
    %cst_92 = arith.constant dense<0.000000e+00> : vector<8xf32>
    %168 = vector.multi_reduction <add>, %167, %cst_92 [1] : vector<8x32xf32> to vector<8xf32>
    %169 = vector.shape_cast %168 : vector<8xf32> to vector<8x1xf32>
    %cst_93 = arith.constant 3.200000e+01 : f32
    %170 = vector.broadcast %cst_93 : f32 to vector<8x1xf32>
    %171 = arith.divf %169, %170 : vector<8x1xf32>
    %172 = vector.broadcast %164 : vector<8x1xf32> to vector<8x32xf32>
    %173 = arith.subf %156, %172 : vector<8x32xf32>
    %cst_94 = arith.constant 9.99999974E-6 : f32
    %174 = vector.broadcast %cst_94 : f32 to vector<8x1xf32>
    %175 = arith.addf %171, %174 : vector<8x1xf32>
    %176 = math.rsqrt %175 : vector<8x1xf32>
    %177 = vector.broadcast %176 : vector<8x1xf32> to vector<8x32xf32>
    %178 = arith.mulf %173, %177 : vector<8x32xf32>
    %179 = vector.broadcast %158 : vector<1x32xf32> to vector<8x32xf32>
    %180 = arith.mulf %178, %179 : vector<8x32xf32>
    %181 = vector.broadcast %160 : vector<1x32xf32> to vector<8x32xf32>
    %182 = arith.addf %180, %181 : vector<8x32xf32>
    %c1_95 = arith.constant 1 : index
    %c0_96 = arith.constant 0 : index
    %c0_97 = arith.constant 0 : index
    %c0_98 = arith.constant 0 : index
    %183 = vector.load %arg6[%c1_95, %c0_96, %c0_97, %c0_98] : memref<2x2x32x128xbf16, #tpu.memory_space<vmem>>, vector<1x1x32x128xbf16>
    %184 = vector.shape_cast %183 : vector<1x1x32x128xbf16> to vector<32x128xbf16>
    %185 = arith.truncf %182 : vector<8x32xf32> to vector<8x32xbf16>
    "tpu.trace_start"() <{level = 10 : i32, message = "sd,de->se"}> : () -> ()
    %cst_99 = arith.constant dense<0.000000e+00> : vector<8x128xf32>
    %186 = tpu.matmul %185, %184, %cst_99 {dimension_numbers = #tpu.dot_dimension_numbers<[1], [0], [0], [1], [0, 0, 1, 1], [], []>} : vector<8x32xbf16>, vector<32x128xbf16>, vector<8x128xf32> -> vector<8x128xf32>
    "tpu.trace_stop"() : () -> ()
    %c1_100 = arith.constant 1 : index
    %c0_101 = arith.constant 0 : index
    %c0_102 = arith.constant 0 : index
    %187 = vector.load %arg7[%c1_100, %c0_101, %c0_102] : memref<2x1x128xf32, #tpu.memory_space<vmem>>, vector<1x1x128xf32>
    %188 = vector.shape_cast %187 : vector<1x1x128xf32> to vector<1x128xf32>
    %189 = vector.broadcast %188 : vector<1x128xf32> to vector<8x128xf32>
    %190 = arith.addf %186, %189 : vector<8x128xf32>
    %cst_103 = arith.constant 0.000000e+00 : f32
    %191 = vector.broadcast %cst_103 : f32 to vector<8x128xf32>
    %192 = arith.maximumf %190, %191 : vector<8x128xf32>
    %c1_104 = arith.constant 1 : index
    %c1_105 = arith.constant 1 : index
    %c0_106 = arith.constant 0 : index
    %c0_107 = arith.constant 0 : index
    %193 = vector.load %arg6[%c1_104, %c1_105, %c0_106, %c0_107] : memref<2x2x32x128xbf16, #tpu.memory_space<vmem>>, vector<1x1x32x128xbf16>
    %194 = vector.shape_cast %193 : vector<1x1x32x128xbf16> to vector<32x128xbf16>
    %195 = arith.truncf %192 : vector<8x128xf32> to vector<8x128xbf16>
    "tpu.trace_start"() <{level = 10 : i32, message = "se,de->sd"}> : () -> ()
    %cst_108 = arith.constant dense<0.000000e+00> : vector<8x32xf32>
    %196 = tpu.matmul %195, %194, %cst_108 {dimension_numbers = #tpu.dot_dimension_numbers<[1], [1], [0], [0], [0, 0, 1, 0], [], []>} : vector<8x128xbf16>, vector<32x128xbf16>, vector<8x32xf32> -> vector<8x32xf32>
    "tpu.trace_stop"() : () -> ()
    %c1_109 = arith.constant 1 : index
    %c3_110 = arith.constant 3 : index
    %c0_111 = arith.constant 0 : index
    %197 = vector.load %arg8[%c1_109, %c3_110, %c0_111] : memref<2x6x32xf32, #tpu.memory_space<vmem>>, vector<1x1x32xf32>
    %198 = vector.shape_cast %197 : vector<1x1x32xf32> to vector<1x32xf32>
    %199 = vector.broadcast %198 : vector<1x32xf32> to vector<8x32xf32>
    %200 = arith.addf %196, %199 : vector<8x32xf32>
    %201 = arith.addf %182, %200 : vector<8x32xf32>
    %c1_112 = arith.constant 1 : index
    %c4_113 = arith.constant 4 : index
    %c0_114 = arith.constant 0 : index
    %202 = vector.load %arg8[%c1_112, %c4_113, %c0_114] : memref<2x6x32xf32, #tpu.memory_space<vmem>>, vector<1x1x32xf32>
    %203 = vector.shape_cast %202 : vector<1x1x32xf32> to vector<1x32xf32>
    %c1_115 = arith.constant 1 : index
    %c5_116 = arith.constant 5 : index
    %c0_117 = arith.constant 0 : index
    %204 = vector.load %arg8[%c1_115, %c5_116, %c0_117] : memref<2x6x32xf32, #tpu.memory_space<vmem>>, vector<1x1x32xf32>
    %205 = vector.shape_cast %204 : vector<1x1x32xf32> to vector<1x32xf32>
    %cst_118 = arith.constant dense<0.000000e+00> : vector<8xf32>
    %206 = vector.multi_reduction <add>, %201, %cst_118 [1] : vector<8x32xf32> to vector<8xf32>
    %207 = vector.shape_cast %206 : vector<8xf32> to vector<8x1xf32>
    %cst_119 = arith.constant 3.200000e+01 : f32
    %208 = vector.broadcast %cst_119 : f32 to vector<8x1xf32>
    %209 = arith.divf %207, %208 : vector<8x1xf32>
    %210 = vector.broadcast %209 : vector<8x1xf32> to vector<8x32xf32>
    %211 = arith.subf %201, %210 : vector<8x32xf32>
    %212 = arith.mulf %211, %211 : vector<8x32xf32>
    %cst_120 = arith.constant dense<0.000000e+00> : vector<8xf32>
    %213 = vector.multi_reduction <add>, %212, %cst_120 [1] : vector<8x32xf32> to vector<8xf32>
    %214 = vector.shape_cast %213 : vector<8xf32> to vector<8x1xf32>
    %cst_121 = arith.constant 3.200000e+01 : f32
    %215 = vector.broadcast %cst_121 : f32 to vector<8x1xf32>
    %216 = arith.divf %214, %215 : vector<8x1xf32>
    %217 = vector.broadcast %209 : vector<8x1xf32> to vector<8x32xf32>
    %218 = arith.subf %201, %217 : vector<8x32xf32>
    %cst_122 = arith.constant 9.99999974E-6 : f32
    %219 = vector.broadcast %cst_122 : f32 to vector<8x1xf32>
    %220 = arith.addf %216, %219 : vector<8x1xf32>
    %221 = math.rsqrt %220 : vector<8x1xf32>
    %222 = vector.broadcast %221 : vector<8x1xf32> to vector<8x32xf32>
    %223 = arith.mulf %218, %222 : vector<8x32xf32>
    %224 = vector.broadcast %203 : vector<1x32xf32> to vector<8x32xf32>
    %225 = arith.mulf %223, %224 : vector<8x32xf32>
    %226 = vector.broadcast %205 : vector<1x32xf32> to vector<8x32xf32>
    %227 = arith.addf %225, %226 : vector<8x32xf32>
    %c0_123 = arith.constant 0 : index
    %c0_124 = arith.constant 0 : index
    %228 = vector.load %arg9[%c0_123, %c0_124] : memref<48x32xf32, #tpu.memory_space<vmem>>, vector<32x32xf32>
    %229 = arith.truncf %227 : vector<8x32xf32> to vector<8x32xbf16>
    %230 = arith.truncf %228 : vector<32x32xf32> to vector<32x32xbf16>
    "tpu.trace_start"() <{level = 10 : i32, message = "sd,de->se"}> : () -> ()
    %cst_125 = arith.constant dense<0.000000e+00> : vector<8x32xf32>
    %231 = tpu.matmul %229, %230, %cst_125 {dimension_numbers = #tpu.dot_dimension_numbers<[1], [0], [0], [1], [0, 0, 1, 1], [], []>} : vector<8x32xbf16>, vector<32x32xbf16>, vector<8x32xf32> -> vector<8x32xf32>
    "tpu.trace_stop"() : () -> ()
    %c32 = arith.constant 32 : index
    %c0_126 = arith.constant 0 : index
    %232 = vector.load %arg9[%c32, %c0_126] : memref<48x32xf32, #tpu.memory_space<vmem>>, vector<1x32xf32>
    %233 = vector.broadcast %232 : vector<1x32xf32> to vector<8x32xf32>
    %234 = arith.addf %231, %233 : vector<8x32xf32>
    %235 = math.tanh %234 : vector<8x32xf32>
    %c40 = arith.constant 40 : index
    %c0_127 = arith.constant 0 : index
    %236 = vector.load %arg9[%c40, %c0_127] : memref<48x32xf32, #tpu.memory_space<vmem>>, vector<1x32xf32>
    %237 = vector.broadcast %236 : vector<1x32xf32> to vector<8x32xf32>
    %238 = arith.mulf %235, %237 : vector<8x32xf32>
    %cst_128 = arith.constant dense<0.000000e+00> : vector<8xf32>
    %239 = vector.multi_reduction <add>, %238, %cst_128 [1] : vector<8x32xf32> to vector<8xf32>
    %240 = vector.shape_cast %239 : vector<8xf32> to vector<8x1xf32>
    %cst_129 = arith.constant dense<0xFF800000> : vector<1xf32>
    %241 = vector.multi_reduction <maximumf>, %240, %cst_129 [0] : vector<8x1xf32> to vector<1xf32>
    %242 = vector.shape_cast %241 : vector<1xf32> to vector<1x1xf32>
    %243 = vector.broadcast %242 : vector<1x1xf32> to vector<8x1xf32>
    %244 = arith.subf %240, %243 : vector<8x1xf32>
    %245 = math.exp %244 : vector<8x1xf32>
    %cst_130 = arith.constant dense<0.000000e+00> : vector<1xf32>
    %246 = vector.multi_reduction <add>, %245, %cst_130 [0] : vector<8x1xf32> to vector<1xf32>
    %247 = vector.shape_cast %246 : vector<1xf32> to vector<1x1xf32>
    %248 = tpu.reciprocal %247 {approx = true} : vector<1x1xf32> -> vector<1x1xf32>
    %249 = vector.broadcast %248 : vector<1x1xf32> to vector<8x1xf32>
    %250 = arith.mulf %245, %249 : vector<8x1xf32>
    %251 = vector.broadcast %250 : vector<8x1xf32> to vector<8x32xf32>
    %252 = arith.mulf %227, %251 : vector<8x32xf32>
    %c0_131 = arith.constant 0 : index
    %c0_132 = arith.constant 0 : index
    %c0_133 = arith.constant 0 : index
    %253 = vector.load %arg10[%c0_131, %c0_132, %c0_133] : memref<1x16x32xf32, #tpu.memory_space<vmem>>, vector<1x8x32xf32>
    %254 = vector.shape_cast %253 : vector<1x8x32xf32> to vector<8x32xf32>
    %255 = vector.shape_cast %252 : vector<8x32xf32> to vector<1x8x32xf32>
    tpu.vector_store %arg10[%c0_131, %c0_132, %c0_133], %255 {strides = array<i32>} : memref<1x16x32xf32, #tpu.memory_space<vmem>>, vector<1x8x32xf32>,
    %256 = arith.mulf %227, %3 : vector<8x32xf32>
    %cst_134 = arith.constant dense<0.000000e+00> : vector<8xf32>
    %257 = vector.multi_reduction <add>, %256, %cst_134 [1] : vector<8x32xf32> to vector<8xf32>
    %258 = vector.shape_cast %257 : vector<8xf32> to vector<8x1xf32>
    %259 = arith.mulf %227, %227 : vector<8x32xf32>
    %cst_135 = arith.constant dense<0.000000e+00> : vector<8xf32>
    %260 = vector.multi_reduction <add>, %259, %cst_135 [1] : vector<8x32xf32> to vector<8xf32>
    %261 = vector.shape_cast %260 : vector<8xf32> to vector<8x1xf32>
    %262 = math.sqrt %261 : vector<8x1xf32>
    %263 = arith.mulf %3, %3 : vector<8x32xf32>
    %cst_136 = arith.constant dense<0.000000e+00> : vector<8xf32>
    %264 = vector.multi_reduction <add>, %263, %cst_136 [1] : vector<8x32xf32> to vector<8xf32>
    %265 = vector.shape_cast %264 : vector<8xf32> to vector<8x1xf32>
    %266 = math.sqrt %265 : vector<8x1xf32>
    %cst_137 = arith.constant 9.99999993E-9 : f32
    %267 = vector.broadcast %cst_137 : f32 to vector<8x1xf32>
    %268 = arith.maximumf %262, %267 : vector<8x1xf32>
    %cst_138 = arith.constant 9.99999993E-9 : f32
    %269 = vector.broadcast %cst_138 : f32 to vector<8x1xf32>
    %270 = arith.maximumf %266, %269 : vector<8x1xf32>
    %271 = arith.mulf %268, %270 : vector<8x1xf32>
    %272 = tpu.reciprocal %271 {approx = true} : vector<8x1xf32> -> vector<8x1xf32>
    %273 = arith.mulf %258, %272 : vector<8x1xf32>
    %274 = vector.shape_cast %273 : vector<8x1xf32> to vector<1x8x1xf32>
    %cst_139 = arith.constant dense<0xFF800000> : vector<1xf32>
    %275 = vector.multi_reduction <maximumf>, %274, %cst_139 [1, 2] : vector<1x8x1xf32> to vector<1xf32>
    %276 = vector.shape_cast %275 : vector<1xf32> to vector<1x1x1xf32>
    %277 = vector.extract %276[0, 0, 0] : f32 from vector<1x1x1xf32>
    %278 = vector.broadcast %277 : f32 to vector<8x1xf32>
    %279 = arith.subf %273, %278 : vector<8x1xf32>
    %280 = math.exp %279 : vector<8x1xf32>
    %281 = vector.shape_cast %280 : vector<8x1xf32> to vector<1x8x1xf32>
    %cst_140 = arith.constant dense<0.000000e+00> : vector<1xf32>
    %282 = vector.multi_reduction <add>, %281, %cst_140 [1, 2] : vector<1x8x1xf32> to vector<1xf32>
    %283 = vector.shape_cast %282 : vector<1xf32> to vector<1x1x1xf32>
    %284 = vector.extract %283[0, 0, 0] : f32 from vector<1x1x1xf32>
    %285 = math.log %284 : f32
    %286 = arith.addf %277, %285 : f32
    %287 = vector.extract_strided_slice %273 {offsets = [0, 0], sizes = [1, 1], strides = [1, 1]} : vector<8x1xf32> to vector<1x1xf32>
    %288 = vector.extract %287[0, 0] : f32 from vector<1x1xf32>
    %289 = arith.subf %286, %288 : f32
    %290 = vector.broadcast %289 : f32 to vector<8x32xf32>
    %c0_141 = arith.constant 0 : index
    %c8 = arith.constant 8 : index
    %c0_142 = arith.constant 0 : index
    %291 = vector.load %arg10[%c0_141, %c8, %c0_142] : memref<1x16x32xf32, #tpu.memory_space<vmem>>, vector<1x8x32xf32>
    %292 = vector.shape_cast %291 : vector<1x8x32xf32> to vector<8x32xf32>
    %293 = vector.shape_cast %290 : vector<8x32xf32> to vector<1x8x32xf32>
    tpu.vector_store %arg10[%c0_141, %c8, %c0_142], %293 {strides = array<i32>} : memref<1x16x32xf32, #tpu.memory_space<vmem>>, vector<1x8x32xf32>,
    return
  }
  func.func @transform_0(%arg0: i32) -> (i32, i32, i32) {
    %c0_i32 = arith.constant 0 : i32
    %c0_i32_0 = arith.constant 0 : i32
    %c0_i32_1 = arith.constant 0 : i32
    return %arg0, %c0_i32, %c0_i32_0 : i32, i32, i32
  }
  func.func @transform_1(%arg0: i32) -> (i32, i32, i32) {
    %c0_i32 = arith.constant 0 : i32
    %c0_i32_0 = arith.constant 0 : i32
    %c0_i32_1 = arith.constant 0 : i32
    return %arg0, %c0_i32, %c0_i32_0 : i32, i32, i32
  }
  func.func @transform_2(%arg0: i32) -> (i32, i32, i32, i32) {
    %c0_i32 = arith.constant 0 : i32
    %c0_i32_0 = arith.constant 0 : i32
    %c0_i32_1 = arith.constant 0 : i32
    %c0_i32_2 = arith.constant 0 : i32
    %c0_i32_3 = arith.constant 0 : i32
    return %c0_i32, %c0_i32_0, %c0_i32_1, %c0_i32_2 : i32, i32, i32, i32
  }
  func.func @transform_3(%arg0: i32) -> (i32, i32, i32, i32) {
    %c0_i32 = arith.constant 0 : i32
    %c0_i32_0 = arith.constant 0 : i32
    %c0_i32_1 = arith.constant 0 : i32
    %c0_i32_2 = arith.constant 0 : i32
    %c0_i32_3 = arith.constant 0 : i32
    return %c0_i32, %c0_i32_0, %c0_i32_1, %c0_i32_2 : i32, i32, i32, i32
  }
  func.func @transform_4(%arg0: i32) -> (i32, i32, i32, i32) {
    %c0_i32 = arith.constant 0 : i32
    %c0_i32_0 = arith.constant 0 : i32
    %c0_i32_1 = arith.constant 0 : i32
    %c0_i32_2 = arith.constant 0 : i32
    %c0_i32_3 = arith.constant 0 : i32
    return %c0_i32, %c0_i32_0, %c0_i32_1, %c0_i32_2 : i32, i32, i32, i32
  }
  func.func @transform_5(%arg0: i32) -> (i32, i32, i32, i32) {
    %c0_i32 = arith.constant 0 : i32
    %c0_i32_0 = arith.constant 0 : i32
    %c0_i32_1 = arith.constant 0 : i32
    %c0_i32_2 = arith.constant 0 : i32
    %c0_i32_3 = arith.constant 0 : i32
    return %c0_i32, %c0_i32_0, %c0_i32_1, %c0_i32_2 : i32, i32, i32, i32
  }
  func.func @transform_6(%arg0: i32) -> (i32, i32, i32) {
    %c0_i32 = arith.constant 0 : i32
    %c0_i32_0 = arith.constant 0 : i32
    %c0_i32_1 = arith.constant 0 : i32
    %c0_i32_2 = arith.constant 0 : i32
    return %c0_i32, %c0_i32_0, %c0_i32_1 : i32, i32, i32
  }
  func.func @transform_7(%arg0: i32) -> (i32, i32, i32) {
    %c0_i32 = arith.constant 0 : i32
    %c0_i32_0 = arith.constant 0 : i32
    %c0_i32_1 = arith.constant 0 : i32
    %c0_i32_2 = arith.constant 0 : i32
    return %c0_i32, %c0_i32_0, %c0_i32_1 : i32, i32, i32
  }
  func.func @transform_8(%arg0: i32) -> (i32, i32) {
    %c0_i32 = arith.constant 0 : i32
    %c0_i32_0 = arith.constant 0 : i32
    %c0_i32_1 = arith.constant 0 : i32
    return %c0_i32, %c0_i32_0 : i32, i32
  }
  func.func @transform_9(%arg0: i32) -> (i32, i32, i32) {
    %c0_i32 = arith.constant 0 : i32
    %c0_i32_0 = arith.constant 0 : i32
    %c0_i32_1 = arith.constant 0 : i32
    return %arg0, %c0_i32, %c0_i32_0 : i32, i32, i32
  }
}

</mosaic_0001>

<llo_original>
// kernel: tpu_custom_call.1
$region0: #{tpu_custom_call.1}
  #allocation0 [shape = 'u32[]', space=smem, size = 0x4, offset = 0x4, fixed_abs, tag = 'smem constant byte address 0x4 - core index']
  #allocation1 [shape = 'u32[144,128]{1,0:T(1,128)}', space=vmem, size = 0x12000, scoped, tag = 'internal scratch']
  %s0 = inlined_call_operand.vmem [shape: f32[2,8,32], index: 0, kind: input, shape index: {}]
  %s1 = inlined_call_operand.vmem [shape: f32[2,8,32], index: 1, kind: input, shape index: {}]
  %s2 = inlined_call_operand.vmem [shape: bf16[2,12,32,8], index: 2, kind: input, shape index: {}]
  %s3 = inlined_call_operand.vmem [shape: f32[2,12,1,8], index: 3, kind: input, shape index: {}]
  %s4 = inlined_call_operand.vmem [shape: bf16[2,4,8,32], index: 4, kind: input, shape index: {}]
  %s5 = inlined_call_operand.vmem [shape: bf16[2,2,32,128], index: 5, kind: input, shape index: {}]
  %s6 = inlined_call_operand.vmem [shape: f32[2,1,128], index: 6, kind: input, shape index: {}]
  %s7 = inlined_call_operand.vmem [shape: f32[2,6,32], index: 7, kind: input, shape index: {}]
  %s8 = inlined_call_operand.vmem [shape: f32[48,32], index: 8, kind: input, shape index: {}]
  %s9 = inlined_call_operand.hbm [shape: f32[2,16,32], index: 9, kind: output, shape index: {}]
  %s10 = sld [smem:[#allocation0]]
  $region69: #{tpu_custom_call.1} parent=0
    _
  %s12 = ssub.s32 1, %s10
  %s13 = scalar_select 0, %s12, %s10
  $region1: #{tpu_custom_call.1} parent=0
    #allocation2 [shape = 'u8[16384]{0}', space=vmem, size = 0x4000, scoped, tag = 'output window, operand 0']
    #allocation3 [shape = 's32[2]{0}', space=sflag, size = 0x8, scoped, tag = 'scoped memory for tpu_custom_call.1']
    %14 = vsyncpa [#allocation3], 0
    %s15 = scalar_lea.sflag [#allocation3], 1
    %16 = vsyncpa %s15, 0
    loop: start=0, step=1, limit=4
    $region2: #{tpu_custom_call.1} parent=1 // loop_pre_header
      _
    $region3: #{tpu_custom_call.1} parent=1 // loop_header
      %s18 = sphi 0, %s22
      %p19 = scmp.ge.s32.totalorder %s18, 4
      %s28 = sphi 0, %s30
      %s31 = sphi 0, %s28
      %s32 = sphi 0, %s31
      %s48 = sphi 0, %s32
      %s54 = sphi 0, %s56
      %s57 = sphi 0, %s54
      %s58 = sphi 0, %s57
      %s74 = sphi 0, %s58
      %s78 = sphi 0, %s78
      %s80 = sphi 0, %s78
      %s81 = sphi 0, %s80
      %s95 = sphi 0, %s81
      %s99 = sphi 0, %s99
      %s101 = sphi 0, %s99
      %s102 = sphi 0, %s101
      %s116 = sphi 0, %s102
      %s120 = sphi 0, %s120
      %s122 = sphi 0, %s120
      %s123 = sphi 0, %s122
      %s137 = sphi 0, %s123
      %s141 = sphi 0, %s141
      %s143 = sphi 0, %s141
      %s144 = sphi 0, %s143
      %s158 = sphi 0, %s144
      %s162 = sphi 0, %s162
      %s164 = sphi 0, %s162
      %s165 = sphi 0, %s164
      %s179 = sphi 0, %s165
      %s183 = sphi 0, %s183
      %s185 = sphi 0, %s183
      %s186 = sphi 0, %s185
      %s200 = sphi 0, %s186
      %s204 = sphi 0, %s204
      %s206 = sphi 0, %s204
      %s207 = sphi 0, %s206
      %s221 = sphi 0, %s207
      %s227 = sphi 0, %s229
      %s230 = sphi 0, %s227
      %s231 = sphi 0, %s230
      %s247 = sphi 0, %s231
    $region4: #{tpu_custom_call.1} parent=1 // loop_header_branch
      %21 = sbr.rel (%p19) target = $region8
    $region5: #{tpu_custom_call.1} parent=1 // loop_body
      %s23 = ssub.s32 %s18, 1
      %s24 = ssub.s32 %s18, 2
      %s25 = sadd.s32 %s18, 1
      %s26 = ssub.s32 %s18, %s25
      %p27 = scmp.eq.s32.totalorder %s26, 0
      %s29 = sadd.s32 %s28, 1
      %s30 = scalar_select %p27, %s28, %s29
      %p33 = pneg %p27
      %p34 = scmp.eq.s32.totalorder %s18, 1
      %p35 = por %p33, %p34
      %p36 = scmp.ne.s32.totalorder %s28, %s31
      %p37 = scmp.eq.s32.totalorder %s18, 0
      %p38 = por %p36, %p37
      %p39 = scmp.ne.s32.totalorder %s28, %s31
      %p40 = scmp.eq.s32.totalorder %s23, 1
      %p41 = por %p39, %p40
      %p42 = scmp.ne.s32.totalorder %s31, %s32
      %p43 = scmp.eq.s32.totalorder %s23, 0
      %p44 = por %p42, %p43
      %p45 = scmp.ne.s32.totalorder %s31, %s32
      %p46 = scmp.eq.s32.totalorder %s24, 1
      %p47 = por %p45, %p46
      %p49 = scmp.ne.s32.totalorder %s32, %s48
      %p50 = scmp.eq.s32.totalorder %s24, 0
      %p51 = por %p49, %p50
      %s52 = ssub.s32 %s18, %s25
      %p53 = scmp.eq.s32.totalorder %s52, 0
      %s55 = sadd.s32 %s54, 1
      %s56 = scalar_select %p53, %s54, %s55
      %p59 = pneg %p53
      %p60 = scmp.eq.s32.totalorder %s18, 1
      %p61 = por %p59, %p60
      %p62 = scmp.ne.s32.totalorder %s54, %s57
      %p63 = scmp.eq.s32.totalorder %s18, 0
      %p64 = por %p62, %p63
      %p65 = scmp.ne.s32.totalorder %s54, %s57
      %p66 = scmp.eq.s32.totalorder %s23, 1
      %p67 = por %p65, %p66
      %p68 = scmp.ne.s32.totalorder %s57, %s58
      %p69 = scmp.eq.s32.totalorder %s23, 0
      %p70 = por %p68, %p69
      %p71 = scmp.ne.s32.totalorder %s57, %s58
      %p72 = scmp.eq.s32.totalorder %s24, 1
      %p73 = por %p71, %p72
      %p75 = scmp.ne.s32.totalorder %s58, %s74
      %p76 = scmp.eq.s32.totalorder %s24, 0
      %p77 = por %p75, %p76
      %s79 = sadd.s32 %s78, 1
      %p82 = scmp.eq.s32.totalorder %s18, 1
      %p83 = scmp.ne.s32.totalorder %s78, %s80
      %p84 = scmp.eq.s32.totalorder %s18, 0
      %p85 = por %p83, %p84
      %p86 = scmp.ne.s32.totalorder %s78, %s80
      %p87 = scmp.eq.s32.totalorder %s23, 1
      %p88 = por %p86, %p87
      %p89 = scmp.ne.s32.totalorder %s80, %s81
      %p90 = scmp.eq.s32.totalorder %s23, 0
      %p91 = por %p89, %p90
      %p92 = scmp.ne.s32.totalorder %s80, %s81
      %p93 = scmp.eq.s32.totalorder %s24, 1
      %p94 = por %p92, %p93
      %p96 = scmp.ne.s32.totalorder %s81, %s95
      %p97 = scmp.eq.s32.totalorder %s24, 0
      %p98 = por %p96, %p97
      %s100 = sadd.s32 %s99, 1
      %p103 = scmp.eq.s32.totalorder %s18, 1
      %p104 = scmp.ne.s32.totalorder %s99, %s101
      %p105 = scmp.eq.s32.totalorder %s18, 0
      %p106 = por %p104, %p105
      %p107 = scmp.ne.s32.totalorder %s99, %s101
      %p108 = scmp.eq.s32.totalorder %s23, 1
      %p109 = por %p107, %p108
      %p110 = scmp.ne.s32.totalorder %s101, %s102
      %p111 = scmp.eq.s32.totalorder %s23, 0
      %p112 = por %p110, %p111
      %p113 = scmp.ne.s32.totalorder %s101, %s102
      %p114 = scmp.eq.s32.totalorder %s24, 1
      %p115 = por %p113, %p114
      %p117 = scmp.ne.s32.totalorder %s102, %s116
      %p118 = scmp.eq.s32.totalorder %s24, 0
      %p119 = por %p117, %p118
      %s121 = sadd.s32 %s120, 1
      %p124 = scmp.eq.s32.totalorder %s18, 1
      %p125 = scmp.ne.s32.totalorder %s120, %s122
      %p126 = scmp.eq.s32.totalorder %s18, 0
      %p127 = por %p125, %p126
      %p128 = scmp.ne.s32.totalorder %s120, %s122
      %p129 = scmp.eq.s32.totalorder %s23, 1
      %p130 = por %p128, %p129
      %p131 = scmp.ne.s32.totalorder %s122, %s123
      %p132 = scmp.eq.s32.totalorder %s23, 0
      %p133 = por %p131, %p132
      %p134 = scmp.ne.s32.totalorder %s122, %s123
      %p135 = scmp.eq.s32.totalorder %s24, 1
      %p136 = por %p134, %p135
      %p138 = scmp.ne.s32.totalorder %s123, %s137
      %p139 = scmp.eq.s32.totalorder %s24, 0
      %p140 = por %p138, %p139
      %s142 = sadd.s32 %s141, 1
      %p145 = scmp.eq.s32.totalorder %s18, 1
      %p146 = scmp.ne.s32.totalorder %s141, %s143
      %p147 = scmp.eq.s32.totalorder %s18, 0
      %p148 = por %p146, %p147
      %p149 = scmp.ne.s32.totalorder %s141, %s143
      %p150 = scmp.eq.s32.totalorder %s23, 1
      %p151 = por %p149, %p150
      %p152 = scmp.ne.s32.totalorder %s143, %s144
      %p153 = scmp.eq.s32.totalorder %s23, 0
      %p154 = por %p152, %p153
      %p155 = scmp.ne.s32.totalorder %s143, %s144
      %p156 = scmp.eq.s32.totalorder %s24, 1
      %p157 = por %p155, %p156
      %p159 = scmp.ne.s32.totalorder %s144, %s158
      %p160 = scmp.eq.s32.totalorder %s24, 0
      %p161 = por %p159, %p160
      %s163 = sadd.s32 %s162, 1
      %p166 = scmp.eq.s32.totalorder %s18, 1
      %p167 = scmp.ne.s32.totalorder %s162, %s164
      %p168 = scmp.eq.s32.totalorder %s18, 0
      %p169 = por %p167, %p168
      %p170 = scmp.ne.s32.totalorder %s162, %s164
      %p171 = scmp.eq.s32.totalorder %s23, 1
      %p172 = por %p170, %p171
      %p173 = scmp.ne.s32.totalorder %s164, %s165
      %p174 = scmp.eq.s32.totalorder %s23, 0
      %p175 = por %p173, %p174
      %p176 = scmp.ne.s32.totalorder %s164, %s165
      %p177 = scmp.eq.s32.totalorder %s24, 1
      %p178 = por %p176, %p177
      %p180 = scmp.ne.s32.totalorder %s165, %s179
      %p181 = scmp.eq.s32.totalorder %s24, 0
      %p182 = por %p180, %p181
      %s184 = sadd.s32 %s183, 1
      %p187 = scmp.eq.s32.totalorder %s18, 1
      %p188 = scmp.ne.s32.totalorder %s183, %s185
      %p189 = scmp.eq.s32.totalorder %s18, 0
      %p190 = por %p188, %p189
      %p191 = scmp.ne.s32.totalorder %s183, %s185
      %p192 = scmp.eq.s32.totalorder %s23, 1
      %p193 = por %p191, %p192
      %p194 = scmp.ne.s32.totalorder %s185, %s186
      %p195 = scmp.eq.s32.totalorder %s23, 0
      %p196 = por %p194, %p195
      %p197 = scmp.ne.s32.totalorder %s185, %s186
      %p198 = scmp.eq.s32.totalorder %s24, 1
      %p199 = por %p197, %p198
      %p201 = scmp.ne.s32.totalorder %s186, %s200
      %p202 = scmp.eq.s32.totalorder %s24, 0
      %p203 = por %p201, %p202
      %s205 = sadd.s32 %s204, 1
      %p208 = scmp.eq.s32.totalorder %s18, 1
      %p209 = scmp.ne.s32.totalorder %s204, %s206
      %p210 = scmp.eq.s32.totalorder %s18, 0
      %p211 = por %p209, %p210
      %p212 = scmp.ne.s32.totalorder %s204, %s206
      %p213 = scmp.eq.s32.totalorder %s23, 1
      %p214 = por %p212, %p213
      %p215 = scmp.ne.s32.totalorder %s206, %s207
      %p216 = scmp.eq.s32.totalorder %s23, 0
      %p217 = por %p215, %p216
      %p218 = scmp.ne.s32.totalorder %s206, %s207
      %p219 = scmp.eq.s32.totalorder %s24, 1
      %p220 = por %p218, %p219
      %p222 = scmp.ne.s32.totalorder %s207, %s221
      %p223 = scmp.eq.s32.totalorder %s24, 0
      %p224 = por %p222, %p223
      %s225 = ssub.s32 %s18, %s25
      %p226 = scmp.eq.s32.totalorder %s225, 0
      %s228 = sadd.s32 %s227, 1
      %s229 = scalar_select %p226, %s227, %s228
      %p232 = pneg %p226
      %p233 = scmp.eq.s32.totalorder %s18, 1
      %p234 = por %p232, %p233
      %p235 = scmp.ne.s32.totalorder %s227, %s230
      %p236 = scmp.eq.s32.totalorder %s18, 0
      %p237 = por %p235, %p236
      %p238 = scmp.ne.s32.totalorder %s227, %s230
      %p239 = scmp.eq.s32.totalorder %s23, 1
      %p240 = por %p238, %p239
      %p241 = scmp.ne.s32.totalorder %s230, %s231
      %p242 = scmp.eq.s32.totalorder %s23, 0
      %p243 = por %p241, %p242
      %p244 = scmp.ne.s32.totalorder %s230, %s231
      %p245 = scmp.eq.s32.totalorder %s24, 1
      %p246 = por %p244, %p245
      %p248 = scmp.ne.s32.totalorder %s231, %s247
      %p249 = scmp.eq.s32.totalorder %s24, 0
      %p250 = por %p248, %p249
      %p251 = scmp.le.s32.totalorder 1, %s18
      %p252 = scmp.lt.s32.totalorder %s18, 3
      %p253 = pnand %p251, %p252
      %p254 = pneg %p253
      // Predicated region
      $region9: #{tpu_custom_call.1} parent=5 // pred_check
        _
      $region10: #{tpu_custom_call.1} parent=5 // pred_check_branch
        %256 = sbr.rel (%p253) target = $region12
      $region11: #{tpu_custom_call.1} parent=5 // pred_region
        %s257 = ssub.s32 %s18, 1
        // Predicated region
        $region13: #{tpu_custom_call.1} parent=11 // pred_check
          %p258 = pneg %p91
        $region14: #{tpu_custom_call.1} parent=11 // pred_check_branch
          %260 = sbr.rel (%p258) target = $region16
        $region15: #{tpu_custom_call.1} parent=11 // pred_region
          _
        $region16: #{tpu_custom_call.1} parent=11 // pred_fallthru
          _
        // Predicated region
        $region17: #{tpu_custom_call.1} parent=11 // pred_check
          %p261 = pneg %p112
        $region18: #{tpu_custom_call.1} parent=11 // pred_check_branch
          %263 = sbr.rel (%p261) target = $region20
        $region19: #{tpu_custom_call.1} parent=11 // pred_region
          _
        $region20: #{tpu_custom_call.1} parent=11 // pred_fallthru
          _
        // Predicated region
        $region21: #{tpu_custom_call.1} parent=11 // pred_check
          %p264 = pneg %p133
        $region22: #{tpu_custom_call.1} parent=11 // pred_check_branch
          %266 = sbr.rel (%p264) target = $region24
        $region23: #{tpu_custom_call.1} parent=11 // pred_region
          _
        $region24: #{tpu_custom_call.1} parent=11 // pred_fallthru
          _
        // Predicated region
        $region25: #{tpu_custom_call.1} parent=11 // pred_check
          %p267 = pneg %p154
        $region26: #{tpu_custom_call.1} parent=11 // pred_check_branch
          %269 = sbr.rel (%p267) target = $region28
        $region27: #{tpu_custom_call.1} parent=11 // pred_region
          _
        $region28: #{tpu_custom_call.1} parent=11 // pred_fallthru
          _
        // Predicated region
        $region29: #{tpu_custom_call.1} parent=11 // pred_check
          %p270 = pneg %p175
        $region30: #{tpu_custom_call.1} parent=11 // pred_check_branch
          %272 = sbr.rel (%p270) target = $region32
        $region31: #{tpu_custom_call.1} parent=11 // pred_region
          _
        $region32: #{tpu_custom_call.1} parent=11 // pred_fallthru
          _
        // Predicated region
        $region33: #{tpu_custom_call.1} parent=11 // pred_check
          %p273 = pneg %p196
        $region34: #{tpu_custom_call.1} parent=11 // pred_check_branch
          %275 = sbr.rel (%p273) target = $region36
        $region35: #{tpu_custom_call.1} parent=11 // pred_region
          _
        $region36: #{tpu_custom_call.1} parent=11 // pred_fallthru
          _
        // Predicated region
        $region37: #{tpu_custom_call.1} parent=11 // pred_check
          %p276 = pneg %p217
        $region38: #{tpu_custom_call.1} parent=11 // pred_check_branch
          %278 = sbr.rel (%p276) target = $region40
        $region39: #{tpu_custom_call.1} parent=11 // pred_region
          _
        $region40: #{tpu_custom_call.1} parent=11 // pred_fallthru
          _
      $region12: #{tpu_custom_call.1} parent=5 // pred_fallthru
        _
      %p279 = scmp.lt.s32.totalorder %s18, 2
      // Predicated region
      $region41: #{tpu_custom_call.1} parent=5 // pred_check
        %p280 = pneg %p279
      $region42: #{tpu_custom_call.1} parent=5 // pred_check_branch
        %282 = sbr.rel (%p280) target = $region44
      $region43: #{tpu_custom_call.1} parent=5 // pred_region
        // Predicated region
        $region45: #{tpu_custom_call.1} parent=43 // pred_check
          %p283 = pneg %p38
        $region46: #{tpu_custom_call.1} parent=43 // pred_check_branch
          %285 = sbr.rel (%p283) target = $region48
        $region47: #{tpu_custom_call.1} parent=43 // pred_region
          %p286 = scmp.lt.s32.totalorder %s18, 1
          %s287 = scalar_select %p286, %s18, 1
          %s288 = smul.addr %s287, 8
          %s289 = scalar_lea.vmem %s0, %s288
        $region48: #{tpu_custom_call.1} parent=43 // pred_fallthru
          _
        // Predicated region
        $region49: #{tpu_custom_call.1} parent=43 // pred_check
          %p290 = pneg %p64
        $region50: #{tpu_custom_call.1} parent=43 // pred_check_branch
          %292 = sbr.rel (%p290) target = $region52
        $region51: #{tpu_custom_call.1} parent=43 // pred_region
          %p293 = scmp.lt.s32.totalorder %s18, 1
          %s294 = scalar_select %p293, %s18, 1
          %s295 = smul.addr %s294, 8
          %s296 = scalar_lea.vmem %s1, %s295
        $region52: #{tpu_custom_call.1} parent=43 // pred_fallthru
          _
      $region44: #{tpu_custom_call.1} parent=5 // pred_fallthru
        _
      %p297 = scmp.le.s32.totalorder 1, %s18
      %p298 = scmp.lt.s32.totalorder %s18, 3
      %p299 = pnand %p297, %p298
      %p300 = pneg %p299
      // Predicated region
      $region53: #{tpu_custom_call.1} parent=5 // pred_check
        _
      $region54: #{tpu_custom_call.1} parent=5 // pred_check_branch
        %302 = sbr.rel (%p299) target = $region56
      $region55: #{tpu_custom_call.1} parent=5 // pred_region
        %s303 = ssub.s32 %s18, 1
        %p304 = scmp.lt.s32.totalorder %s23, 1
        %s305 = scalar_select %p304, %s23, 1
        %s306 = smul.addr %s305, 8
        %s307 = scalar_lea.vmem %s0, %s306
        %p308 = pneg %p44
        %p309 = pneg %p41
        %p310 = scmp.lt.s32.totalorder %s23, 1
        %s311 = scalar_select %p310, %s23, 1
        %s312 = smul.addr %s311, 8
        %s313 = scalar_lea.vmem %s1, %s312
        %p314 = pneg %p70
        %p315 = pneg %p67
        %p316 = pneg %p91
        %p317 = pneg %p88
        %p318 = pneg %p112
        %p319 = pneg %p109
        %p320 = pneg %p133
        %p321 = pneg %p130
        %p322 = pneg %p154
        %p323 = pneg %p151
        %p324 = pneg %p175
        %p325 = pneg %p172
        %p326 = pneg %p196
        %p327 = pneg %p193
        %p328 = pneg %p217
        %p329 = pneg %p214
        %p330 = pneg %p243
        %p331 = pneg %p240
        %s332 = sand.u32 %s230, 1
        %s333 = scalar_lea.sflag [#allocation3], %s332
        %s334 = sand.u32 %s230, 1
        %s335 = smul.addr %s334, 16
        %s336 = scalar_lea.vmem [#allocation2], %s335
        %p337 = scmp.lt.s32.totalorder %s23, 1
        %s338 = scalar_select %p337, %s23, 1
        %s339 = smul.addr %s338, 8
        %s340 = scalar_lea.vmem %s0, %s339
        %p341 = scmp.lt.s32.totalorder %s23, 1
        %s342 = scalar_select %p341, %s23, 1
        %s343 = smul.addr %s342, 8
        %s344 = scalar_lea.vmem %s1, %s343
        %v346 = vld [vmem:[%s340] sm:$0xff]
        %v347 = vld [vmem:[%s344] sm:$0xff]
        %v348 = vpack.c.bf16 %v346, %v346
        %v349 = vld [vmem:[%s2] sm:$0xf]
        %v350 = vld [vmem:[%s2 + $0x4] sm:$0xf]
        %v351 = vld [vmem:[%s2 + $0x8] sm:$0xf]
        %v352 = vld [vmem:[%s2 + $0xc] sm:$0xf]
        %v353 = vld [vmem:[%s2 + $0x10] sm:$0xf]
        %v354 = vld [vmem:[%s2 + $0x14] sm:$0xf]
        %v355 = vld [vmem:[%s2 + $0x18] sm:$0xf]
        %v356 = vld [vmem:[%s2 + $0x1c] sm:$0xf]
        %v357 = vld [vmem:[%s2 + $0x20] sm:$0xf]
        %v358 = vld [vmem:[%s2 + $0x24] sm:$0xf]
        %v359 = vld [vmem:[%s2 + $0x28] sm:$0xf]
        %v360 = vld [vmem:[%s2 + $0x2c] sm:$0xf]
        %v361 = vld [vmem:[%s2 + $0x30] sm:$0xf]
        %v362 = vld [vmem:[%s2 + $0x34] sm:$0xf]
        %v363 = vld [vmem:[%s2 + $0x38] sm:$0xf]
        %v364 = vld [vmem:[%s2 + $0x3c] sm:$0xf]
        %v365 = vld [vmem:[%s2 + $0x40] sm:$0xf]
        %v366 = vld [vmem:[%s2 + $0x44] sm:$0xf]
        %v367 = vld [vmem:[%s2 + $0x48] sm:$0xf]
        %v368 = vld [vmem:[%s2 + $0x4c] sm:$0xf]
        %v369 = vld [vmem:[%s2 + $0x50] sm:$0xf]
        %v370 = vld [vmem:[%s2 + $0x54] sm:$0xf]
        %v371 = vld [vmem:[%s2 + $0x58] sm:$0xf]
        %v372 = vld [vmem:[%s2 + $0x5c] sm:$0xf]
        %v373 = vld [vmem:[%s2 + $0x60] sm:$0xf]
        %v374 = vld [vmem:[%s2 + $0x64] sm:$0xf]
        %v375 = vld [vmem:[%s2 + $0x68] sm:$0xf]
        %v376 = vld [vmem:[%s2 + $0x6c] sm:$0xf]
        %v377 = vld [vmem:[%s2 + $0x70] sm:$0xf]
        %v378 = vld [vmem:[%s2 + $0x74] sm:$0xf]
        %v379 = vld [vmem:[%s2 + $0x78] sm:$0xf]
        %v380 = vld [vmem:[%s2 + $0x7c] sm:$0xf]
        %v381 = vld [vmem:[%s2 + $0x80] sm:$0xf]
        %v382 = vld [vmem:[%s2 + $0x84] sm:$0xf]
        %v383 = vld [vmem:[%s2 + $0x88] sm:$0xf]
        %v384 = vld [vmem:[%s2 + $0x8c] sm:$0xf]
        %v385 = vld [vmem:[%s2 + $0x90] sm:$0xf]
        %v386 = vld [vmem:[%s2 + $0x94] sm:$0xf]
        %v387 = vld [vmem:[%s2 + $0x98] sm:$0xf]
        %v388 = vld [vmem:[%s2 + $0x9c] sm:$0xf]
        %v389 = vld [vmem:[%s2 + $0xa0] sm:$0xf]
        %v390 = vld [vmem:[%s2 + $0xa4] sm:$0xf]
        %v391 = vld [vmem:[%s2 + $0xa8] sm:$0xf]
        %v392 = vld [vmem:[%s2 + $0xac] sm:$0xf]
        %v393 = vld [vmem:[%s2 + $0xb0] sm:$0xf]
        %v394 = vld [vmem:[%s2 + $0xb4] sm:$0xf]
        %v395 = vld [vmem:[%s2 + $0xb8] sm:$0xf]
        %v396 = vld [vmem:[%s2 + $0xbc] sm:$0xf]
        %v397 = vld [vmem:[%s3] sm:$0x1]
        %v398 = vld [vmem:[%s3 + $0x1] sm:$0x1]
        %v399 = vld [vmem:[%s3 + $0x2] sm:$0x1]
        %v400 = vld [vmem:[%s3 + $0x3] sm:$0x1]
        %v401 = vld [vmem:[%s3 + $0x4] sm:$0x1]
        %v402 = vld [vmem:[%s3 + $0x5] sm:$0x1]
        %v403 = vld [vmem:[%s3 + $0x6] sm:$0x1]
        %v404 = vld [vmem:[%s3 + $0x7] sm:$0x1]
        %v405 = vld [vmem:[%s3 + $0x8] sm:$0x1]
        %v406 = vld [vmem:[%s3 + $0x9] sm:$0x1]
        %v407 = vld [vmem:[%s3 + $0xa] sm:$0x1]
        %v408 = vld [vmem:[%s3 + $0xb] sm:$0x1]
        %v421 = vlaneseq
        %v422 = vshrl.u32 %v421, 7
        %v423 = vsub.s32 0, %v422
        %v424 = vrot.slane %v397, %v423
        %v425 = vlaneseq
        %v426 = vshrl.u32 %v425, 7
        %v427 = vsub.s32 0, %v426
        %v428 = vrot.slane %v398, %v427
        %v429 = vlaneseq
        %v430 = vshrl.u32 %v429, 7
        %v431 = vsub.s32 0, %v430
        %v432 = vrot.slane %v399, %v431
        %v433 = vlaneseq
        %v434 = vshrl.u32 %v433, 7
        %v435 = vsub.s32 0, %v434
        %v436 = vrot.slane %v400, %v435
        %v437 = vlaneseq
        %v438 = vshrl.u32 %v437, 7
        %v439 = vsub.s32 0, %v438
        %v440 = vrot.slane %v401, %v439
        %v441 = vlaneseq
        %v442 = vshrl.u32 %v441, 7
        %v443 = vsub.s32 0, %v442
        %v444 = vrot.slane %v402, %v443
        %v445 = vlaneseq
        %v446 = vshrl.u32 %v445, 7
        %v447 = vsub.s32 0, %v446
        %v448 = vrot.slane %v403, %v447
        %v449 = vlaneseq
        %v450 = vshrl.u32 %v449, 7
        %v451 = vsub.s32 0, %v450
        %v452 = vrot.slane %v404, %v451
        %v453 = vlaneseq
        %v454 = vshrl.u32 %v453, 7
        %v455 = vsub.s32 0, %v454
        %v456 = vrot.slane %v405, %v455
        %v457 = vlaneseq
        %v458 = vshrl.u32 %v457, 7
        %v459 = vsub.s32 0, %v458
        %v460 = vrot.slane %v406, %v459
        %v461 = vlaneseq
        %v462 = vshrl.u32 %v461, 7
        %v463 = vsub.s32 0, %v462
        %v464 = vrot.slane %v407, %v463
        %v465 = vlaneseq
        %v466 = vshrl.u32 %v465, 7
        %v467 = vsub.s32 0, %v466
        %v468 = vrot.slane %v408, %v467
        %v485 = vunpack.c.l.b16 %v349
        %v486 = vunpack.c.l.b16 %v350
        %v487 = vunpack.c.l.b16 %v351
        %v488 = vunpack.c.l.b16 %v352
        %v489 = vpack.c.b16 %v486, %v485
        %v490 = vpack.c.b16 %v488, %v487
        %vm493 = vcmask 261120
        %v495 = vsel %vm493, %v348, 0
        %497 = vmatprep.subr.bf16.mxu0 0
        %498 = vmatpush1.bf16.msra.mxu0 %v489
        %499 = vmatprep.subr.bf16.mxu0 0
        %500 = vmatpush1.bf16.msra.mxu0 %v490
        %501 = vmatprep.subr.bf16.mxu0 0
        %502 = vmatpush1.bf16.msra.mxu0 0
        %503 = vmatprep.subr.bf16.mxu0 0
        %504 = vmatpush1.bf16.msra.mxu0 0
        %505 = vmatprep.subr.bf16.mxu0 0
        %506 = vmatpush1.bf16.msra.mxu0 0
        %507 = vmatprep.subr.bf16.mxu0 0
        %508 = vmatpush1.bf16.msra.mxu0 0
        %509 = vmatprep.subr.bf16.mxu0 0
        %510 = vmatpush1.bf16.msra.mxu0 0
        %511 = vmatprep.subr.bf16.mxu0 0
        %512 = vmatpush1.bf16.msra.mxu0 0
        %513 = vmatprep.subr.bf16.mxu0 0
        %514 = vmatpush1.bf16.msra.mxu0 0
        %515 = vmatprep.subr.bf16.mxu0 0
        %516 = vmatpush1.bf16.msra.mxu0 0
        %517 = vmatprep.subr.bf16.mxu0 0
        %518 = vmatpush1.bf16.msra.mxu0 0
        %519 = vmatprep.subr.bf16.mxu0 0
        %520 = vmatpush1.bf16.msra.mxu0 0
        %521 = vmatprep.subr.bf16.mxu0 0
        %522 = vmatpush1.bf16.msra.mxu0 0
        %523 = vmatprep.subr.bf16.mxu0 0
        %524 = vmatpush1.bf16.msra.mxu0 0
        %525 = vmatprep.subr.bf16.mxu0 0
        %526 = vmatpush1.bf16.msra.mxu0 0
        %527 = vmatprep.subr.bf16.mxu0 0
        %528 = vmatpush1.bf16.msra.mxu0 0
        %529 = vmatprep.mubr.bf16.mxu0 0
        %530 = vmatmul.mubr.bf16.gmra.mrb[0].mxu0 %v495
        %v531 = vpop.f32.mrb[0].mxu0
        %v532 = vadd.f32 %v424, %v531
        %v533 = vpop.f32.mrb[0].mxu0
        %v534 = vpop.f32.mrb[0].mxu0
        %v535 = vpop.f32.mrb[0].mxu0
        %536 = vdwg.mxu0
        %v541 = vunpack.c.l.b16 %v353
        %v542 = vunpack.c.l.b16 %v354
        %v543 = vunpack.c.l.b16 %v355
        %v544 = vunpack.c.l.b16 %v356
        %v545 = vpack.c.b16 %v542, %v541
        %v546 = vpack.c.b16 %v544, %v543
        %549 = vmatprep.subr.bf16.mxu0 0
        %550 = vmatpush1.bf16.msra.mxu0 %v545
        %551 = vmatprep.subr.bf16.mxu0 0
        %552 = vmatpush1.bf16.msra.mxu0 %v546
        %553 = vmatprep.subr.bf16.mxu0 0
        %554 = vmatpush1.bf16.msra.mxu0 0
        %555 = vmatprep.subr.bf16.mxu0 0
        %556 = vmatpush1.bf16.msra.mxu0 0
        %557 = vmatprep.subr.bf16.mxu0 0
        %558 = vmatpush1.bf16.msra.mxu0 0
        %559 = vmatprep.subr.bf16.mxu0 0
        %560 = vmatpush1.bf16.msra.mxu0 0
        %561 = vmatprep.subr.bf16.mxu0 0
        %562 = vmatpush1.bf16.msra.mxu0 0
        %563 = vmatprep.subr.bf16.mxu0 0
        %564 = vmatpush1.bf16.msra.mxu0 0
        %565 = vmatprep.subr.bf16.mxu0 0
        %566 = vmatpush1.bf16.msra.mxu0 0
        %567 = vmatprep.subr.bf16.mxu0 0
        %568 = vmatpush1.bf16.msra.mxu0 0
        %569 = vmatprep.subr.bf16.mxu0 0
        %570 = vmatpush1.bf16.msra.mxu0 0
        %571 = vmatprep.subr.bf16.mxu0 0
        %572 = vmatpush1.bf16.msra.mxu0 0
        %573 = vmatprep.subr.bf16.mxu0 0
        %574 = vmatpush1.bf16.msra.mxu0 0
        %575 = vmatprep.subr.bf16.mxu0 0
        %576 = vmatpush1.bf16.msra.mxu0 0
        %577 = vmatprep.subr.bf16.mxu0 0
        %578 = vmatpush1.bf16.msra.mxu0 0
        %579 = vmatprep.subr.bf16.mxu0 0
        %580 = vmatpush1.bf16.msra.mxu0 0
        %581 = vmatprep.mubr.bf16.mxu0 0
        %582 = vmatmul.mubr.bf16.gmra.mrb[0].mxu0 %v495
        %v583 = vpop.f32.mrb[0].mxu0
        %v584 = vadd.f32 %v428, %v583
        %v585 = vpop.f32.mrb[0].mxu0
        %v586 = vpop.f32.mrb[0].mxu0
        %v587 = vpop.f32.mrb[0].mxu0
        %588 = vdwg.mxu0
        %v593 = vunpack.c.l.b16 %v357
        %v594 = vunpack.c.l.b16 %v358
        %v595 = vunpack.c.l.b16 %v359
        %v596 = vunpack.c.l.b16 %v360
        %v597 = vpack.c.b16 %v594, %v593
        %v598 = vpack.c.b16 %v596, %v595
        %601 = vmatprep.subr.bf16.mxu0 0
        %602 = vmatpush1.bf16.msra.mxu0 %v597
        %603 = vmatprep.subr.bf16.mxu0 0
        %604 = vmatpush1.bf16.msra.mxu0 %v598
        %605 = vmatprep.subr.bf16.mxu0 0
        %606 = vmatpush1.bf16.msra.mxu0 0
        %607 = vmatprep.subr.bf16.mxu0 0
        %608 = vmatpush1.bf16.msra.mxu0 0
        %609 = vmatprep.subr.bf16.mxu0 0
        %610 = vmatpush1.bf16.msra.mxu0 0
        %611 = vmatprep.subr.bf16.mxu0 0
        %612 = vmatpush1.bf16.msra.mxu0 0
        %613 = vmatprep.subr.bf16.mxu0 0
        %614 = vmatpush1.bf16.msra.mxu0 0
        %615 = vmatprep.subr.bf16.mxu0 0
        %616 = vmatpush1.bf16.msra.mxu0 0
        %617 = vmatprep.subr.bf16.mxu0 0
        %618 = vmatpush1.bf16.msra.mxu0 0
        %619 = vmatprep.subr.bf16.mxu0 0
        %620 = vmatpush1.bf16.msra.mxu0 0
        %621 = vmatprep.subr.bf16.mxu0 0
        %622 = vmatpush1.bf16.msra.mxu0 0
        %623 = vmatprep.subr.bf16.mxu0 0
        %624 = vmatpush1.bf16.msra.mxu0 0
        %625 = vmatprep.subr.bf16.mxu0 0
        %626 = vmatpush1.bf16.msra.mxu0 0
        %627 = vmatprep.subr.bf16.mxu0 0
        %628 = vmatpush1.bf16.msra.mxu0 0
        %629 = vmatprep.subr.bf16.mxu0 0
        %630 = vmatpush1.bf16.msra.mxu0 0
        %631 = vmatprep.subr.bf16.mxu0 0
        %632 = vmatpush1.bf16.msra.mxu0 0
        %633 = vmatprep.mubr.bf16.mxu0 0
        %634 = vmatmul.mubr.bf16.gmra.mrb[0].mxu0 %v495
        %v635 = vpop.f32.mrb[0].mxu0
        %v636 = vadd.f32 %v432, %v635
        %v637 = vpop.f32.mrb[0].mxu0
        %v638 = vpop.f32.mrb[0].mxu0
        %v639 = vpop.f32.mrb[0].mxu0
        %640 = vdwg.mxu0
        %v645 = vunpack.c.l.b16 %v361
        %v646 = vunpack.c.l.b16 %v362
        %v647 = vunpack.c.l.b16 %v363
        %v648 = vunpack.c.l.b16 %v364
        %v649 = vpack.c.b16 %v646, %v645
        %v650 = vpack.c.b16 %v648, %v647
        %653 = vmatprep.subr.bf16.mxu0 0
        %654 = vmatpush1.bf16.msra.mxu0 %v649
        %655 = vmatprep.subr.bf16.mxu0 0
        %656 = vmatpush1.bf16.msra.mxu0 %v650
        %657 = vmatprep.subr.bf16.mxu0 0
        %658 = vmatpush1.bf16.msra.mxu0 0
        %659 = vmatprep.subr.bf16.mxu0 0
        %660 = vmatpush1.bf16.msra.mxu0 0
        %661 = vmatprep.subr.bf16.mxu0 0
        %662 = vmatpush1.bf16.msra.mxu0 0
        %663 = vmatprep.subr.bf16.mxu0 0
        %664 = vmatpush1.bf16.msra.mxu0 0
        %665 = vmatprep.subr.bf16.mxu0 0
        %666 = vmatpush1.bf16.msra.mxu0 0
        %667 = vmatprep.subr.bf16.mxu0 0
        %668 = vmatpush1.bf16.msra.mxu0 0
        %669 = vmatprep.subr.bf16.mxu0 0
        %670 = vmatpush1.bf16.msra.mxu0 0
        %671 = vmatprep.subr.bf16.mxu0 0
        %672 = vmatpush1.bf16.msra.mxu0 0
        %673 = vmatprep.subr.bf16.mxu0 0
        %674 = vmatpush1.bf16.msra.mxu0 0
        %675 = vmatprep.subr.bf16.mxu0 0
        %676 = vmatpush1.bf16.msra.mxu0 0
        %677 = vmatprep.subr.bf16.mxu0 0
        %678 = vmatpush1.bf16.msra.mxu0 0
        %679 = vmatprep.subr.bf16.mxu0 0
        %680 = vmatpush1.bf16.msra.mxu0 0
        %681 = vmatprep.subr.bf16.mxu0 0
        %682 = vmatpush1.bf16.msra.mxu0 0
        %683 = vmatprep.subr.bf16.mxu0 0
        %684 = vmatpush1.bf16.msra.mxu0 0
        %685 = vmatprep.mubr.bf16.mxu0 0
        %686 = vmatmul.mubr.bf16.gmra.mrb[0].mxu0 %v495
        %v687 = vpop.f32.mrb[0].mxu0
        %v688 = vadd.f32 %v436, %v687
        %v689 = vpop.f32.mrb[0].mxu0
        %v690 = vpop.f32.mrb[0].mxu0
        %v691 = vpop.f32.mrb[0].mxu0
        %692 = vdwg.mxu0
        %v697 = vunpack.c.l.b16 %v365
        %v698 = vunpack.c.l.b16 %v366
        %v699 = vunpack.c.l.b16 %v367
        %v700 = vunpack.c.l.b16 %v368
        %v701 = vpack.c.b16 %v698, %v697
        %v702 = vpack.c.b16 %v700, %v699
        %705 = vmatprep.subr.bf16.mxu0 0
        %706 = vmatpush1.bf16.msra.mxu0 %v701
        %707 = vmatprep.subr.bf16.mxu0 0
        %708 = vmatpush1.bf16.msra.mxu0 %v702
        %709 = vmatprep.subr.bf16.mxu0 0
        %710 = vmatpush1.bf16.msra.mxu0 0
        %711 = vmatprep.subr.bf16.mxu0 0
        %712 = vmatpush1.bf16.msra.mxu0 0
        %713 = vmatprep.subr.bf16.mxu0 0
        %714 = vmatpush1.bf16.msra.mxu0 0
        %715 = vmatprep.subr.bf16.mxu0 0
        %716 = vmatpush1.bf16.msra.mxu0 0
        %717 = vmatprep.subr.bf16.mxu0 0
        %718 = vmatpush1.bf16.msra.mxu0 0
        %719 = vmatprep.subr.bf16.mxu0 0
        %720 = vmatpush1.bf16.msra.mxu0 0
        %721 = vmatprep.subr.bf16.mxu0 0
        %722 = vmatpush1.bf16.msra.mxu0 0
        %723 = vmatprep.subr.bf16.mxu0 0
        %724 = vmatpush1.bf16.msra.mxu0 0
        %725 = vmatprep.subr.bf16.mxu0 0
        %726 = vmatpush1.bf16.msra.mxu0 0
        %727 = vmatprep.subr.bf16.mxu0 0
        %728 = vmatpush1.bf16.msra.mxu0 0
        %729 = vmatprep.subr.bf16.mxu0 0
        %730 = vmatpush1.bf16.msra.mxu0 0
        %731 = vmatprep.subr.bf16.mxu0 0
        %732 = vmatpush1.bf16.msra.mxu0 0
        %733 = vmatprep.subr.bf16.mxu0 0
        %734 = vmatpush1.bf16.msra.mxu0 0
        %735 = vmatprep.subr.bf16.mxu0 0
        %736 = vmatpush1.bf16.msra.mxu0 0
        %737 = vmatprep.mubr.bf16.mxu0 0
        %738 = vmatmul.mubr.bf16.gmra.mrb[0].mxu0 %v495
        %v739 = vpop.f32.mrb[0].mxu0
        %v740 = vadd.f32 %v440, %v739
        %v741 = vpop.f32.mrb[0].mxu0
        %v742 = vpop.f32.mrb[0].mxu0
        %v743 = vpop.f32.mrb[0].mxu0
        %744 = vdwg.mxu0
        %v749 = vunpack.c.l.b16 %v369
        %v750 = vunpack.c.l.b16 %v370
        %v751 = vunpack.c.l.b16 %v371
        %v752 = vunpack.c.l.b16 %v372
        %v753 = vpack.c.b16 %v750, %v749
        %v754 = vpack.c.b16 %v752, %v751
        %757 = vmatprep.subr.bf16.mxu0 0
        %758 = vmatpush1.bf16.msra.mxu0 %v753
        %759 = vmatprep.subr.bf16.mxu0 0
        %760 = vmatpush1.bf16.msra.mxu0 %v754
        %761 = vmatprep.subr.bf16.mxu0 0
        %762 = vmatpush1.bf16.msra.mxu0 0
        %763 = vmatprep.subr.bf16.mxu0 0
        %764 = vmatpush1.bf16.msra.mxu0 0
        %765 = vmatprep.subr.bf16.mxu0 0
        %766 = vmatpush1.bf16.msra.mxu0 0
        %767 = vmatprep.subr.bf16.mxu0 0
        %768 = vmatpush1.bf16.msra.mxu0 0
        %769 = vmatprep.subr.bf16.mxu0 0
        %770 = vmatpush1.bf16.msra.mxu0 0
        %771 = vmatprep.subr.bf16.mxu0 0
        %772 = vmatpush1.bf16.msra.mxu0 0
        %773 = vmatprep.subr.bf16.mxu0 0
        %774 = vmatpush1.bf16.msra.mxu0 0
        %775 = vmatprep.subr.bf16.mxu0 0
        %776 = vmatpush1.bf16.msra.mxu0 0
        %777 = vmatprep.subr.bf16.mxu0 0
        %778 = vmatpush1.bf16.msra.mxu0 0
        %779 = vmatprep.subr.bf16.mxu0 0
        %780 = vmatpush1.bf16.msra.mxu0 0
        %781 = vmatprep.subr.bf16.mxu0 0
        %782 = vmatpush1.bf16.msra.mxu0 0
        %783 = vmatprep.subr.bf16.mxu0 0
        %784 = vmatpush1.bf16.msra.mxu0 0
        %785 = vmatprep.subr.bf16.mxu0 0
        %786 = vmatpush1.bf16.msra.mxu0 0
        %787 = vmatprep.subr.bf16.mxu0 0
        %788 = vmatpush1.bf16.msra.mxu0 0
        %789 = vmatprep.mubr.bf16.mxu0 0
        %790 = vmatmul.mubr.bf16.gmra.mrb[0].mxu0 %v495
        %v791 = vpop.f32.mrb[0].mxu0
        %v792 = vadd.f32 %v444, %v791
        %v793 = vpop.f32.mrb[0].mxu0
        %v794 = vpop.f32.mrb[0].mxu0
        %v795 = vpop.f32.mrb[0].mxu0
        %796 = vdwg.mxu0
        %v801 = vunpack.c.l.b16 %v373
        %v802 = vunpack.c.l.b16 %v374
        %v803 = vunpack.c.l.b16 %v375
        %v804 = vunpack.c.l.b16 %v376
        %v805 = vpack.c.b16 %v802, %v801
        %v806 = vpack.c.b16 %v804, %v803
        %809 = vmatprep.subr.bf16.mxu0 0
        %810 = vmatpush1.bf16.msra.mxu0 %v805
        %811 = vmatprep.subr.bf16.mxu0 0
        %812 = vmatpush1.bf16.msra.mxu0 %v806
        %813 = vmatprep.subr.bf16.mxu0 0
        %814 = vmatpush1.bf16.msra.mxu0 0
        %815 = vmatprep.subr.bf16.mxu0 0
        %816 = vmatpush1.bf16.msra.mxu0 0
        %817 = vmatprep.subr.bf16.mxu0 0
        %818 = vmatpush1.bf16.msra.mxu0 0
        %819 = vmatprep.subr.bf16.mxu0 0
        %820 = vmatpush1.bf16.msra.mxu0 0
        %821 = vmatprep.subr.bf16.mxu0 0
        %822 = vmatpush1.bf16.msra.mxu0 0
        %823 = vmatprep.subr.bf16.mxu0 0
        %824 = vmatpush1.bf16.msra.mxu0 0
        %825 = vmatprep.subr.bf16.mxu0 0
        %826 = vmatpush1.bf16.msra.mxu0 0
        %827 = vmatprep.subr.bf16.mxu0 0
        %828 = vmatpush1.bf16.msra.mxu0 0
        %829 = vmatprep.subr.bf16.mxu0 0
        %830 = vmatpush1.bf16.msra.mxu0 0
        %831 = vmatprep.subr.bf16.mxu0 0
        %832 = vmatpush1.bf16.msra.mxu0 0
        %833 = vmatprep.subr.bf16.mxu0 0
        %834 = vmatpush1.bf16.msra.mxu0 0
        %835 = vmatprep.subr.bf16.mxu0 0
        %836 = vmatpush1.bf16.msra.mxu0 0
        %837 = vmatprep.subr.bf16.mxu0 0
        %838 = vmatpush1.bf16.msra.mxu0 0
        %839 = vmatprep.subr.bf16.mxu0 0
        %840 = vmatpush1.bf16.msra.mxu0 0
        %841 = vmatprep.mubr.bf16.mxu0 0
        %842 = vmatmul.mubr.bf16.gmra.mrb[0].mxu0 %v495
        %v843 = vpop.f32.mrb[0].mxu0
        %v844 = vadd.f32 %v448, %v843
        %v845 = vpop.f32.mrb[0].mxu0
        %v846 = vpop.f32.mrb[0].mxu0
        %v847 = vpop.f32.mrb[0].mxu0
        %848 = vdwg.mxu0
        %v853 = vunpack.c.l.b16 %v377
        %v854 = vunpack.c.l.b16 %v378
        %v855 = vunpack.c.l.b16 %v379
        %v856 = vunpack.c.l.b16 %v380
        %v857 = vpack.c.b16 %v854, %v853
        %v858 = vpack.c.b16 %v856, %v855
        %861 = vmatprep.subr.bf16.mxu0 0
        %862 = vmatpush1.bf16.msra.mxu0 %v857
        %863 = vmatprep.subr.bf16.mxu0 0
        %864 = vmatpush1.bf16.msra.mxu0 %v858
        %865 = vmatprep.subr.bf16.mxu0 0
        %866 = vmatpush1.bf16.msra.mxu0 0
        %867 = vmatprep.subr.bf16.mxu0 0
        %868 = vmatpush1.bf16.msra.mxu0 0
        %869 = vmatprep.subr.bf16.mxu0 0
        %870 = vmatpush1.bf16.msra.mxu0 0
        %871 = vmatprep.subr.bf16.mxu0 0
        %872 = vmatpush1.bf16.msra.mxu0 0
        %873 = vmatprep.subr.bf16.mxu0 0
        %874 = vmatpush1.bf16.msra.mxu0 0
        %875 = vmatprep.subr.bf16.mxu0 0
        %876 = vmatpush1.bf16.msra.mxu0 0
        %877 = vmatprep.subr.bf16.mxu0 0
        %878 = vmatpush1.bf16.msra.mxu0 0
        %879 = vmatprep.subr.bf16.mxu0 0
        %880 = vmatpush1.bf16.msra.mxu0 0
        %881 = vmatprep.subr.bf16.mxu0 0
        %882 = vmatpush1.bf16.msra.mxu0 0
        %883 = vmatprep.subr.bf16.mxu0 0
        %884 = vmatpush1.bf16.msra.mxu0 0
        %885 = vmatprep.subr.bf16.mxu0 0
        %886 = vmatpush1.bf16.msra.mxu0 0
        %887 = vmatprep.subr.bf16.mxu0 0
        %888 = vmatpush1.bf16.msra.mxu0 0
        %889 = vmatprep.subr.bf16.mxu0 0
        %890 = vmatpush1.bf16.msra.mxu0 0
        %891 = vmatprep.subr.bf16.mxu0 0
        %892 = vmatpush1.bf16.msra.mxu0 0
        %893 = vmatprep.mubr.bf16.mxu0 0
        %894 = vmatmul.mubr.bf16.gmra.mrb[0].mxu0 %v495
        %v895 = vpop.f32.mrb[0].mxu0
        %v896 = vadd.f32 %v452, %v895
        %v897 = vpop.f32.mrb[0].mxu0
        %v898 = vpop.f32.mrb[0].mxu0
        %v899 = vpop.f32.mrb[0].mxu0
        %900 = vdwg.mxu0
        %v905 = vunpack.c.l.b16 %v381
        %v906 = vunpack.c.l.b16 %v382
        %v907 = vunpack.c.l.b16 %v383
        %v908 = vunpack.c.l.b16 %v384
        %v909 = vpack.c.b16 %v906, %v905
        %v910 = vpack.c.b16 %v908, %v907
        %913 = vmatprep.subr.bf16.mxu0 0
        %914 = vmatpush1.bf16.msra.mxu0 %v909
        %915 = vmatprep.subr.bf16.mxu0 0
        %916 = vmatpush1.bf16.msra.mxu0 %v910
        %917 = vmatprep.subr.bf16.mxu0 0
        %918 = vmatpush1.bf16.msra.mxu0 0
        %919 = vmatprep.subr.bf16.mxu0 0
        %920 = vmatpush1.bf16.msra.mxu0 0
        %921 = vmatprep.subr.bf16.mxu0 0
        %922 = vmatpush1.bf16.msra.mxu0 0
        %923 = vmatprep.subr.bf16.mxu0 0
        %924 = vmatpush1.bf16.msra.mxu0 0
        %925 = vmatprep.subr.bf16.mxu0 0
        %926 = vmatpush1.bf16.msra.mxu0 0
        %927 = vmatprep.subr.bf16.mxu0 0
        %928 = vmatpush1.bf16.msra.mxu0 0
        %929 = vmatprep.subr.bf16.mxu0 0
        %930 = vmatpush1.bf16.msra.mxu0 0
        %931 = vmatprep.subr.bf16.mxu0 0
        %932 = vmatpush1.bf16.msra.mxu0 0
        %933 = vmatprep.subr.bf16.mxu0 0
        %934 = vmatpush1.bf16.msra.mxu0 0
        %935 = vmatprep.subr.bf16.mxu0 0
        %936 = vmatpush1.bf16.msra.mxu0 0
        %937 = vmatprep.subr.bf16.mxu0 0
        %938 = vmatpush1.bf16.msra.mxu0 0
        %939 = vmatprep.subr.bf16.mxu0 0
        %940 = vmatpush1.bf16.msra.mxu0 0
        %941 = vmatprep.subr.bf16.mxu0 0
        %942 = vmatpush1.bf16.msra.mxu0 0
        %943 = vmatprep.subr.bf16.mxu0 0
        %944 = vmatpush1.bf16.msra.mxu0 0
        %945 = vmatprep.mubr.bf16.mxu0 0
        %946 = vmatmul.mubr.bf16.gmra.mrb[0].mxu0 %v495
        %v947 = vpop.f32.mrb[0].mxu0
        %v948 = vadd.f32 %v456, %v947
        %v949 = vpop.f32.mrb[0].mxu0
        %v950 = vpop.f32.mrb[0].mxu0
        %v951 = vpop.f32.mrb[0].mxu0
        %952 = vdwg.mxu0
        %v957 = vunpack.c.l.b16 %v385
        %v958 = vunpack.c.l.b16 %v386
        %v959 = vunpack.c.l.b16 %v387
        %v960 = vunpack.c.l.b16 %v388
        %v961 = vpack.c.b16 %v958, %v957
        %v962 = vpack.c.b16 %v960, %v959
        %965 = vmatprep.subr.bf16.mxu0 0
        %966 = vmatpush1.bf16.msra.mxu0 %v961
        %967 = vmatprep.subr.bf16.mxu0 0
        %968 = vmatpush1.bf16.msra.mxu0 %v962
        %969 = vmatprep.subr.bf16.mxu0 0
        %970 = vmatpush1.bf16.msra.mxu0 0
        %971 = vmatprep.subr.bf16.mxu0 0
        %972 = vmatpush1.bf16.msra.mxu0 0
        %973 = vmatprep.subr.bf16.mxu0 0
        %974 = vmatpush1.bf16.msra.mxu0 0
        %975 = vmatprep.subr.bf16.mxu0 0
        %976 = vmatpush1.bf16.msra.mxu0 0
        %977 = vmatprep.subr.bf16.mxu0 0
        %978 = vmatpush1.bf16.msra.mxu0 0
        %979 = vmatprep.subr.bf16.mxu0 0
        %980 = vmatpush1.bf16.msra.mxu0 0
        %981 = vmatprep.subr.bf16.mxu0 0
        %982 = vmatpush1.bf16.msra.mxu0 0
        %983 = vmatprep.subr.bf16.mxu0 0
        %984 = vmatpush1.bf16.msra.mxu0 0
        %985 = vmatprep.subr.bf16.mxu0 0
        %986 = vmatpush1.bf16.msra.mxu0 0
        %987 = vmatprep.subr.bf16.mxu0 0
        %988 = vmatpush1.bf16.msra.mxu0 0
        %989 = vmatprep.subr.bf16.mxu0 0
        %990 = vmatpush1.bf16.msra.mxu0 0
        %991 = vmatprep.subr.bf16.mxu0 0
        %992 = vmatpush1.bf16.msra.mxu0 0
        %993 = vmatprep.subr.bf16.mxu0 0
        %994 = vmatpush1.bf16.msra.mxu0 0
        %995 = vmatprep.subr.bf16.mxu0 0
        %996 = vmatpush1.bf16.msra.mxu0 0
        %997 = vmatprep.mubr.bf16.mxu0 0
        %998 = vmatmul.mubr.bf16.gmra.mrb[0].mxu0 %v495
        %v999 = vpop.f32.mrb[0].mxu0
        %v1000 = vadd.f32 %v460, %v999
        %v1001 = vpop.f32.mrb[0].mxu0
        %v1002 = vpop.f32.mrb[0].mxu0
        %v1003 = vpop.f32.mrb[0].mxu0
        %1004 = vdwg.mxu0
        %v1009 = vunpack.c.l.b16 %v389
        %v1010 = vunpack.c.l.b16 %v390
        %v1011 = vunpack.c.l.b16 %v391
        %v1012 = vunpack.c.l.b16 %v392
        %v1013 = vpack.c.b16 %v1010, %v1009
        %v1014 = vpack.c.b16 %v1012, %v1011
        %1017 = vmatprep.subr.bf16.mxu0 0
        %1018 = vmatpush1.bf16.msra.mxu0 %v1013
        %1019 = vmatprep.subr.bf16.mxu0 0
        %1020 = vmatpush1.bf16.msra.mxu0 %v1014
        %1021 = vmatprep.subr.bf16.mxu0 0
        %1022 = vmatpush1.bf16.msra.mxu0 0
        %1023 = vmatprep.subr.bf16.mxu0 0
        %1024 = vmatpush1.bf16.msra.mxu0 0
        %1025 = vmatprep.subr.bf16.mxu0 0
        %1026 = vmatpush1.bf16.msra.mxu0 0
        %1027 = vmatprep.subr.bf16.mxu0 0
        %1028 = vmatpush1.bf16.msra.mxu0 0
        %1029 = vmatprep.subr.bf16.mxu0 0
        %1030 = vmatpush1.bf16.msra.mxu0 0
        %1031 = vmatprep.subr.bf16.mxu0 0
        %1032 = vmatpush1.bf16.msra.mxu0 0
        %1033 = vmatprep.subr.bf16.mxu0 0
        %1034 = vmatpush1.bf16.msra.mxu0 0
        %1035 = vmatprep.subr.bf16.mxu0 0
        %1036 = vmatpush1.bf16.msra.mxu0 0
        %1037 = vmatprep.subr.bf16.mxu0 0
        %1038 = vmatpush1.bf16.msra.mxu0 0
        %1039 = vmatprep.subr.bf16.mxu0 0
        %1040 = vmatpush1.bf16.msra.mxu0 0
        %1041 = vmatprep.subr.bf16.mxu0 0
        %1042 = vmatpush1.bf16.msra.mxu0 0
        %1043 = vmatprep.subr.bf16.mxu0 0
        %1044 = vmatpush1.bf16.msra.mxu0 0
        %1045 = vmatprep.subr.bf16.mxu0 0
        %1046 = vmatpush1.bf16.msra.mxu0 0
        %1047 = vmatprep.subr.bf16.mxu0 0
        %1048 = vmatpush1.bf16.msra.mxu0 0
        %1049 = vmatprep.mubr.bf16.mxu0 0
        %1050 = vmatmul.mubr.bf16.gmra.mrb[0].mxu0 %v495
        %v1051 = vpop.f32.mrb[0].mxu0
        %v1052 = vadd.f32 %v464, %v1051
        %v1053 = vpop.f32.mrb[0].mxu0
        %v1054 = vpop.f32.mrb[0].mxu0
        %v1055 = vpop.f32.mrb[0].mxu0
        %1056 = vdwg.mxu0
        %v1061 = vunpack.c.l.b16 %v393
        %v1062 = vunpack.c.l.b16 %v394
        %v1063 = vunpack.c.l.b16 %v395
        %v1064 = vunpack.c.l.b16 %v396
        %v1065 = vpack.c.b16 %v1062, %v1061
        %v1066 = vpack.c.b16 %v1064, %v1063
        %1069 = vmatprep.subr.bf16.mxu0 0
        %1070 = vmatpush1.bf16.msra.mxu0 %v1065
        %1071 = vmatprep.subr.bf16.mxu0 0
        %1072 = vmatpush1.bf16.msra.mxu0 %v1066
        %1073 = vmatprep.subr.bf16.mxu0 0
        %1074 = vmatpush1.bf16.msra.mxu0 0
        %1075 = vmatprep.subr.bf16.mxu0 0
        %1076 = vmatpush1.bf16.msra.mxu0 0
        %1077 = vmatprep.subr.bf16.mxu0 0
        %1078 = vmatpush1.bf16.msra.mxu0 0
        %1079 = vmatprep.subr.bf16.mxu0 0
        %1080 = vmatpush1.bf16.msra.mxu0 0
        %1081 = vmatprep.subr.bf16.mxu0 0
        %1082 = vmatpush1.bf16.msra.mxu0 0
        %1083 = vmatprep.subr.bf16.mxu0 0
        %1084 = vmatpush1.bf16.msra.mxu0 0
        %1085 = vmatprep.subr.bf16.mxu0 0
        %1086 = vmatpush1.bf16.msra.mxu0 0
        %1087 = vmatprep.subr.bf16.mxu0 0
        %1088 = vmatpush1.bf16.msra.mxu0 0
        %1089 = vmatprep.subr.bf16.mxu0 0
        %1090 = vmatpush1.bf16.msra.mxu0 0
        %1091 = vmatprep.subr.bf16.mxu0 0
        %1092 = vmatpush1.bf16.msra.mxu0 0
        %1093 = vmatprep.subr.bf16.mxu0 0
        %1094 = vmatpush1.bf16.msra.mxu0 0
        %1095 = vmatprep.subr.bf16.mxu0 0
        %1096 = vmatpush1.bf16.msra.mxu0 0
        %1097 = vmatprep.subr.bf16.mxu0 0
        %1098 = vmatpush1.bf16.msra.mxu0 0
        %1099 = vmatprep.subr.bf16.mxu0 0
        %1100 = vmatpush1.bf16.msra.mxu0 0
        %1101 = vmatprep.mubr.bf16.mxu0 0
        %1102 = vmatmul.mubr.bf16.gmra.mrb[0].mxu0 %v495
        %v1103 = vpop.f32.mrb[0].mxu0
        %v1104 = vadd.f32 %v468, %v1103
        %v1105 = vpop.f32.mrb[0].mxu0
        %v1106 = vpop.f32.mrb[0].mxu0
        %v1107 = vpop.f32.mrb[0].mxu0
        %1108 = vdwg.mxu0
        %v1109 = vpack.c.bf16 %v532, %v532
        %v1110 = vpack.c.bf16 %v584, %v584
        %v1111 = vpack.c.bf16 %v636, %v636
        %v1112 = vpack.c.bf16 %v688, %v688
        %v1113 = vpack.c.bf16 %v740, %v740
        %v1114 = vpack.c.bf16 %v792, %v792
        %v1115 = vpack.c.bf16 %v844, %v844
        %v1116 = vpack.c.bf16 %v896, %v896
        %vm1117 = vcmask 64512
        %v1119 = vsel %vm1117, %v1109, 0
        %v1122 = vsel %vm1117, %v1113, 0
        %1124 = vmatprep.subr.bf16.mxu0 0
        %1125 = vmatpush1.bf16.xpose.msra.mxu0 %v1122
        %1126 = vmatprep.subr.bf16.mxu0 0
        %1127 = vmatpush1.bf16.xpose.msra.mxu0 0
        %1128 = vmatprep.subr.bf16.mxu0 0
        %1129 = vmatpush1.bf16.xpose.msra.mxu0 0
        %1130 = vmatprep.subr.bf16.mxu0 0
        %1131 = vmatpush1.bf16.xpose.msra.mxu0 0
        %1132 = vmatprep.subr.bf16.mxu0 0
        %1133 = vmatpush1.bf16.xpose.msra.mxu0 0
        %1134 = vmatprep.subr.bf16.mxu0 0
        %1135 = vmatpush1.bf16.xpose.msra.mxu0 0
        %1136 = vmatprep.subr.bf16.mxu0 0
        %1137 = vmatpush1.bf16.xpose.msra.mxu0 0
        %1138 = vmatprep.subr.bf16.mxu0 0
        %1139 = vmatpush1.bf16.xpose.msra.mxu0 0
        %1140 = vmatprep.subr.bf16.mxu0 0
        %1141 = vmatpush1.bf16.xpose.msra.mxu0 0
        %1142 = vmatprep.subr.bf16.mxu0 0
        %1143 = vmatpush1.bf16.xpose.msra.mxu0 0
        %1144 = vmatprep.subr.bf16.mxu0 0
        %1145 = vmatpush1.bf16.xpose.msra.mxu0 0
        %1146 = vmatprep.subr.bf16.mxu0 0
        %1147 = vmatpush1.bf16.xpose.msra.mxu0 0
        %1148 = vmatprep.subr.bf16.mxu0 0
        %1149 = vmatpush1.bf16.xpose.msra.mxu0 0
        %1150 = vmatprep.subr.bf16.mxu0 0
        %1151 = vmatpush1.bf16.xpose.msra.mxu0 0
        %1152 = vmatprep.subr.bf16.mxu0 0
        %1153 = vmatpush1.bf16.xpose.msra.mxu0 0
        %1154 = vmatprep.subr.bf16.mxu0 0
        %1155 = vmatpush1.bf16.xpose.msra.mxu0 0
        %1156 = vmatprep.mubr.bf16.mxu0 0
        %1157 = vmatmul.mubr.bf16.gmra.mrb[0].mxu0 %v1119
        %v1158 = vpop.f32.mrb[0].mxu0
        %v1159 = vadd.f32 0.0, %v1158
        %v1160 = vpop.f32.mrb[0].mxu0
        %v1161 = vpop.f32.mrb[0].mxu0
        %v1162 = vpop.f32.mrb[0].mxu0
        %1163 = vdwg.mxu0
        %v1165 = vsel %vm1117, %v1110, 0
        %v1168 = vsel %vm1117, %v1114, 0
        %1170 = vmatprep.subr.bf16.mxu0 0
        %1171 = vmatpush1.bf16.xpose.msra.mxu0 %v1168
        %1172 = vmatprep.subr.bf16.mxu0 0
        %1173 = vmatpush1.bf16.xpose.msra.mxu0 0
        %1174 = vmatprep.subr.bf16.mxu0 0
        %1175 = vmatpush1.bf16.xpose.msra.mxu0 0
        %1176 = vmatprep.subr.bf16.mxu0 0
        %1177 = vmatpush1.bf16.xpose.msra.mxu0 0
        %1178 = vmatprep.subr.bf16.mxu0 0
        %1179 = vmatpush1.bf16.xpose.msra.mxu0 0
        %1180 = vmatprep.subr.bf16.mxu0 0
        %1181 = vmatpush1.bf16.xpose.msra.mxu0 0
        %1182 = vmatprep.subr.bf16.mxu0 0
        %1183 = vmatpush1.bf16.xpose.msra.mxu0 0
        %1184 = vmatprep.subr.bf16.mxu0 0
        %1185 = vmatpush1.bf16.xpose.msra.mxu0 0
        %1186 = vmatprep.subr.bf16.mxu0 0
        %1187 = vmatpush1.bf16.xpose.msra.mxu0 0
        %1188 = vmatprep.subr.bf16.mxu0 0
        %1189 = vmatpush1.bf16.xpose.msra.mxu0 0
        %1190 = vmatprep.subr.bf16.mxu0 0
        %1191 = vmatpush1.bf16.xpose.msra.mxu0 0
        %1192 = vmatprep.subr.bf16.mxu0 0
        %1193 = vmatpush1.bf16.xpose.msra.mxu0 0
        %1194 = vmatprep.subr.bf16.mxu0 0
        %1195 = vmatpush1.bf16.xpose.msra.mxu0 0
        %1196 = vmatprep.subr.bf16.mxu0 0
        %1197 = vmatpush1.bf16.xpose.msra.mxu0 0
        %1198 = vmatprep.subr.bf16.mxu0 0
        %1199 = vmatpush1.bf16.xpose.msra.mxu0 0
        %1200 = vmatprep.subr.bf16.mxu0 0
        %1201 = vmatpush1.bf16.xpose.msra.mxu0 0
        %1202 = vmatprep.mubr.bf16.mxu0 0
        %1203 = vmatmul.mubr.bf16.gmra.mrb[0].mxu0 %v1165
        %v1204 = vpop.f32.mrb[0].mxu0
        %v1205 = vadd.f32 0.0, %v1204
        %v1206 = vpop.f32.mrb[0].mxu0
        %v1207 = vpop.f32.mrb[0].mxu0
        %v1208 = vpop.f32.mrb[0].mxu0
        %1209 = vdwg.mxu0
        %v1211 = vsel %vm1117, %v1111, 0
        %v1214 = vsel %vm1117, %v1115, 0
        %1216 = vmatprep.subr.bf16.mxu0 0
        %1217 = vmatpush1.bf16.xpose.msra.mxu0 %v1214
        %1218 = vmatprep.subr.bf16.mxu0 0
        %1219 = vmatpush1.bf16.xpose.msra.mxu0 0
        %1220 = vmatprep.subr.bf16.mxu0 0
        %1221 = vmatpush1.bf16.xpose.msra.mxu0 0
        %1222 = vmatprep.subr.bf16.mxu0 0
        %1223 = vmatpush1.bf16.xpose.msra.mxu0 0
        %1224 = vmatprep.subr.bf16.mxu0 0
        %1225 = vmatpush1.bf16.xpose.msra.mxu0 0
        %1226 = vmatprep.subr.bf16.mxu0 0
        %1227 = vmatpush1.bf16.xpose.msra.mxu0 0
        %1228 = vmatprep.subr.bf16.mxu0 0
        %1229 = vmatpush1.bf16.xpose.msra.mxu0 0
        %1230 = vmatprep.subr.bf16.mxu0 0
        %1231 = vmatpush1.bf16.xpose.msra.mxu0 0
        %1232 = vmatprep.subr.bf16.mxu0 0
        %1233 = vmatpush1.bf16.xpose.msra.mxu0 0
        %1234 = vmatprep.subr.bf16.mxu0 0
        %1235 = vmatpush1.bf16.xpose.msra.mxu0 0
        %1236 = vmatprep.subr.bf16.mxu0 0
        %1237 = vmatpush1.bf16.xpose.msra.mxu0 0
        %1238 = vmatprep.subr.bf16.mxu0 0
        %1239 = vmatpush1.bf16.xpose.msra.mxu0 0
        %1240 = vmatprep.subr.bf16.mxu0 0
        %1241 = vmatpush1.bf16.xpose.msra.mxu0 0
        %1242 = vmatprep.subr.bf16.mxu0 0
        %1243 = vmatpush1.bf16.xpose.msra.mxu0 0
        %1244 = vmatprep.subr.bf16.mxu0 0
        %1245 = vmatpush1.bf16.xpose.msra.mxu0 0
        %1246 = vmatprep.subr.bf16.mxu0 0
        %1247 = vmatpush1.bf16.xpose.msra.mxu0 0
        %1248 = vmatprep.mubr.bf16.mxu0 0
        %1249 = vmatmul.mubr.bf16.gmra.mrb[0].mxu0 %v1211
        %v1250 = vpop.f32.mrb[0].mxu0
        %v1251 = vadd.f32 0.0, %v1250
        %v1252 = vpop.f32.mrb[0].mxu0
        %v1253 = vpop.f32.mrb[0].mxu0
        %v1254 = vpop.f32.mrb[0].mxu0
        %1255 = vdwg.mxu0
        %v1257 = vsel %vm1117, %v1112, 0
        %v1260 = vsel %vm1117, %v1116, 0
        %1262 = vmatprep.subr.bf16.mxu0 0
        %1263 = vmatpush1.bf16.xpose.msra.mxu0 %v1260
        %1264 = vmatprep.subr.bf16.mxu0 0
        %1265 = vmatpush1.bf16.xpose.msra.mxu0 0
        %1266 = vmatprep.subr.bf16.mxu0 0
        %1267 = vmatpush1.bf16.xpose.msra.mxu0 0
        %1268 = vmatprep.subr.bf16.mxu0 0
        %1269 = vmatpush1.bf16.xpose.msra.mxu0 0
        %1270 = vmatprep.subr.bf16.mxu0 0
        %1271 = vmatpush1.bf16.xpose.msra.mxu0 0
        %1272 = vmatprep.subr.bf16.mxu0 0
        %1273 = vmatpush1.bf16.xpose.msra.mxu0 0
        %1274 = vmatprep.subr.bf16.mxu0 0
        %1275 = vmatpush1.bf16.xpose.msra.mxu0 0
        %1276 = vmatprep.subr.bf16.mxu0 0
        %1277 = vmatpush1.bf16.xpose.msra.mxu0 0
        %1278 = vmatprep.subr.bf16.mxu0 0
        %1279 = vmatpush1.bf16.xpose.msra.mxu0 0
        %1280 = vmatprep.subr.bf16.mxu0 0
        %1281 = vmatpush1.bf16.xpose.msra.mxu0 0
        %1282 = vmatprep.subr.bf16.mxu0 0
        %1283 = vmatpush1.bf16.xpose.msra.mxu0 0
        %1284 = vmatprep.subr.bf16.mxu0 0
        %1285 = vmatpush1.bf16.xpose.msra.mxu0 0
        %1286 = vmatprep.subr.bf16.mxu0 0
        %1287 = vmatpush1.bf16.xpose.msra.mxu0 0
        %1288 = vmatprep.subr.bf16.mxu0 0
        %1289 = vmatpush1.bf16.xpose.msra.mxu0 0
        %1290 = vmatprep.subr.bf16.mxu0 0
        %1291 = vmatpush1.bf16.xpose.msra.mxu0 0
        %1292 = vmatprep.subr.bf16.mxu0 0
        %1293 = vmatpush1.bf16.xpose.msra.mxu0 0
        %1294 = vmatprep.mubr.bf16.mxu0 0
        %1295 = vmatmul.mubr.bf16.gmra.mrb[0].mxu0 %v1257
        %v1296 = vpop.f32.mrb[0].mxu0
        %v1297 = vadd.f32 0.0, %v1296
        %v1298 = vpop.f32.mrb[0].mxu0
        %v1299 = vpop.f32.mrb[0].mxu0
        %v1300 = vpop.f32.mrb[0].mxu0
        %1301 = vdwg.mxu0
        %v1302 = vmul.f32 %v1159, 0.35355338
        %v1303 = vmul.f32 %v1205, 0.35355338
        %v1304 = vmul.f32 %v1251, 0.35355338
        %v1305 = vmul.f32 %v1297, 0.35355338
        %v1306 = vsel %vm1117, %v1302, -inf
        %1307 = vmax.xlane.f32.xlu0 %v1306
        %v1308 = vpop.xlane.xlu0 %1307
        %v1309 = vsel %vm1117, %v1303, -inf
        %1310 = vmax.xlane.f32.xlu0 %v1309
        %v1311 = vpop.xlane.xlu0 %1310
        %v1312 = vsel %vm1117, %v1304, -inf
        %1313 = vmax.xlane.f32.xlu0 %v1312
        %v1314 = vpop.xlane.xlu0 %1313
        %v1315 = vsel %vm1117, %v1305, -inf
        %1316 = vmax.xlane.f32.xlu0 %v1315
        %v1317 = vpop.xlane.xlu0 %1316
        %v1318 = vsub.f32 %v1302, %v1308
        %v1319 = vsub.f32 %v1303, %v1311
        %v1320 = vsub.f32 %v1304, %v1314
        %v1321 = vsub.f32 %v1305, %v1317
        %v1322 = vmul.f32 %v1318, 1.442695
        %v1323 = vpow.pop %v1322
        %v1324 = vmul.f32 %v1319, 1.442695
        %v1325 = vpow.pop %v1324
        %v1326 = vmul.f32 %v1320, 1.442695
        %v1327 = vpow.pop %v1326
        %v1328 = vmul.f32 %v1321, 1.442695
        %v1329 = vpow.pop %v1328
        %v1330 = vsel %vm1117, %v1323, 0.0
        %1331 = vadd.xlane.f32.xlu0 %v1330
        %v1332 = vpop.xlane.xlu0 %1331
        %v1333 = vsel %vm1117, %v1325, 0.0
        %1334 = vadd.xlane.f32.xlu0 %v1333
        %v1335 = vpop.xlane.xlu0 %1334
        %v1336 = vsel %vm1117, %v1327, 0.0
        %1337 = vadd.xlane.f32.xlu0 %v1336
        %v1338 = vpop.xlane.xlu0 %1337
        %v1339 = vsel %vm1117, %v1329, 0.0
        %1340 = vadd.xlane.f32.xlu0 %v1339
        %v1341 = vpop.xlane.xlu0 %1340
        %v1342 = vrcp.pop %v1332
        %v1343 = vrcp.pop %v1335
        %v1344 = vrcp.pop %v1338
        %v1345 = vrcp.pop %v1341
        %v1346 = vmul.f32 %v1323, %v1342
        %v1347 = vmul.f32 %v1325, %v1343
        %v1348 = vmul.f32 %v1327, %v1344
        %v1349 = vmul.f32 %v1329, %v1345
        %v1350 = vpack.c.bf16 %v1346, %v1346
        %v1351 = vpack.c.bf16 %v1347, %v1347
        %v1352 = vpack.c.bf16 %v1348, %v1348
        %v1353 = vpack.c.bf16 %v1349, %v1349
        %v1354 = vpack.c.bf16 %v948, %v948
        %v1355 = vpack.c.bf16 %v1000, %v1000
        %v1356 = vpack.c.bf16 %v1052, %v1052
        %v1357 = vpack.c.bf16 %v1104, %v1104
        %v1359 = vsel %vm1117, %v1350, 0
        %vm1361 = vcmask 1043456
        %v1363 = vsel %vm1361, %v1354, 0
        %1365 = vmatprep.subr.bf16.mxu0 0
        %1366 = vmatpush1.bf16.msra.mxu0 %v1363
        %1367 = vmatprep.subr.bf16.mxu0 0
        %1368 = vmatpush1.bf16.msra.mxu0 0
        %1369 = vmatprep.subr.bf16.mxu0 0
        %1370 = vmatpush1.bf16.msra.mxu0 0
        %1371 = vmatprep.subr.bf16.mxu0 0
        %1372 = vmatpush1.bf16.msra.mxu0 0
        %1373 = vmatprep.subr.bf16.mxu0 0
        %1374 = vmatpush1.bf16.msra.mxu0 0
        %1375 = vmatprep.subr.bf16.mxu0 0
        %1376 = vmatpush1.bf16.msra.mxu0 0
        %1377 = vmatprep.subr.bf16.mxu0 0
        %1378 = vmatpush1.bf16.msra.mxu0 0
        %1379 = vmatprep.subr.bf16.mxu0 0
        %1380 = vmatpush1.bf16.msra.mxu0 0
        %1381 = vmatprep.subr.bf16.mxu0 0
        %1382 = vmatpush1.bf16.msra.mxu0 0
        %1383 = vmatprep.subr.bf16.mxu0 0
        %1384 = vmatpush1.bf16.msra.mxu0 0
        %1385 = vmatprep.subr.bf16.mxu0 0
        %1386 = vmatpush1.bf16.msra.mxu0 0
        %1387 = vmatprep.subr.bf16.mxu0 0
        %1388 = vmatpush1.bf16.msra.mxu0 0
        %1389 = vmatprep.subr.bf16.mxu0 0
        %1390 = vmatpush1.bf16.msra.mxu0 0
        %1391 = vmatprep.subr.bf16.mxu0 0
        %1392 = vmatpush1.bf16.msra.mxu0 0
        %1393 = vmatprep.subr.bf16.mxu0 0
        %1394 = vmatpush1.bf16.msra.mxu0 0
        %1395 = vmatprep.subr.bf16.mxu0 0
        %1396 = vmatpush1.bf16.msra.mxu0 0
        %1397 = vmatprep.mubr.bf16.mxu0 0
        %1398 = vmatmul.mubr.bf16.gmra.mrb[0].mxu0 %v1359
        %v1399 = vpop.f32.mrb[0].mxu0
        %v1400 = vadd.f32 0.0, %v1399
        %v1401 = vpop.f32.mrb[0].mxu0
        %v1402 = vpop.f32.mrb[0].mxu0
        %v1403 = vpop.f32.mrb[0].mxu0
        %1404 = vdwg.mxu0
        %v1406 = vsel %vm1117, %v1351, 0
        %v1409 = vsel %vm1361, %v1355, 0
        %1411 = vmatprep.subr.bf16.mxu0 0
        %1412 = vmatpush1.bf16.msra.mxu0 %v1409
        %1413 = vmatprep.subr.bf16.mxu0 0
        %1414 = vmatpush1.bf16.msra.mxu0 0
        %1415 = vmatprep.subr.bf16.mxu0 0
        %1416 = vmatpush1.bf16.msra.mxu0 0
        %1417 = vmatprep.subr.bf16.mxu0 0
        %1418 = vmatpush1.bf16.msra.mxu0 0
        %1419 = vmatprep.subr.bf16.mxu0 0
        %1420 = vmatpush1.bf16.msra.mxu0 0
        %1421 = vmatprep.subr.bf16.mxu0 0
        %1422 = vmatpush1.bf16.msra.mxu0 0
        %1423 = vmatprep.subr.bf16.mxu0 0
        %1424 = vmatpush1.bf16.msra.mxu0 0
        %1425 = vmatprep.subr.bf16.mxu0 0
        %1426 = vmatpush1.bf16.msra.mxu0 0
        %1427 = vmatprep.subr.bf16.mxu0 0
        %1428 = vmatpush1.bf16.msra.mxu0 0
        %1429 = vmatprep.subr.bf16.mxu0 0
        %1430 = vmatpush1.bf16.msra.mxu0 0
        %1431 = vmatprep.subr.bf16.mxu0 0
        %1432 = vmatpush1.bf16.msra.mxu0 0
        %1433 = vmatprep.subr.bf16.mxu0 0
        %1434 = vmatpush1.bf16.msra.mxu0 0
        %1435 = vmatprep.subr.bf16.mxu0 0
        %1436 = vmatpush1.bf16.msra.mxu0 0
        %1437 = vmatprep.subr.bf16.mxu0 0
        %1438 = vmatpush1.bf16.msra.mxu0 0
        %1439 = vmatprep.subr.bf16.mxu0 0
        %1440 = vmatpush1.bf16.msra.mxu0 0
        %1441 = vmatprep.subr.bf16.mxu0 0
        %1442 = vmatpush1.bf16.msra.mxu0 0
        %1443 = vmatprep.mubr.bf16.mxu0 0
        %1444 = vmatmul.mubr.bf16.gmra.mrb[0].mxu0 %v1406
        %v1445 = vpop.f32.mrb[0].mxu0
        %v1446 = vadd.f32 0.0, %v1445
        %v1447 = vpop.f32.mrb[0].mxu0
        %v1448 = vpop.f32.mrb[0].mxu0
        %v1449 = vpop.f32.mrb[0].mxu0
        %1450 = vdwg.mxu0
        %v1452 = vsel %vm1117, %v1352, 0
        %v1455 = vsel %vm1361, %v1356, 0
        %1457 = vmatprep.subr.bf16.mxu0 0
        %1458 = vmatpush1.bf16.msra.mxu0 %v1455
        %1459 = vmatprep.subr.bf16.mxu0 0
        %1460 = vmatpush1.bf16.msra.mxu0 0
        %1461 = vmatprep.subr.bf16.mxu0 0
        %1462 = vmatpush1.bf16.msra.mxu0 0
        %1463 = vmatprep.subr.bf16.mxu0 0
        %1464 = vmatpush1.bf16.msra.mxu0 0
        %1465 = vmatprep.subr.bf16.mxu0 0
        %1466 = vmatpush1.bf16.msra.mxu0 0
        %1467 = vmatprep.subr.bf16.mxu0 0
        %1468 = vmatpush1.bf16.msra.mxu0 0
        %1469 = vmatprep.subr.bf16.mxu0 0
        %1470 = vmatpush1.bf16.msra.mxu0 0
        %1471 = vmatprep.subr.bf16.mxu0 0
        %1472 = vmatpush1.bf16.msra.mxu0 0
        %1473 = vmatprep.subr.bf16.mxu0 0
        %1474 = vmatpush1.bf16.msra.mxu0 0
        %1475 = vmatprep.subr.bf16.mxu0 0
        %1476 = vmatpush1.bf16.msra.mxu0 0
        %1477 = vmatprep.subr.bf16.mxu0 0
        %1478 = vmatpush1.bf16.msra.mxu0 0
        %1479 = vmatprep.subr.bf16.mxu0 0
        %1480 = vmatpush1.bf16.msra.mxu0 0
        %1481 = vmatprep.subr.bf16.mxu0 0
        %1482 = vmatpush1.bf16.msra.mxu0 0
        %1483 = vmatprep.subr.bf16.mxu0 0
        %1484 = vmatpush1.bf16.msra.mxu0 0
        %1485 = vmatprep.subr.bf16.mxu0 0
        %1486 = vmatpush1.bf16.msra.mxu0 0
        %1487 = vmatprep.subr.bf16.mxu0 0
        %1488 = vmatpush1.bf16.msra.mxu0 0
        %1489 = vmatprep.mubr.bf16.mxu0 0
        %1490 = vmatmul.mubr.bf16.gmra.mrb[0].mxu0 %v1452
        %v1491 = vpop.f32.mrb[0].mxu0
        %v1492 = vadd.f32 0.0, %v1491
        %v1493 = vpop.f32.mrb[0].mxu0
        %v1494 = vpop.f32.mrb[0].mxu0
        %v1495 = vpop.f32.mrb[0].mxu0
        %1496 = vdwg.mxu0
        %v1498 = vsel %vm1117, %v1353, 0
        %v1501 = vsel %vm1361, %v1357, 0
        %1503 = vmatprep.subr.bf16.mxu0 0
        %1504 = vmatpush1.bf16.msra.mxu0 %v1501
        %1505 = vmatprep.subr.bf16.mxu0 0
        %1506 = vmatpush1.bf16.msra.mxu0 0
        %1507 = vmatprep.subr.bf16.mxu0 0
        %1508 = vmatpush1.bf16.msra.mxu0 0
        %1509 = vmatprep.subr.bf16.mxu0 0
        %1510 = vmatpush1.bf16.msra.mxu0 0
        %1511 = vmatprep.subr.bf16.mxu0 0
        %1512 = vmatpush1.bf16.msra.mxu0 0
        %1513 = vmatprep.subr.bf16.mxu0 0
        %1514 = vmatpush1.bf16.msra.mxu0 0
        %1515 = vmatprep.subr.bf16.mxu0 0
        %1516 = vmatpush1.bf16.msra.mxu0 0
        %1517 = vmatprep.subr.bf16.mxu0 0
        %1518 = vmatpush1.bf16.msra.mxu0 0
        %1519 = vmatprep.subr.bf16.mxu0 0
        %1520 = vmatpush1.bf16.msra.mxu0 0
        %1521 = vmatprep.subr.bf16.mxu0 0
        %1522 = vmatpush1.bf16.msra.mxu0 0
        %1523 = vmatprep.subr.bf16.mxu0 0
        %1524 = vmatpush1.bf16.msra.mxu0 0
        %1525 = vmatprep.subr.bf16.mxu0 0
        %1526 = vmatpush1.bf16.msra.mxu0 0
        %1527 = vmatprep.subr.bf16.mxu0 0
        %1528 = vmatpush1.bf16.msra.mxu0 0
        %1529 = vmatprep.subr.bf16.mxu0 0
        %1530 = vmatpush1.bf16.msra.mxu0 0
        %1531 = vmatprep.subr.bf16.mxu0 0
        %1532 = vmatpush1.bf16.msra.mxu0 0
        %1533 = vmatprep.subr.bf16.mxu0 0
        %1534 = vmatpush1.bf16.msra.mxu0 0
        %1535 = vmatprep.mubr.bf16.mxu0 0
        %1536 = vmatmul.mubr.bf16.gmra.mrb[0].mxu0 %v1498
        %v1537 = vpop.f32.mrb[0].mxu0
        %v1538 = vadd.f32 0.0, %v1537
        %v1539 = vpop.f32.mrb[0].mxu0
        %v1540 = vpop.f32.mrb[0].mxu0
        %v1541 = vpop.f32.mrb[0].mxu0
        %1542 = vdwg.mxu0
        %v1543 = vld [vmem:[%s4] sm:$0xf]
        %v1544 = vld [vmem:[%s4 + $0x4] sm:$0xf]
        %v1545 = vld [vmem:[%s4 + $0x8] sm:$0xf]
        %v1546 = vld [vmem:[%s4 + $0xc] sm:$0xf]
        %v1547 = vpack.c.bf16 %v1400, %v1400
        %v1548 = vpack.c.bf16 %v1446, %v1446
        %v1549 = vpack.c.bf16 %v1492, %v1492
        %v1550 = vpack.c.bf16 %v1538, %v1538
        %v1552 = vsel %vm1117, %v1547, 0
        %v1555 = vsel %vm1361, %v1543, 0
        %1557 = vmatprep.subr.bf16.mxu0 0
        %1558 = vmatpush1.bf16.msra.mxu0 %v1555
        %1559 = vmatprep.subr.bf16.mxu0 0
        %1560 = vmatpush1.bf16.msra.mxu0 0
        %1561 = vmatprep.subr.bf16.mxu0 0
        %1562 = vmatpush1.bf16.msra.mxu0 0
        %1563 = vmatprep.subr.bf16.mxu0 0
        %1564 = vmatpush1.bf16.msra.mxu0 0
        %1565 = vmatprep.subr.bf16.mxu0 0
        %1566 = vmatpush1.bf16.msra.mxu0 0
        %1567 = vmatprep.subr.bf16.mxu0 0
        %1568 = vmatpush1.bf16.msra.mxu0 0
        %1569 = vmatprep.subr.bf16.mxu0 0
        %1570 = vmatpush1.bf16.msra.mxu0 0
        %1571 = vmatprep.subr.bf16.mxu0 0
        %1572 = vmatpush1.bf16.msra.mxu0 0
        %1573 = vmatprep.subr.bf16.mxu0 0
        %1574 = vmatpush1.bf16.msra.mxu0 0
        %1575 = vmatprep.subr.bf16.mxu0 0
        %1576 = vmatpush1.bf16.msra.mxu0 0
        %1577 = vmatprep.subr.bf16.mxu0 0
        %1578 = vmatpush1.bf16.msra.mxu0 0
        %1579 = vmatprep.subr.bf16.mxu0 0
        %1580 = vmatpush1.bf16.msra.mxu0 0
        %1581 = vmatprep.subr.bf16.mxu0 0
        %1582 = vmatpush1.bf16.msra.mxu0 0
        %1583 = vmatprep.subr.bf16.mxu0 0
        %1584 = vmatpush1.bf16.msra.mxu0 0
        %1585 = vmatprep.subr.bf16.mxu0 0
        %1586 = vmatpush1.bf16.msra.mxu0 0
        %1587 = vmatprep.subr.bf16.mxu0 0
        %1588 = vmatpush1.bf16.msra.mxu0 0
        %1589 = vmatprep.mubr.bf16.mxu0 0
        %1590 = vmatmul.mubr.bf16.gmra.mrb[0].mxu0 %v1552
        %v1591 = vpop.f32.mrb[0].mxu0
        %v1592 = vadd.f32 0.0, %v1591
        %v1593 = vpop.f32.mrb[0].mxu0
        %v1594 = vpop.f32.mrb[0].mxu0
        %v1595 = vpop.f32.mrb[0].mxu0
        %1596 = vdwg.mxu0
        %v1598 = vsel %vm1117, %v1548, 0
        %v1601 = vsel %vm1361, %v1544, 0
        %1603 = vmatprep.subr.bf16.mxu0 0
        %1604 = vmatpush1.bf16.msra.mxu0 %v1601
        %1605 = vmatprep.subr.bf16.mxu0 0
        %1606 = vmatpush1.bf16.msra.mxu0 0
        %1607 = vmatprep.subr.bf16.mxu0 0
        %1608 = vmatpush1.bf16.msra.mxu0 0
        %1609 = vmatprep.subr.bf16.mxu0 0
        %1610 = vmatpush1.bf16.msra.mxu0 0
        %1611 = vmatprep.subr.bf16.mxu0 0
        %1612 = vmatpush1.bf16.msra.mxu0 0
        %1613 = vmatprep.subr.bf16.mxu0 0
        %1614 = vmatpush1.bf16.msra.mxu0 0
        %1615 = vmatprep.subr.bf16.mxu0 0
        %1616 = vmatpush1.bf16.msra.mxu0 0
        %1617 = vmatprep.subr.bf16.mxu0 0
        %1618 = vmatpush1.bf16.msra.mxu0 0
        %1619 = vmatprep.subr.bf16.mxu0 0
        %1620 = vmatpush1.bf16.msra.mxu0 0
        %1621 = vmatprep.subr.bf16.mxu0 0
        %1622 = vmatpush1.bf16.msra.mxu0 0
        %1623 = vmatprep.subr.bf16.mxu0 0
        %1624 = vmatpush1.bf16.msra.mxu0 0
        %1625 = vmatprep.subr.bf16.mxu0 0
        %1626 = vmatpush1.bf16.msra.mxu0 0
        %1627 = vmatprep.subr.bf16.mxu0 0
        %1628 = vmatpush1.bf16.msra.mxu0 0
        %1629 = vmatprep.subr.bf16.mxu0 0
        %1630 = vmatpush1.bf16.msra.mxu0 0
        %1631 = vmatprep.subr.bf16.mxu0 0
        %1632 = vmatpush1.bf16.msra.mxu0 0
        %1633 = vmatprep.subr.bf16.mxu0 0
        %1634 = vmatpush1.bf16.msra.mxu0 0
        %1635 = vmatprep.mubr.bf16.mxu0 0
        %1636 = vmatmul.mubr.bf16.gmra.mrb[0].mxu0 %v1598
        %v1637 = vpop.f32.mrb[0].mxu0
        %v1638 = vadd.f32 0.0, %v1637
        %v1639 = vpop.f32.mrb[0].mxu0
        %v1640 = vpop.f32.mrb[0].mxu0
        %v1641 = vpop.f32.mrb[0].mxu0
        %1642 = vdwg.mxu0
        %v1644 = vsel %vm1117, %v1549, 0
        %v1647 = vsel %vm1361, %v1545, 0
        %1649 = vmatprep.subr.bf16.mxu0 0
        %1650 = vmatpush1.bf16.msra.mxu0 %v1647
        %1651 = vmatprep.subr.bf16.mxu0 0
        %1652 = vmatpush1.bf16.msra.mxu0 0
        %1653 = vmatprep.subr.bf16.mxu0 0
        %1654 = vmatpush1.bf16.msra.mxu0 0
        %1655 = vmatprep.subr.bf16.mxu0 0
        %1656 = vmatpush1.bf16.msra.mxu0 0
        %1657 = vmatprep.subr.bf16.mxu0 0
        %1658 = vmatpush1.bf16.msra.mxu0 0
        %1659 = vmatprep.subr.bf16.mxu0 0
        %1660 = vmatpush1.bf16.msra.mxu0 0
        %1661 = vmatprep.subr.bf16.mxu0 0
        %1662 = vmatpush1.bf16.msra.mxu0 0
        %1663 = vmatprep.subr.bf16.mxu0 0
        %1664 = vmatpush1.bf16.msra.mxu0 0
        %1665 = vmatprep.subr.bf16.mxu0 0
        %1666 = vmatpush1.bf16.msra.mxu0 0
        %1667 = vmatprep.subr.bf16.mxu0 0
        %1668 = vmatpush1.bf16.msra.mxu0 0
        %1669 = vmatprep.subr.bf16.mxu0 0
        %1670 = vmatpush1.bf16.msra.mxu0 0
        %1671 = vmatprep.subr.bf16.mxu0 0
        %1672 = vmatpush1.bf16.msra.mxu0 0
        %1673 = vmatprep.subr.bf16.mxu0 0
        %1674 = vmatpush1.bf16.msra.mxu0 0
        %1675 = vmatprep.subr.bf16.mxu0 0
        %1676 = vmatpush1.bf16.msra.mxu0 0
        %1677 = vmatprep.subr.bf16.mxu0 0
        %1678 = vmatpush1.bf16.msra.mxu0 0
        %1679 = vmatprep.subr.bf16.mxu0 0
        %1680 = vmatpush1.bf16.msra.mxu0 0
        %1681 = vmatprep.mubr.bf16.mxu0 0
        %1682 = vmatmul.mubr.bf16.gmra.mrb[0].mxu0 %v1644
        %v1683 = vpop.f32.mrb[0].mxu0
        %v1684 = vadd.f32 0.0, %v1683
        %v1685 = vpop.f32.mrb[0].mxu0
        %v1686 = vpop.f32.mrb[0].mxu0
        %v1687 = vpop.f32.mrb[0].mxu0
        %1688 = vdwg.mxu0
        %v1690 = vsel %vm1117, %v1550, 0
        %v1693 = vsel %vm1361, %v1546, 0
        %1695 = vmatprep.subr.bf16.mxu0 0
        %1696 = vmatpush1.bf16.msra.mxu0 %v1693
        %1697 = vmatprep.subr.bf16.mxu0 0
        %1698 = vmatpush1.bf16.msra.mxu0 0
        %1699 = vmatprep.subr.bf16.mxu0 0
        %1700 = vmatpush1.bf16.msra.mxu0 0
        %1701 = vmatprep.subr.bf16.mxu0 0
        %1702 = vmatpush1.bf16.msra.mxu0 0
        %1703 = vmatprep.subr.bf16.mxu0 0
        %1704 = vmatpush1.bf16.msra.mxu0 0
        %1705 = vmatprep.subr.bf16.mxu0 0
        %1706 = vmatpush1.bf16.msra.mxu0 0
        %1707 = vmatprep.subr.bf16.mxu0 0
        %1708 = vmatpush1.bf16.msra.mxu0 0
        %1709 = vmatprep.subr.bf16.mxu0 0
        %1710 = vmatpush1.bf16.msra.mxu0 0
        %1711 = vmatprep.subr.bf16.mxu0 0
        %1712 = vmatpush1.bf16.msra.mxu0 0
        %1713 = vmatprep.subr.bf16.mxu0 0
        %1714 = vmatpush1.bf16.msra.mxu0 0
        %1715 = vmatprep.subr.bf16.mxu0 0
        %1716 = vmatpush1.bf16.msra.mxu0 0
        %1717 = vmatprep.subr.bf16.mxu0 0
        %1718 = vmatpush1.bf16.msra.mxu0 0
        %1719 = vmatprep.subr.bf16.mxu0 0
        %1720 = vmatpush1.bf16.msra.mxu0 0
        %1721 = vmatprep.subr.bf16.mxu0 0
        %1722 = vmatpush1.bf16.msra.mxu0 0
        %1723 = vmatprep.subr.bf16.mxu0 0
        %1724 = vmatpush1.bf16.msra.mxu0 0
        %1725 = vmatprep.subr.bf16.mxu0 0
        %1726 = vmatpush1.bf16.msra.mxu0 0
        %1727 = vmatprep.mubr.bf16.mxu0 0
        %1728 = vmatmul.mubr.bf16.gmra.mrb[0].mxu0 %v1690
        %v1729 = vpop.f32.mrb[0].mxu0
        %v1730 = vadd.f32 0.0, %v1729
        %v1731 = vpop.f32.mrb[0].mxu0
        %v1732 = vpop.f32.mrb[0].mxu0
        %v1733 = vpop.f32.mrb[0].mxu0
        %1734 = vdwg.mxu0
        %v1735 = vsel %vm493, %v1592, 0.0
        %v1736 = vsel %vm493, %v1638, 0.0
        %v1737 = vadd.f32 %v1735, %v1736
        %v1738 = vsel %vm493, %v1684, 0.0
        %v1739 = vadd.f32 %v1737, %v1738
        %v1740 = vsel %vm493, %v1730, 0.0
        %v1741 = vadd.f32 %v1739, %v1740
        %v1742 = vld [vmem:[%s7] sm:$0x1]
        %v1743 = vlaneseq
        %v1744 = vshrl.u32 %v1743, 7
        %v1745 = vsub.s32 0, %v1744
        %v1746 = vrot.slane %v1742, %v1745
        %v1747 = vadd.f32 %v1741, %v1746
        %v1748 = vadd.f32 %v346, %v1747
        %v1749 = vld [vmem:[%s7 + $0x1] sm:$0x1]
        %v1750 = vld [vmem:[%s7 + $0x2] sm:$0x1]
        %v1751 = vsel %vm493, %v1748, 0.0
        %1752 = vadd.xlane.f32.xlu0 %v1751
        %v1753 = vpop.xlane.xlu0 %1752
        %v1754 = vrcp.pop 32.0
        %v1755 = vmul.f32 %v1753, %v1754
        %v1756 = vsub.f32 %v1748, %v1755
        %v1757 = vmul.f32 %v1756, %v1756
        %v1758 = vsel %vm493, %v1757, 0.0
        %1759 = vadd.xlane.f32.xlu0 %v1758
        %v1760 = vpop.xlane.xlu0 %1759
        %v1761 = vmul.f32 %v1760, %v1754
        %v1762 = vadd.f32 %v1761, 1e-05
        %v1763 = vrsqrt.pop %v1762
        %v1764 = vmul.f32 %v1756, %v1763
        %v1765 = vlaneseq
        %v1766 = vshrl.u32 %v1765, 7
        %v1767 = vsub.s32 0, %v1766
        %v1768 = vrot.slane %v1749, %v1767
        %v1769 = vmul.f32 %v1764, %v1768
        %v1770 = vlaneseq
        %v1771 = vshrl.u32 %v1770, 7
        %v1772 = vsub.s32 0, %v1771
        %v1773 = vrot.slane %v1750, %v1772
        %v1774 = vadd.f32 %v1769, %v1773
        %v1775 = vld [vmem:[%s5] sm:$0xf]
        %v1776 = vld [vmem:[%s5 + $0x4] sm:$0xf]
        %v1777 = vld [vmem:[%s5 + $0x8] sm:$0xf]
        %v1778 = vld [vmem:[%s5 + $0xc] sm:$0xf]
        %v1779 = vpack.c.bf16 %v1774, %v1774
        %v1780 = vld [vmem:[%s6] sm:$0x1]
        %v1782 = vlaneseq
        %v1783 = vshrl.u32 %v1782, 7
        %v1784 = vsub.s32 0, %v1783
        %v1785 = vrot.slane %v1780, %v1784
        %v1791 = vunpack.c.l.b16 %v1775
        %v1792 = vunpack.c.l.b16 %v1776
        %v1793 = vunpack.c.l.b16 %v1777
        %v1794 = vunpack.c.l.b16 %v1778
        %v1795 = vpack.c.b16 %v1792, %v1791
        %v1796 = vpack.c.b16 %v1794, %v1793
        %v1800 = vsel %vm493, %v1779, 0
        %1802 = vmatprep.subr.bf16.mxu0 0
        %1803 = vmatpush1.bf16.msra.mxu0 %v1795
        %1804 = vmatprep.subr.bf16.mxu0 0
        %1805 = vmatpush1.bf16.msra.mxu0 %v1796
        %1806 = vmatprep.subr.bf16.mxu0 0
        %1807 = vmatpush1.bf16.msra.mxu0 0
        %1808 = vmatprep.subr.bf16.mxu0 0
        %1809 = vmatpush1.bf16.msra.mxu0 0
        %1810 = vmatprep.subr.bf16.mxu0 0
        %1811 = vmatpush1.bf16.msra.mxu0 0
        %1812 = vmatprep.subr.bf16.mxu0 0
        %1813 = vmatpush1.bf16.msra.mxu0 0
        %1814 = vmatprep.subr.bf16.mxu0 0
        %1815 = vmatpush1.bf16.msra.mxu0 0
        %1816 = vmatprep.subr.bf16.mxu0 0
        %1817 = vmatpush1.bf16.msra.mxu0 0
        %1818 = vmatprep.subr.bf16.mxu0 0
        %1819 = vmatpush1.bf16.msra.mxu0 0
        %1820 = vmatprep.subr.bf16.mxu0 0
        %1821 = vmatpush1.bf16.msra.mxu0 0
        %1822 = vmatprep.subr.bf16.mxu0 0
        %1823 = vmatpush1.bf16.msra.mxu0 0
        %1824 = vmatprep.subr.bf16.mxu0 0
        %1825 = vmatpush1.bf16.msra.mxu0 0
        %1826 = vmatprep.subr.bf16.mxu0 0
        %1827 = vmatpush1.bf16.msra.mxu0 0
        %1828 = vmatprep.subr.bf16.mxu0 0
        %1829 = vmatpush1.bf16.msra.mxu0 0
        %1830 = vmatprep.subr.bf16.mxu0 0
        %1831 = vmatpush1.bf16.msra.mxu0 0
        %1832 = vmatprep.subr.bf16.mxu0 0
        %1833 = vmatpush1.bf16.msra.mxu0 0
        %1834 = vmatprep.mubr.bf16.mxu0 0
        %1835 = vmatmul.mubr.bf16.gmra.mrb[0].mxu0 %v1800
        %v1836 = vpop.f32.mrb[0].mxu0
        %v1837 = vadd.f32 %v1785, %v1836
        %v1838 = vpop.f32.mrb[0].mxu0
        %v1839 = vpop.f32.mrb[0].mxu0
        %v1840 = vpop.f32.mrb[0].mxu0
        %1841 = vdwg.mxu0
        %v1842 = vmax.f32 %v1837, 0.0
        %s1843 = scalar_lea.vmem %s5, 16
        %v1844 = vld [vmem:[%s1843] sm:$0xf]
        %v1845 = vld [vmem:[%s1843 + $0x4] sm:$0xf]
        %v1846 = vld [vmem:[%s1843 + $0x8] sm:$0xf]
        %v1847 = vld [vmem:[%s1843 + $0xc] sm:$0xf]
        %v1848 = vpack.c.bf16 %v1842, %v1842
        %v1849 = vld [vmem:[%s7 + $0x3] sm:$0x1]
        %v1850 = vlaneseq
        %v1851 = vshrl.u32 %v1850, 7
        %v1852 = vsub.s32 0, %v1851
        %v1853 = vrot.slane %v1849, %v1852
        %v1858 = vunpack.c.l.b16 %v1844
        %v1859 = vunpack.c.l.b16 %v1845
        %v1860 = vunpack.c.l.b16 %v1846
        %v1861 = vunpack.c.l.b16 %v1847
        %v1862 = vpack.c.b16 %v1859, %v1858
        %v1863 = vpack.c.b16 %v1861, %v1860
        %1866 = vmatprep.subr.bf16.mxu0 0
        %1867 = vmatpush1.bf16.xpose.msra.mxu0 %v1862
        %1868 = vmatprep.subr.bf16.mxu0 0
        %1869 = vmatpush1.bf16.xpose.msra.mxu0 %v1863
        %1870 = vmatprep.subr.bf16.mxu0 0
        %1871 = vmatpush1.bf16.xpose.msra.mxu0 0
        %1872 = vmatprep.subr.bf16.mxu0 0
        %1873 = vmatpush1.bf16.xpose.msra.mxu0 0
        %1874 = vmatprep.subr.bf16.mxu0 0
        %1875 = vmatpush1.bf16.xpose.msra.mxu0 0
        %1876 = vmatprep.subr.bf16.mxu0 0
        %1877 = vmatpush1.bf16.xpose.msra.mxu0 0
        %1878 = vmatprep.subr.bf16.mxu0 0
        %1879 = vmatpush1.bf16.xpose.msra.mxu0 0
        %1880 = vmatprep.subr.bf16.mxu0 0
        %1881 = vmatpush1.bf16.xpose.msra.mxu0 0
        %1882 = vmatprep.subr.bf16.mxu0 0
        %1883 = vmatpush1.bf16.xpose.msra.mxu0 0
        %1884 = vmatprep.subr.bf16.mxu0 0
        %1885 = vmatpush1.bf16.xpose.msra.mxu0 0
        %1886 = vmatprep.subr.bf16.mxu0 0
        %1887 = vmatpush1.bf16.xpose.msra.mxu0 0
        %1888 = vmatprep.subr.bf16.mxu0 0
        %1889 = vmatpush1.bf16.xpose.msra.mxu0 0
        %1890 = vmatprep.subr.bf16.mxu0 0
        %1891 = vmatpush1.bf16.xpose.msra.mxu0 0
        %1892 = vmatprep.subr.bf16.mxu0 0
        %1893 = vmatpush1.bf16.xpose.msra.mxu0 0
        %1894 = vmatprep.subr.bf16.mxu0 0
        %1895 = vmatpush1.bf16.xpose.msra.mxu0 0
        %1896 = vmatprep.subr.bf16.mxu0 0
        %1897 = vmatpush1.bf16.xpose.msra.mxu0 0
        %1898 = vmatprep.mubr.bf16.mxu0 0
        %1899 = vmatmul.mubr.bf16.gmra.mrb[0].mxu0 %v1848
        %v1900 = vpop.f32.mrb[0].mxu0
        %v1901 = vadd.f32 %v1853, %v1900
        %v1902 = vpop.f32.mrb[0].mxu0
        %v1903 = vpop.f32.mrb[0].mxu0
        %v1904 = vpop.f32.mrb[0].mxu0
        %1905 = vdwg.mxu0
        %v1906 = vadd.f32 %v1774, %v1901
        %v1907 = vld [vmem:[%s7 + $0x4] sm:$0x1]
        %v1908 = vld [vmem:[%s7 + $0x5] sm:$0x1]
        %v1909 = vsel %vm493, %v1906, 0.0
        %1910 = vadd.xlane.f32.xlu0 %v1909
        %v1911 = vpop.xlane.xlu0 %1910
        %v1912 = vmul.f32 %v1911, %v1754
        %v1913 = vsub.f32 %v1906, %v1912
        %v1914 = vmul.f32 %v1913, %v1913
        %v1915 = vsel %vm493, %v1914, 0.0
        %1916 = vadd.xlane.f32.xlu0 %v1915
        %v1917 = vpop.xlane.xlu0 %1916
        %v1918 = vmul.f32 %v1917, %v1754
        %v1919 = vadd.f32 %v1918, 1e-05
        %v1920 = vrsqrt.pop %v1919
        %v1921 = vmul.f32 %v1913, %v1920
        %v1922 = vlaneseq
        %v1923 = vshrl.u32 %v1922, 7
        %v1924 = vsub.s32 0, %v1923
        %v1925 = vrot.slane %v1907, %v1924
        %v1926 = vmul.f32 %v1921, %v1925
        %v1927 = vlaneseq
        %v1928 = vshrl.u32 %v1927, 7
        %v1929 = vsub.s32 0, %v1928
        %v1930 = vrot.slane %v1908, %v1929
        %v1931 = vadd.f32 %v1926, %v1930
        %v1932 = vpack.c.bf16 %v1931, %v1931
        %s1933 = scalar_lea.vmem %s2, 192
        %v1934 = vld [vmem:[%s1933] sm:$0xf]
        %v1935 = vld [vmem:[%s1933 + $0x4] sm:$0xf]
        %v1936 = vld [vmem:[%s1933 + $0x8] sm:$0xf]
        %v1937 = vld [vmem:[%s1933 + $0xc] sm:$0xf]
        %v1938 = vld [vmem:[%s1933 + $0x10] sm:$0xf]
        %v1939 = vld [vmem:[%s1933 + $0x14] sm:$0xf]
        %v1940 = vld [vmem:[%s1933 + $0x18] sm:$0xf]
        %v1941 = vld [vmem:[%s1933 + $0x1c] sm:$0xf]
        %v1942 = vld [vmem:[%s1933 + $0x20] sm:$0xf]
        %v1943 = vld [vmem:[%s1933 + $0x24] sm:$0xf]
        %v1944 = vld [vmem:[%s1933 + $0x28] sm:$0xf]
        %v1945 = vld [vmem:[%s1933 + $0x2c] sm:$0xf]
        %v1946 = vld [vmem:[%s1933 + $0x30] sm:$0xf]
        %v1947 = vld [vmem:[%s1933 + $0x34] sm:$0xf]
        %v1948 = vld [vmem:[%s1933 + $0x38] sm:$0xf]
        %v1949 = vld [vmem:[%s1933 + $0x3c] sm:$0xf]
        %v1950 = vld [vmem:[%s1933 + $0x40] sm:$0xf]
        %v1951 = vld [vmem:[%s1933 + $0x44] sm:$0xf]
        %v1952 = vld [vmem:[%s1933 + $0x48] sm:$0xf]
        %v1953 = vld [vmem:[%s1933 + $0x4c] sm:$0xf]
        %v1954 = vld [vmem:[%s1933 + $0x50] sm:$0xf]
        %v1955 = vld [vmem:[%s1933 + $0x54] sm:$0xf]
        %v1956 = vld [vmem:[%s1933 + $0x58] sm:$0xf]
        %v1957 = vld [vmem:[%s1933 + $0x5c] sm:$0xf]
        %v1958 = vld [vmem:[%s1933 + $0x60] sm:$0xf]
        %v1959 = vld [vmem:[%s1933 + $0x64] sm:$0xf]
        %v1960 = vld [vmem:[%s1933 + $0x68] sm:$0xf]
        %v1961 = vld [vmem:[%s1933 + $0x6c] sm:$0xf]
        %v1962 = vld [vmem:[%s1933 + $0x70] sm:$0xf]
        %v1963 = vld [vmem:[%s1933 + $0x74] sm:$0xf]
        %v1964 = vld [vmem:[%s1933 + $0x78] sm:$0xf]
        %v1965 = vld [vmem:[%s1933 + $0x7c] sm:$0xf]
        %v1966 = vld [vmem:[%s1933 + $0x80] sm:$0xf]
        %v1967 = vld [vmem:[%s1933 + $0x84] sm:$0xf]
        %v1968 = vld [vmem:[%s1933 + $0x88] sm:$0xf]
        %v1969 = vld [vmem:[%s1933 + $0x8c] sm:$0xf]
        %v1970 = vld [vmem:[%s1933 + $0x90] sm:$0xf]
        %v1971 = vld [vmem:[%s1933 + $0x94] sm:$0xf]
        %v1972 = vld [vmem:[%s1933 + $0x98] sm:$0xf]
        %v1973 = vld [vmem:[%s1933 + $0x9c] sm:$0xf]
        %v1974 = vld [vmem:[%s1933 + $0xa0] sm:$0xf]
        %v1975 = vld [vmem:[%s1933 + $0xa4] sm:$0xf]
        %v1976 = vld [vmem:[%s1933 + $0xa8] sm:$0xf]
        %v1977 = vld [vmem:[%s1933 + $0xac] sm:$0xf]
        %v1978 = vld [vmem:[%s1933 + $0xb0] sm:$0xf]
        %v1979 = vld [vmem:[%s1933 + $0xb4] sm:$0xf]
        %v1980 = vld [vmem:[%s1933 + $0xb8] sm:$0xf]
        %v1981 = vld [vmem:[%s1933 + $0xbc] sm:$0xf]
        %s1982 = scalar_lea.vmem %s3, 12
        %v1983 = vld [vmem:[%s1982] sm:$0x1]
        %v1984 = vld [vmem:[%s1982 + $0x1] sm:$0x1]
        %v1985 = vld [vmem:[%s1982 + $0x2] sm:$0x1]
        %v1986 = vld [vmem:[%s1982 + $0x3] sm:$0x1]
        %v1987 = vld [vmem:[%s1982 + $0x4] sm:$0x1]
        %v1988 = vld [vmem:[%s1982 + $0x5] sm:$0x1]
        %v1989 = vld [vmem:[%s1982 + $0x6] sm:$0x1]
        %v1990 = vld [vmem:[%s1982 + $0x7] sm:$0x1]
        %v1991 = vld [vmem:[%s1982 + $0x8] sm:$0x1]
        %v1992 = vld [vmem:[%s1982 + $0x9] sm:$0x1]
        %v1993 = vld [vmem:[%s1982 + $0xa] sm:$0x1]
        %v1994 = vld [vmem:[%s1982 + $0xb] sm:$0x1]
        %v2007 = vlaneseq
        %v2008 = vshrl.u32 %v2007, 7
        %v2009 = vsub.s32 0, %v2008
        %v2010 = vrot.slane %v1983, %v2009
        %v2011 = vlaneseq
        %v2012 = vshrl.u32 %v2011, 7
        %v2013 = vsub.s32 0, %v2012
        %v2014 = vrot.slane %v1984, %v2013
        %v2015 = vlaneseq
        %v2016 = vshrl.u32 %v2015, 7
        %v2017 = vsub.s32 0, %v2016
        %v2018 = vrot.slane %v1985, %v2017
        %v2019 = vlaneseq
        %v2020 = vshrl.u32 %v2019, 7
        %v2021 = vsub.s32 0, %v2020
        %v2022 = vrot.slane %v1986, %v2021
        %v2023 = vlaneseq
        %v2024 = vshrl.u32 %v2023, 7
        %v2025 = vsub.s32 0, %v2024
        %v2026 = vrot.slane %v1987, %v2025
        %v2027 = vlaneseq
        %v2028 = vshrl.u32 %v2027, 7
        %v2029 = vsub.s32 0, %v2028
        %v2030 = vrot.slane %v1988, %v2029
        %v2031 = vlaneseq
        %v2032 = vshrl.u32 %v2031, 7
        %v2033 = vsub.s32 0, %v2032
        %v2034 = vrot.slane %v1989, %v2033
        %v2035 = vlaneseq
        %v2036 = vshrl.u32 %v2035, 7
        %v2037 = vsub.s32 0, %v2036
        %v2038 = vrot.slane %v1990, %v2037
        %v2039 = vlaneseq
        %v2040 = vshrl.u32 %v2039, 7
        %v2041 = vsub.s32 0, %v2040
        %v2042 = vrot.slane %v1991, %v2041
        %v2043 = vlaneseq
        %v2044 = vshrl.u32 %v2043, 7
        %v2045 = vsub.s32 0, %v2044
        %v2046 = vrot.slane %v1992, %v2045
        %v2047 = vlaneseq
        %v2048 = vshrl.u32 %v2047, 7
        %v2049 = vsub.s32 0, %v2048
        %v2050 = vrot.slane %v1993, %v2049
        %v2051 = vlaneseq
        %v2052 = vshrl.u32 %v2051, 7
        %v2053 = vsub.s32 0, %v2052
        %v2054 = vrot.slane %v1994, %v2053
        %v2071 = vunpack.c.l.b16 %v1934
        %v2072 = vunpack.c.l.b16 %v1935
        %v2073 = vunpack.c.l.b16 %v1936
        %v2074 = vunpack.c.l.b16 %v1937
        %v2075 = vpack.c.b16 %v2072, %v2071
        %v2076 = vpack.c.b16 %v2074, %v2073
        %v2080 = vsel %vm493, %v1932, 0
        %2082 = vmatprep.subr.bf16.mxu0 0
        %2083 = vmatpush1.bf16.msra.mxu0 %v2075
        %2084 = vmatprep.subr.bf16.mxu0 0
        %2085 = vmatpush1.bf16.msra.mxu0 %v2076
        %2086 = vmatprep.subr.bf16.mxu0 0
        %2087 = vmatpush1.bf16.msra.mxu0 0
        %2088 = vmatprep.subr.bf16.mxu0 0
        %2089 = vmatpush1.bf16.msra.mxu0 0
        %2090 = vmatprep.subr.bf16.mxu0 0
        %2091 = vmatpush1.bf16.msra.mxu0 0
        %2092 = vmatprep.subr.bf16.mxu0 0
        %2093 = vmatpush1.bf16.msra.mxu0 0
        %2094 = vmatprep.subr.bf16.mxu0 0
        %2095 = vmatpush1.bf16.msra.mxu0 0
        %2096 = vmatprep.subr.bf16.mxu0 0
        %2097 = vmatpush1.bf16.msra.mxu0 0
        %2098 = vmatprep.subr.bf16.mxu0 0
        %2099 = vmatpush1.bf16.msra.mxu0 0
        %2100 = vmatprep.subr.bf16.mxu0 0
        %2101 = vmatpush1.bf16.msra.mxu0 0
        %2102 = vmatprep.subr.bf16.mxu0 0
        %2103 = vmatpush1.bf16.msra.mxu0 0
        %2104 = vmatprep.subr.bf16.mxu0 0
        %2105 = vmatpush1.bf16.msra.mxu0 0
        %2106 = vmatprep.subr.bf16.mxu0 0
        %2107 = vmatpush1.bf16.msra.mxu0 0
        %2108 = vmatprep.subr.bf16.mxu0 0
        %2109 = vmatpush1.bf16.msra.mxu0 0
        %2110 = vmatprep.subr.bf16.mxu0 0
        %2111 = vmatpush1.bf16.msra.mxu0 0
        %2112 = vmatprep.subr.bf16.mxu0 0
        %2113 = vmatpush1.bf16.msra.mxu0 0
        %2114 = vmatprep.mubr.bf16.mxu0 0
        %2115 = vmatmul.mubr.bf16.gmra.mrb[0].mxu0 %v2080
        %v2116 = vpop.f32.mrb[0].mxu0
        %v2117 = vadd.f32 %v2010, %v2116
        %v2118 = vpop.f32.mrb[0].mxu0
        %v2119 = vpop.f32.mrb[0].mxu0
        %v2120 = vpop.f32.mrb[0].mxu0
        %2121 = vdwg.mxu0
        %v2126 = vunpack.c.l.b16 %v1938
        %v2127 = vunpack.c.l.b16 %v1939
        %v2128 = vunpack.c.l.b16 %v1940
        %v2129 = vunpack.c.l.b16 %v1941
        %v2130 = vpack.c.b16 %v2127, %v2126
        %v2131 = vpack.c.b16 %v2129, %v2128
        %2134 = vmatprep.subr.bf16.mxu0 0
        %2135 = vmatpush1.bf16.msra.mxu0 %v2130
        %2136 = vmatprep.subr.bf16.mxu0 0
        %2137 = vmatpush1.bf16.msra.mxu0 %v2131
        %2138 = vmatprep.subr.bf16.mxu0 0
        %2139 = vmatpush1.bf16.msra.mxu0 0
        %2140 = vmatprep.subr.bf16.mxu0 0
        %2141 = vmatpush1.bf16.msra.mxu0 0
        %2142 = vmatprep.subr.bf16.mxu0 0
        %2143 = vmatpush1.bf16.msra.mxu0 0
        %2144 = vmatprep.subr.bf16.mxu0 0
        %2145 = vmatpush1.bf16.msra.mxu0 0
        %2146 = vmatprep.subr.bf16.mxu0 0
        %2147 = vmatpush1.bf16.msra.mxu0 0
        %2148 = vmatprep.subr.bf16.mxu0 0
        %2149 = vmatpush1.bf16.msra.mxu0 0
        %2150 = vmatprep.subr.bf16.mxu0 0
        %2151 = vmatpush1.bf16.msra.mxu0 0
        %2152 = vmatprep.subr.bf16.mxu0 0
        %2153 = vmatpush1.bf16.msra.mxu0 0
        %2154 = vmatprep.subr.bf16.mxu0 0
        %2155 = vmatpush1.bf16.msra.mxu0 0
        %2156 = vmatprep.subr.bf16.mxu0 0
        %2157 = vmatpush1.bf16.msra.mxu0 0
        %2158 = vmatprep.subr.bf16.mxu0 0
        %2159 = vmatpush1.bf16.msra.mxu0 0
        %2160 = vmatprep.subr.bf16.mxu0 0
        %2161 = vmatpush1.bf16.msra.mxu0 0
        %2162 = vmatprep.subr.bf16.mxu0 0
        %2163 = vmatpush1.bf16.msra.mxu0 0
        %2164 = vmatprep.subr.bf16.mxu0 0
        %2165 = vmatpush1.bf16.msra.mxu0 0
        %2166 = vmatprep.mubr.bf16.mxu0 0
        %2167 = vmatmul.mubr.bf16.gmra.mrb[0].mxu0 %v2080
        %v2168 = vpop.f32.mrb[0].mxu0
        %v2169 = vadd.f32 %v2014, %v2168
        %v2170 = vpop.f32.mrb[0].mxu0
        %v2171 = vpop.f32.mrb[0].mxu0
        %v2172 = vpop.f32.mrb[0].mxu0
        %2173 = vdwg.mxu0
        %v2178 = vunpack.c.l.b16 %v1942
        %v2179 = vunpack.c.l.b16 %v1943
        %v2180 = vunpack.c.l.b16 %v1944
        %v2181 = vunpack.c.l.b16 %v1945
        %v2182 = vpack.c.b16 %v2179, %v2178
        %v2183 = vpack.c.b16 %v2181, %v2180
        %2186 = vmatprep.subr.bf16.mxu0 0
        %2187 = vmatpush1.bf16.msra.mxu0 %v2182
        %2188 = vmatprep.subr.bf16.mxu0 0
        %2189 = vmatpush1.bf16.msra.mxu0 %v2183
        %2190 = vmatprep.subr.bf16.mxu0 0
        %2191 = vmatpush1.bf16.msra.mxu0 0
        %2192 = vmatprep.subr.bf16.mxu0 0
        %2193 = vmatpush1.bf16.msra.mxu0 0
        %2194 = vmatprep.subr.bf16.mxu0 0
        %2195 = vmatpush1.bf16.msra.mxu0 0
        %2196 = vmatprep.subr.bf16.mxu0 0
        %2197 = vmatpush1.bf16.msra.mxu0 0
        %2198 = vmatprep.subr.bf16.mxu0 0
        %2199 = vmatpush1.bf16.msra.mxu0 0
        %2200 = vmatprep.subr.bf16.mxu0 0
        %2201 = vmatpush1.bf16.msra.mxu0 0
        %2202 = vmatprep.subr.bf16.mxu0 0
        %2203 = vmatpush1.bf16.msra.mxu0 0
        %2204 = vmatprep.subr.bf16.mxu0 0
        %2205 = vmatpush1.bf16.msra.mxu0 0
        %2206 = vmatprep.subr.bf16.mxu0 0
        %2207 = vmatpush1.bf16.msra.mxu0 0
        %2208 = vmatprep.subr.bf16.mxu0 0
        %2209 = vmatpush1.bf16.msra.mxu0 0
        %2210 = vmatprep.subr.bf16.mxu0 0
        %2211 = vmatpush1.bf16.msra.mxu0 0
        %2212 = vmatprep.subr.bf16.mxu0 0
        %2213 = vmatpush1.bf16.msra.mxu0 0
        %2214 = vmatprep.subr.bf16.mxu0 0
        %2215 = vmatpush1.bf16.msra.mxu0 0
        %2216 = vmatprep.subr.bf16.mxu0 0
        %2217 = vmatpush1.bf16.msra.mxu0 0
        %2218 = vmatprep.mubr.bf16.mxu0 0
        %2219 = vmatmul.mubr.bf16.gmra.mrb[0].mxu0 %v2080
        %v2220 = vpop.f32.mrb[0].mxu0
        %v2221 = vadd.f32 %v2018, %v2220
        %v2222 = vpop.f32.mrb[0].mxu0
        %v2223 = vpop.f32.mrb[0].mxu0
        %v2224 = vpop.f32.mrb[0].mxu0
        %2225 = vdwg.mxu0
        %v2230 = vunpack.c.l.b16 %v1946
        %v2231 = vunpack.c.l.b16 %v1947
        %v2232 = vunpack.c.l.b16 %v1948
        %v2233 = vunpack.c.l.b16 %v1949
        %v2234 = vpack.c.b16 %v2231, %v2230
        %v2235 = vpack.c.b16 %v2233, %v2232
        %2238 = vmatprep.subr.bf16.mxu0 0
        %2239 = vmatpush1.bf16.msra.mxu0 %v2234
        %2240 = vmatprep.subr.bf16.mxu0 0
        %2241 = vmatpush1.bf16.msra.mxu0 %v2235
        %2242 = vmatprep.subr.bf16.mxu0 0
        %2243 = vmatpush1.bf16.msra.mxu0 0
        %2244 = vmatprep.subr.bf16.mxu0 0
        %2245 = vmatpush1.bf16.msra.mxu0 0
        %2246 = vmatprep.subr.bf16.mxu0 0
        %2247 = vmatpush1.bf16.msra.mxu0 0
        %2248 = vmatprep.subr.bf16.mxu0 0
        %2249 = vmatpush1.bf16.msra.mxu0 0
        %2250 = vmatprep.subr.bf16.mxu0 0
        %2251 = vmatpush1.bf16.msra.mxu0 0
        %2252 = vmatprep.subr.bf16.mxu0 0
        %2253 = vmatpush1.bf16.msra.mxu0 0
        %2254 = vmatprep.subr.bf16.mxu0 0
        %2255 = vmatpush1.bf16.msra.mxu0 0
        %2256 = vmatprep.subr.bf16.mxu0 0
        %2257 = vmatpush1.bf16.msra.mxu0 0
        %2258 = vmatprep.subr.bf16.mxu0 0
        %2259 = vmatpush1.bf16.msra.mxu0 0
        %2260 = vmatprep.subr.bf16.mxu0 0
        %2261 = vmatpush1.bf16.msra.mxu0 0
        %2262 = vmatprep.subr.bf16.mxu0 0
        %2263 = vmatpush1.bf16.msra.mxu0 0
        %2264 = vmatprep.subr.bf16.mxu0 0
        %2265 = vmatpush1.bf16.msra.mxu0 0
        %2266 = vmatprep.subr.bf16.mxu0 0
        %2267 = vmatpush1.bf16.msra.mxu0 0
        %2268 = vmatprep.subr.bf16.mxu0 0
        %2269 = vmatpush1.bf16.msra.mxu0 0
        %2270 = vmatprep.mubr.bf16.mxu0 0
        %2271 = vmatmul.mubr.bf16.gmra.mrb[0].mxu0 %v2080
        %v2272 = vpop.f32.mrb[0].mxu0
        %v2273 = vadd.f32 %v2022, %v2272
        %v2274 = vpop.f32.mrb[0].mxu0
        %v2275 = vpop.f32.mrb[0].mxu0
        %v2276 = vpop.f32.mrb[0].mxu0
        %2277 = vdwg.mxu0
        %v2282 = vunpack.c.l.b16 %v1950
        %v2283 = vunpack.c.l.b16 %v1951
        %v2284 = vunpack.c.l.b16 %v1952
        %v2285 = vunpack.c.l.b16 %v1953
        %v2286 = vpack.c.b16 %v2283, %v2282
        %v2287 = vpack.c.b16 %v2285, %v2284
        %2290 = vmatprep.subr.bf16.mxu0 0
        %2291 = vmatpush1.bf16.msra.mxu0 %v2286
        %2292 = vmatprep.subr.bf16.mxu0 0
        %2293 = vmatpush1.bf16.msra.mxu0 %v2287
        %2294 = vmatprep.subr.bf16.mxu0 0
        %2295 = vmatpush1.bf16.msra.mxu0 0
        %2296 = vmatprep.subr.bf16.mxu0 0
        %2297 = vmatpush1.bf16.msra.mxu0 0
        %2298 = vmatprep.subr.bf16.mxu0 0
        %2299 = vmatpush1.bf16.msra.mxu0 0
        %2300 = vmatprep.subr.bf16.mxu0 0
        %2301 = vmatpush1.bf16.msra.mxu0 0
        %2302 = vmatprep.subr.bf16.mxu0 0
        %2303 = vmatpush1.bf16.msra.mxu0 0
        %2304 = vmatprep.subr.bf16.mxu0 0
        %2305 = vmatpush1.bf16.msra.mxu0 0
        %2306 = vmatprep.subr.bf16.mxu0 0
        %2307 = vmatpush1.bf16.msra.mxu0 0
        %2308 = vmatprep.subr.bf16.mxu0 0
        %2309 = vmatpush1.bf16.msra.mxu0 0
        %2310 = vmatprep.subr.bf16.mxu0 0
        %2311 = vmatpush1.bf16.msra.mxu0 0
        %2312 = vmatprep.subr.bf16.mxu0 0
        %2313 = vmatpush1.bf16.msra.mxu0 0
        %2314 = vmatprep.subr.bf16.mxu0 0
        %2315 = vmatpush1.bf16.msra.mxu0 0
        %2316 = vmatprep.subr.bf16.mxu0 0
        %2317 = vmatpush1.bf16.msra.mxu0 0
        %2318 = vmatprep.subr.bf16.mxu0 0
        %2319 = vmatpush1.bf16.msra.mxu0 0
        %2320 = vmatprep.subr.bf16.mxu0 0
        %2321 = vmatpush1.bf16.msra.mxu0 0
        %2322 = vmatprep.mubr.bf16.mxu0 0
        %2323 = vmatmul.mubr.bf16.gmra.mrb[0].mxu0 %v2080
        %v2324 = vpop.f32.mrb[0].mxu0
        %v2325 = vadd.f32 %v2026, %v2324
        %v2326 = vpop.f32.mrb[0].mxu0
        %v2327 = vpop.f32.mrb[0].mxu0
        %v2328 = vpop.f32.mrb[0].mxu0
        %2329 = vdwg.mxu0
        %v2334 = vunpack.c.l.b16 %v1954
        %v2335 = vunpack.c.l.b16 %v1955
        %v2336 = vunpack.c.l.b16 %v1956
        %v2337 = vunpack.c.l.b16 %v1957
        %v2338 = vpack.c.b16 %v2335, %v2334
        %v2339 = vpack.c.b16 %v2337, %v2336
        %2342 = vmatprep.subr.bf16.mxu0 0
        %2343 = vmatpush1.bf16.msra.mxu0 %v2338
        %2344 = vmatprep.subr.bf16.mxu0 0
        %2345 = vmatpush1.bf16.msra.mxu0 %v2339
        %2346 = vmatprep.subr.bf16.mxu0 0
        %2347 = vmatpush1.bf16.msra.mxu0 0
        %2348 = vmatprep.subr.bf16.mxu0 0
        %2349 = vmatpush1.bf16.msra.mxu0 0
        %2350 = vmatprep.subr.bf16.mxu0 0
        %2351 = vmatpush1.bf16.msra.mxu0 0
        %2352 = vmatprep.subr.bf16.mxu0 0
        %2353 = vmatpush1.bf16.msra.mxu0 0
        %2354 = vmatprep.subr.bf16.mxu0 0
        %2355 = vmatpush1.bf16.msra.mxu0 0
        %2356 = vmatprep.subr.bf16.mxu0 0
        %2357 = vmatpush1.bf16.msra.mxu0 0
        %2358 = vmatprep.subr.bf16.mxu0 0
        %2359 = vmatpush1.bf16.msra.mxu0 0
        %2360 = vmatprep.subr.bf16.mxu0 0
        %2361 = vmatpush1.bf16.msra.mxu0 0
        %2362 = vmatprep.subr.bf16.mxu0 0
        %2363 = vmatpush1.bf16.msra.mxu0 0
        %2364 = vmatprep.subr.bf16.mxu0 0
        %2365 = vmatpush1.bf16.msra.mxu0 0
        %2366 = vmatprep.subr.bf16.mxu0 0
        %2367 = vmatpush1.bf16.msra.mxu0 0
        %2368 = vmatprep.subr.bf16.mxu0 0
        %2369 = vmatpush1.bf16.msra.mxu0 0
        %2370 = vmatprep.subr.bf16.mxu0 0
        %2371 = vmatpush1.bf16.msra.mxu0 0
        %2372 = vmatprep.subr.bf16.mxu0 0
        %2373 = vmatpush1.bf16.msra.mxu0 0
        %2374 = vmatprep.mubr.bf16.mxu0 0
        %2375 = vmatmul.mubr.bf16.gmra.mrb[0].mxu0 %v2080
        %v2376 = vpop.f32.mrb[0].mxu0
        %v2377 = vadd.f32 %v2030, %v2376
        %v2378 = vpop.f32.mrb[0].mxu0
        %v2379 = vpop.f32.mrb[0].mxu0
        %v2380 = vpop.f32.mrb[0].mxu0
        %2381 = vdwg.mxu0
        %v2386 = vunpack.c.l.b16 %v1958
        %v2387 = vunpack.c.l.b16 %v1959
        %v2388 = vunpack.c.l.b16 %v1960
        %v2389 = vunpack.c.l.b16 %v1961
        %v2390 = vpack.c.b16 %v2387, %v2386
        %v2391 = vpack.c.b16 %v2389, %v2388
        %2394 = vmatprep.subr.bf16.mxu0 0
        %2395 = vmatpush1.bf16.msra.mxu0 %v2390
        %2396 = vmatprep.subr.bf16.mxu0 0
        %2397 = vmatpush1.bf16.msra.mxu0 %v2391
        %2398 = vmatprep.subr.bf16.mxu0 0
        %2399 = vmatpush1.bf16.msra.mxu0 0
        %2400 = vmatprep.subr.bf16.mxu0 0
        %2401 = vmatpush1.bf16.msra.mxu0 0
        %2402 = vmatprep.subr.bf16.mxu0 0
        %2403 = vmatpush1.bf16.msra.mxu0 0
        %2404 = vmatprep.subr.bf16.mxu0 0
        %2405 = vmatpush1.bf16.msra.mxu0 0
        %2406 = vmatprep.subr.bf16.mxu0 0
        %2407 = vmatpush1.bf16.msra.mxu0 0
        %2408 = vmatprep.subr.bf16.mxu0 0
        %2409 = vmatpush1.bf16.msra.mxu0 0
        %2410 = vmatprep.subr.bf16.mxu0 0
        %2411 = vmatpush1.bf16.msra.mxu0 0
        %2412 = vmatprep.subr.bf16.mxu0 0
        %2413 = vmatpush1.bf16.msra.mxu0 0
        %2414 = vmatprep.subr.bf16.mxu0 0
        %2415 = vmatpush1.bf16.msra.mxu0 0
        %2416 = vmatprep.subr.bf16.mxu0 0
        %2417 = vmatpush1.bf16.msra.mxu0 0
        %2418 = vmatprep.subr.bf16.mxu0 0
        %2419 = vmatpush1.bf16.msra.mxu0 0
        %2420 = vmatprep.subr.bf16.mxu0 0
        %2421 = vmatpush1.bf16.msra.mxu0 0
        %2422 = vmatprep.subr.bf16.mxu0 0
        %2423 = vmatpush1.bf16.msra.mxu0 0
        %2424 = vmatprep.subr.bf16.mxu0 0
        %2425 = vmatpush1.bf16.msra.mxu0 0
        %2426 = vmatprep.mubr.bf16.mxu0 0
        %2427 = vmatmul.mubr.bf16.gmra.mrb[0].mxu0 %v2080
        %v2428 = vpop.f32.mrb[0].mxu0
        %v2429 = vadd.f32 %v2034, %v2428
        %v2430 = vpop.f32.mrb[0].mxu0
        %v2431 = vpop.f32.mrb[0].mxu0
        %v2432 = vpop.f32.mrb[0].mxu0
        %2433 = vdwg.mxu0
        %v2438 = vunpack.c.l.b16 %v1962
        %v2439 = vunpack.c.l.b16 %v1963
        %v2440 = vunpack.c.l.b16 %v1964
        %v2441 = vunpack.c.l.b16 %v1965
        %v2442 = vpack.c.b16 %v2439, %v2438
        %v2443 = vpack.c.b16 %v2441, %v2440
        %2446 = vmatprep.subr.bf16.mxu0 0
        %2447 = vmatpush1.bf16.msra.mxu0 %v2442
        %2448 = vmatprep.subr.bf16.mxu0 0
        %2449 = vmatpush1.bf16.msra.mxu0 %v2443
        %2450 = vmatprep.subr.bf16.mxu0 0
        %2451 = vmatpush1.bf16.msra.mxu0 0
        %2452 = vmatprep.subr.bf16.mxu0 0
        %2453 = vmatpush1.bf16.msra.mxu0 0
        %2454 = vmatprep.subr.bf16.mxu0 0
        %2455 = vmatpush1.bf16.msra.mxu0 0
        %2456 = vmatprep.subr.bf16.mxu0 0
        %2457 = vmatpush1.bf16.msra.mxu0 0
        %2458 = vmatprep.subr.bf16.mxu0 0
        %2459 = vmatpush1.bf16.msra.mxu0 0
        %2460 = vmatprep.subr.bf16.mxu0 0
        %2461 = vmatpush1.bf16.msra.mxu0 0
        %2462 = vmatprep.subr.bf16.mxu0 0
        %2463 = vmatpush1.bf16.msra.mxu0 0
        %2464 = vmatprep.subr.bf16.mxu0 0
        %2465 = vmatpush1.bf16.msra.mxu0 0
        %2466 = vmatprep.subr.bf16.mxu0 0
        %2467 = vmatpush1.bf16.msra.mxu0 0
        %2468 = vmatprep.subr.bf16.mxu0 0
        %2469 = vmatpush1.bf16.msra.mxu0 0
        %2470 = vmatprep.subr.bf16.mxu0 0
        %2471 = vmatpush1.bf16.msra.mxu0 0
        %2472 = vmatprep.subr.bf16.mxu0 0
        %2473 = vmatpush1.bf16.msra.mxu0 0
        %2474 = vmatprep.subr.bf16.mxu0 0
        %2475 = vmatpush1.bf16.msra.mxu0 0
        %2476 = vmatprep.subr.bf16.mxu0 0
        %2477 = vmatpush1.bf16.msra.mxu0 0
        %2478 = vmatprep.mubr.bf16.mxu0 0
        %2479 = vmatmul.mubr.bf16.gmra.mrb[0].mxu0 %v2080
        %v2480 = vpop.f32.mrb[0].mxu0
        %v2481 = vadd.f32 %v2038, %v2480
        %v2482 = vpop.f32.mrb[0].mxu0
        %v2483 = vpop.f32.mrb[0].mxu0
        %v2484 = vpop.f32.mrb[0].mxu0
        %2485 = vdwg.mxu0
        %v2490 = vunpack.c.l.b16 %v1966
        %v2491 = vunpack.c.l.b16 %v1967
        %v2492 = vunpack.c.l.b16 %v1968
        %v2493 = vunpack.c.l.b16 %v1969
        %v2494 = vpack.c.b16 %v2491, %v2490
        %v2495 = vpack.c.b16 %v2493, %v2492
        %2498 = vmatprep.subr.bf16.mxu0 0
        %2499 = vmatpush1.bf16.msra.mxu0 %v2494
        %2500 = vmatprep.subr.bf16.mxu0 0
        %2501 = vmatpush1.bf16.msra.mxu0 %v2495
        %2502 = vmatprep.subr.bf16.mxu0 0
        %2503 = vmatpush1.bf16.msra.mxu0 0
        %2504 = vmatprep.subr.bf16.mxu0 0
        %2505 = vmatpush1.bf16.msra.mxu0 0
        %2506 = vmatprep.subr.bf16.mxu0 0
        %2507 = vmatpush1.bf16.msra.mxu0 0
        %2508 = vmatprep.subr.bf16.mxu0 0
        %2509 = vmatpush1.bf16.msra.mxu0 0
        %2510 = vmatprep.subr.bf16.mxu0 0
        %2511 = vmatpush1.bf16.msra.mxu0 0
        %2512 = vmatprep.subr.bf16.mxu0 0
        %2513 = vmatpush1.bf16.msra.mxu0 0
        %2514 = vmatprep.subr.bf16.mxu0 0
        %2515 = vmatpush1.bf16.msra.mxu0 0
        %2516 = vmatprep.subr.bf16.mxu0 0
        %2517 = vmatpush1.bf16.msra.mxu0 0
        %2518 = vmatprep.subr.bf16.mxu0 0
        %2519 = vmatpush1.bf16.msra.mxu0 0
        %2520 = vmatprep.subr.bf16.mxu0 0
        %2521 = vmatpush1.bf16.msra.mxu0 0
        %2522 = vmatprep.subr.bf16.mxu0 0
        %2523 = vmatpush1.bf16.msra.mxu0 0
        %2524 = vmatprep.subr.bf16.mxu0 0
        %2525 = vmatpush1.bf16.msra.mxu0 0
        %2526 = vmatprep.subr.bf16.mxu0 0
        %2527 = vmatpush1.bf16.msra.mxu0 0
        %2528 = vmatprep.subr.bf16.mxu0 0
        %2529 = vmatpush1.bf16.msra.mxu0 0
        %2530 = vmatprep.mubr.bf16.mxu0 0
        %2531 = vmatmul.mubr.bf16.gmra.mrb[0].mxu0 %v2080
        %v2532 = vpop.f32.mrb[0].mxu0
        %v2533 = vadd.f32 %v2042, %v2532
        %v2534 = vpop.f32.mrb[0].mxu0
        %v2535 = vpop.f32.mrb[0].mxu0
        %v2536 = vpop.f32.mrb[0].mxu0
        %2537 = vdwg.mxu0
        %v2542 = vunpack.c.l.b16 %v1970
        %v2543 = vunpack.c.l.b16 %v1971
        %v2544 = vunpack.c.l.b16 %v1972
        %v2545 = vunpack.c.l.b16 %v1973
        %v2546 = vpack.c.b16 %v2543, %v2542
        %v2547 = vpack.c.b16 %v2545, %v2544
        %2550 = vmatprep.subr.bf16.mxu0 0
        %2551 = vmatpush1.bf16.msra.mxu0 %v2546
        %2552 = vmatprep.subr.bf16.mxu0 0
        %2553 = vmatpush1.bf16.msra.mxu0 %v2547
        %2554 = vmatprep.subr.bf16.mxu0 0
        %2555 = vmatpush1.bf16.msra.mxu0 0
        %2556 = vmatprep.subr.bf16.mxu0 0
        %2557 = vmatpush1.bf16.msra.mxu0 0
        %2558 = vmatprep.subr.bf16.mxu0 0
        %2559 = vmatpush1.bf16.msra.mxu0 0
        %2560 = vmatprep.subr.bf16.mxu0 0
        %2561 = vmatpush1.bf16.msra.mxu0 0
        %2562 = vmatprep.subr.bf16.mxu0 0
        %2563 = vmatpush1.bf16.msra.mxu0 0
        %2564 = vmatprep.subr.bf16.mxu0 0
        %2565 = vmatpush1.bf16.msra.mxu0 0
        %2566 = vmatprep.subr.bf16.mxu0 0
        %2567 = vmatpush1.bf16.msra.mxu0 0
        %2568 = vmatprep.subr.bf16.mxu0 0
        %2569 = vmatpush1.bf16.msra.mxu0 0
        %2570 = vmatprep.subr.bf16.mxu0 0
        %2571 = vmatpush1.bf16.msra.mxu0 0
        %2572 = vmatprep.subr.bf16.mxu0 0
        %2573 = vmatpush1.bf16.msra.mxu0 0
        %2574 = vmatprep.subr.bf16.mxu0 0
        %2575 = vmatpush1.bf16.msra.mxu0 0
        %2576 = vmatprep.subr.bf16.mxu0 0
        %2577 = vmatpush1.bf16.msra.mxu0 0
        %2578 = vmatprep.subr.bf16.mxu0 0
        %2579 = vmatpush1.bf16.msra.mxu0 0
        %2580 = vmatprep.subr.bf16.mxu0 0
        %2581 = vmatpush1.bf16.msra.mxu0 0
        %2582 = vmatprep.mubr.bf16.mxu0 0
        %2583 = vmatmul.mubr.bf16.gmra.mrb[0].mxu0 %v2080
        %v2584 = vpop.f32.mrb[0].mxu0
        %v2585 = vadd.f32 %v2046, %v2584
        %v2586 = vpop.f32.mrb[0].mxu0
        %v2587 = vpop.f32.mrb[0].mxu0
        %v2588 = vpop.f32.mrb[0].mxu0
        %2589 = vdwg.mxu0
        %v2594 = vunpack.c.l.b16 %v1974
        %v2595 = vunpack.c.l.b16 %v1975
        %v2596 = vunpack.c.l.b16 %v1976
        %v2597 = vunpack.c.l.b16 %v1977
        %v2598 = vpack.c.b16 %v2595, %v2594
        %v2599 = vpack.c.b16 %v2597, %v2596
        %2602 = vmatprep.subr.bf16.mxu0 0
        %2603 = vmatpush1.bf16.msra.mxu0 %v2598
        %2604 = vmatprep.subr.bf16.mxu0 0
        %2605 = vmatpush1.bf16.msra.mxu0 %v2599
        %2606 = vmatprep.subr.bf16.mxu0 0
        %2607 = vmatpush1.bf16.msra.mxu0 0
        %2608 = vmatprep.subr.bf16.mxu0 0
        %2609 = vmatpush1.bf16.msra.mxu0 0
        %2610 = vmatprep.subr.bf16.mxu0 0
        %2611 = vmatpush1.bf16.msra.mxu0 0
        %2612 = vmatprep.subr.bf16.mxu0 0
        %2613 = vmatpush1.bf16.msra.mxu0 0
        %2614 = vmatprep.subr.bf16.mxu0 0
        %2615 = vmatpush1.bf16.msra.mxu0 0
        %2616 = vmatprep.subr.bf16.mxu0 0
        %2617 = vmatpush1.bf16.msra.mxu0 0
        %2618 = vmatprep.subr.bf16.mxu0 0
        %2619 = vmatpush1.bf16.msra.mxu0 0
        %2620 = vmatprep.subr.bf16.mxu0 0
        %2621 = vmatpush1.bf16.msra.mxu0 0
        %2622 = vmatprep.subr.bf16.mxu0 0
        %2623 = vmatpush1.bf16.msra.mxu0 0
        %2624 = vmatprep.subr.bf16.mxu0 0
        %2625 = vmatpush1.bf16.msra.mxu0 0
        %2626 = vmatprep.subr.bf16.mxu0 0
        %2627 = vmatpush1.bf16.msra.mxu0 0
        %2628 = vmatprep.subr.bf16.mxu0 0
        %2629 = vmatpush1.bf16.msra.mxu0 0
        %2630 = vmatprep.subr.bf16.mxu0 0
        %2631 = vmatpush1.bf16.msra.mxu0 0
        %2632 = vmatprep.subr.bf16.mxu0 0
        %2633 = vmatpush1.bf16.msra.mxu0 0
        %2634 = vmatprep.mubr.bf16.mxu0 0
        %2635 = vmatmul.mubr.bf16.gmra.mrb[0].mxu0 %v2080
        %v2636 = vpop.f32.mrb[0].mxu0
        %v2637 = vadd.f32 %v2050, %v2636
        %v2638 = vpop.f32.mrb[0].mxu0
        %v2639 = vpop.f32.mrb[0].mxu0
        %v2640 = vpop.f32.mrb[0].mxu0
        %2641 = vdwg.mxu0
        %v2646 = vunpack.c.l.b16 %v1978
        %v2647 = vunpack.c.l.b16 %v1979
        %v2648 = vunpack.c.l.b16 %v1980
        %v2649 = vunpack.c.l.b16 %v1981
        %v2650 = vpack.c.b16 %v2647, %v2646
        %v2651 = vpack.c.b16 %v2649, %v2648
        %2654 = vmatprep.subr.bf16.mxu0 0
        %2655 = vmatpush1.bf16.msra.mxu0 %v2650
        %2656 = vmatprep.subr.bf16.mxu0 0
        %2657 = vmatpush1.bf16.msra.mxu0 %v2651
        %2658 = vmatprep.subr.bf16.mxu0 0
        %2659 = vmatpush1.bf16.msra.mxu0 0
        %2660 = vmatprep.subr.bf16.mxu0 0
        %2661 = vmatpush1.bf16.msra.mxu0 0
        %2662 = vmatprep.subr.bf16.mxu0 0
        %2663 = vmatpush1.bf16.msra.mxu0 0
        %2664 = vmatprep.subr.bf16.mxu0 0
        %2665 = vmatpush1.bf16.msra.mxu0 0
        %2666 = vmatprep.subr.bf16.mxu0 0
        %2667 = vmatpush1.bf16.msra.mxu0 0
        %2668 = vmatprep.subr.bf16.mxu0 0
        %2669 = vmatpush1.bf16.msra.mxu0 0
        %2670 = vmatprep.subr.bf16.mxu0 0
        %2671 = vmatpush1.bf16.msra.mxu0 0
        %2672 = vmatprep.subr.bf16.mxu0 0
        %2673 = vmatpush1.bf16.msra.mxu0 0
        %2674 = vmatprep.subr.bf16.mxu0 0
        %2675 = vmatpush1.bf16.msra.mxu0 0
        %2676 = vmatprep.subr.bf16.mxu0 0
        %2677 = vmatpush1.bf16.msra.mxu0 0
        %2678 = vmatprep.subr.bf16.mxu0 0
        %2679 = vmatpush1.bf16.msra.mxu0 0
        %2680 = vmatprep.subr.bf16.mxu0 0
        %2681 = vmatpush1.bf16.msra.mxu0 0
        %2682 = vmatprep.subr.bf16.mxu0 0
        %2683 = vmatpush1.bf16.msra.mxu0 0
        %2684 = vmatprep.subr.bf16.mxu0 0
        %2685 = vmatpush1.bf16.msra.mxu0 0
        %2686 = vmatprep.mubr.bf16.mxu0 0
        %2687 = vmatmul.mubr.bf16.gmra.mrb[0].mxu0 %v2080
        %v2688 = vpop.f32.mrb[0].mxu0
        %v2689 = vadd.f32 %v2054, %v2688
        %v2690 = vpop.f32.mrb[0].mxu0
        %v2691 = vpop.f32.mrb[0].mxu0
        %v2692 = vpop.f32.mrb[0].mxu0
        %2693 = vdwg.mxu0
        %v2694 = vpack.c.bf16 %v2117, %v2117
        %v2695 = vpack.c.bf16 %v2169, %v2169
        %v2696 = vpack.c.bf16 %v2221, %v2221
        %v2697 = vpack.c.bf16 %v2273, %v2273
        %v2698 = vpack.c.bf16 %v2325, %v2325
        %v2699 = vpack.c.bf16 %v2377, %v2377
        %v2700 = vpack.c.bf16 %v2429, %v2429
        %v2701 = vpack.c.bf16 %v2481, %v2481
        %v2703 = vsel %vm1117, %v2694, 0
        %v2706 = vsel %vm1117, %v2698, 0
        %2708 = vmatprep.subr.bf16.mxu0 0
        %2709 = vmatpush1.bf16.xpose.msra.mxu0 %v2706
        %2710 = vmatprep.subr.bf16.mxu0 0
        %2711 = vmatpush1.bf16.xpose.msra.mxu0 0
        %2712 = vmatprep.subr.bf16.mxu0 0
        %2713 = vmatpush1.bf16.xpose.msra.mxu0 0
        %2714 = vmatprep.subr.bf16.mxu0 0
        %2715 = vmatpush1.bf16.xpose.msra.mxu0 0
        %2716 = vmatprep.subr.bf16.mxu0 0
        %2717 = vmatpush1.bf16.xpose.msra.mxu0 0
        %2718 = vmatprep.subr.bf16.mxu0 0
        %2719 = vmatpush1.bf16.xpose.msra.mxu0 0
        %2720 = vmatprep.subr.bf16.mxu0 0
        %2721 = vmatpush1.bf16.xpose.msra.mxu0 0
        %2722 = vmatprep.subr.bf16.mxu0 0
        %2723 = vmatpush1.bf16.xpose.msra.mxu0 0
        %2724 = vmatprep.subr.bf16.mxu0 0
        %2725 = vmatpush1.bf16.xpose.msra.mxu0 0
        %2726 = vmatprep.subr.bf16.mxu0 0
        %2727 = vmatpush1.bf16.xpose.msra.mxu0 0
        %2728 = vmatprep.subr.bf16.mxu0 0
        %2729 = vmatpush1.bf16.xpose.msra.mxu0 0
        %2730 = vmatprep.subr.bf16.mxu0 0
        %2731 = vmatpush1.bf16.xpose.msra.mxu0 0
        %2732 = vmatprep.subr.bf16.mxu0 0
        %2733 = vmatpush1.bf16.xpose.msra.mxu0 0
        %2734 = vmatprep.subr.bf16.mxu0 0
        %2735 = vmatpush1.bf16.xpose.msra.mxu0 0
        %2736 = vmatprep.subr.bf16.mxu0 0
        %2737 = vmatpush1.bf16.xpose.msra.mxu0 0
        %2738 = vmatprep.subr.bf16.mxu0 0
        %2739 = vmatpush1.bf16.xpose.msra.mxu0 0
        %2740 = vmatprep.mubr.bf16.mxu0 0
        %2741 = vmatmul.mubr.bf16.gmra.mrb[0].mxu0 %v2703
        %v2742 = vpop.f32.mrb[0].mxu0
        %v2743 = vadd.f32 0.0, %v2742
        %v2744 = vpop.f32.mrb[0].mxu0
        %v2745 = vpop.f32.mrb[0].mxu0
        %v2746 = vpop.f32.mrb[0].mxu0
        %2747 = vdwg.mxu0
        %v2749 = vsel %vm1117, %v2695, 0
        %v2752 = vsel %vm1117, %v2699, 0
        %2754 = vmatprep.subr.bf16.mxu0 0
        %2755 = vmatpush1.bf16.xpose.msra.mxu0 %v2752
        %2756 = vmatprep.subr.bf16.mxu0 0
        %2757 = vmatpush1.bf16.xpose.msra.mxu0 0
        %2758 = vmatprep.subr.bf16.mxu0 0
        %2759 = vmatpush1.bf16.xpose.msra.mxu0 0
        %2760 = vmatprep.subr.bf16.mxu0 0
        %2761 = vmatpush1.bf16.xpose.msra.mxu0 0
        %2762 = vmatprep.subr.bf16.mxu0 0
        %2763 = vmatpush1.bf16.xpose.msra.mxu0 0
        %2764 = vmatprep.subr.bf16.mxu0 0
        %2765 = vmatpush1.bf16.xpose.msra.mxu0 0
        %2766 = vmatprep.subr.bf16.mxu0 0
        %2767 = vmatpush1.bf16.xpose.msra.mxu0 0
        %2768 = vmatprep.subr.bf16.mxu0 0
        %2769 = vmatpush1.bf16.xpose.msra.mxu0 0
        %2770 = vmatprep.subr.bf16.mxu0 0
        %2771 = vmatpush1.bf16.xpose.msra.mxu0 0
        %2772 = vmatprep.subr.bf16.mxu0 0
        %2773 = vmatpush1.bf16.xpose.msra.mxu0 0
        %2774 = vmatprep.subr.bf16.mxu0 0
        %2775 = vmatpush1.bf16.xpose.msra.mxu0 0
        %2776 = vmatprep.subr.bf16.mxu0 0
        %2777 = vmatpush1.bf16.xpose.msra.mxu0 0
        %2778 = vmatprep.subr.bf16.mxu0 0
        %2779 = vmatpush1.bf16.xpose.msra.mxu0 0
        %2780 = vmatprep.subr.bf16.mxu0 0
        %2781 = vmatpush1.bf16.xpose.msra.mxu0 0
        %2782 = vmatprep.subr.bf16.mxu0 0
        %2783 = vmatpush1.bf16.xpose.msra.mxu0 0
        %2784 = vmatprep.subr.bf16.mxu0 0
        %2785 = vmatpush1.bf16.xpose.msra.mxu0 0
        %2786 = vmatprep.mubr.bf16.mxu0 0
        %2787 = vmatmul.mubr.bf16.gmra.mrb[0].mxu0 %v2749
        %v2788 = vpop.f32.mrb[0].mxu0
        %v2789 = vadd.f32 0.0, %v2788
        %v2790 = vpop.f32.mrb[0].mxu0
        %v2791 = vpop.f32.mrb[0].mxu0
        %v2792 = vpop.f32.mrb[0].mxu0
        %2793 = vdwg.mxu0
        %v2795 = vsel %vm1117, %v2696, 0
        %v2798 = vsel %vm1117, %v2700, 0
        %2800 = vmatprep.subr.bf16.mxu0 0
        %2801 = vmatpush1.bf16.xpose.msra.mxu0 %v2798
        %2802 = vmatprep.subr.bf16.mxu0 0
        %2803 = vmatpush1.bf16.xpose.msra.mxu0 0
        %2804 = vmatprep.subr.bf16.mxu0 0
        %2805 = vmatpush1.bf16.xpose.msra.mxu0 0
        %2806 = vmatprep.subr.bf16.mxu0 0
        %2807 = vmatpush1.bf16.xpose.msra.mxu0 0
        %2808 = vmatprep.subr.bf16.mxu0 0
        %2809 = vmatpush1.bf16.xpose.msra.mxu0 0
        %2810 = vmatprep.subr.bf16.mxu0 0
        %2811 = vmatpush1.bf16.xpose.msra.mxu0 0
        %2812 = vmatprep.subr.bf16.mxu0 0
        %2813 = vmatpush1.bf16.xpose.msra.mxu0 0
        %2814 = vmatprep.subr.bf16.mxu0 0
        %2815 = vmatpush1.bf16.xpose.msra.mxu0 0
        %2816 = vmatprep.subr.bf16.mxu0 0
        %2817 = vmatpush1.bf16.xpose.msra.mxu0 0
        %2818 = vmatprep.subr.bf16.mxu0 0
        %2819 = vmatpush1.bf16.xpose.msra.mxu0 0
        %2820 = vmatprep.subr.bf16.mxu0 0
        %2821 = vmatpush1.bf16.xpose.msra.mxu0 0
        %2822 = vmatprep.subr.bf16.mxu0 0
        %2823 = vmatpush1.bf16.xpose.msra.mxu0 0
        %2824 = vmatprep.subr.bf16.mxu0 0
        %2825 = vmatpush1.bf16.xpose.msra.mxu0 0
        %2826 = vmatprep.subr.bf16.mxu0 0
        %2827 = vmatpush1.bf16.xpose.msra.mxu0 0
        %2828 = vmatprep.subr.bf16.mxu0 0
        %2829 = vmatpush1.bf16.xpose.msra.mxu0 0
        %2830 = vmatprep.subr.bf16.mxu0 0
        %2831 = vmatpush1.bf16.xpose.msra.mxu0 0
        %2832 = vmatprep.mubr.bf16.mxu0 0
        %2833 = vmatmul.mubr.bf16.gmra.mrb[0].mxu0 %v2795
        %v2834 = vpop.f32.mrb[0].mxu0
        %v2835 = vadd.f32 0.0, %v2834
        %v2836 = vpop.f32.mrb[0].mxu0
        %v2837 = vpop.f32.mrb[0].mxu0
        %v2838 = vpop.f32.mrb[0].mxu0
        %2839 = vdwg.mxu0
        %v2841 = vsel %vm1117, %v2697, 0
        %v2844 = vsel %vm1117, %v2701, 0
        %2846 = vmatprep.subr.bf16.mxu0 0
        %2847 = vmatpush1.bf16.xpose.msra.mxu0 %v2844
        %2848 = vmatprep.subr.bf16.mxu0 0
        %2849 = vmatpush1.bf16.xpose.msra.mxu0 0
        %2850 = vmatprep.subr.bf16.mxu0 0
        %2851 = vmatpush1.bf16.xpose.msra.mxu0 0
        %2852 = vmatprep.subr.bf16.mxu0 0
        %2853 = vmatpush1.bf16.xpose.msra.mxu0 0
        %2854 = vmatprep.subr.bf16.mxu0 0
        %2855 = vmatpush1.bf16.xpose.msra.mxu0 0
        %2856 = vmatprep.subr.bf16.mxu0 0
        %2857 = vmatpush1.bf16.xpose.msra.mxu0 0
        %2858 = vmatprep.subr.bf16.mxu0 0
        %2859 = vmatpush1.bf16.xpose.msra.mxu0 0
        %2860 = vmatprep.subr.bf16.mxu0 0
        %2861 = vmatpush1.bf16.xpose.msra.mxu0 0
        %2862 = vmatprep.subr.bf16.mxu0 0
        %2863 = vmatpush1.bf16.xpose.msra.mxu0 0
        %2864 = vmatprep.subr.bf16.mxu0 0
        %2865 = vmatpush1.bf16.xpose.msra.mxu0 0
        %2866 = vmatprep.subr.bf16.mxu0 0
        %2867 = vmatpush1.bf16.xpose.msra.mxu0 0
        %2868 = vmatprep.subr.bf16.mxu0 0
        %2869 = vmatpush1.bf16.xpose.msra.mxu0 0
        %2870 = vmatprep.subr.bf16.mxu0 0
        %2871 = vmatpush1.bf16.xpose.msra.mxu0 0
        %2872 = vmatprep.subr.bf16.mxu0 0
        %2873 = vmatpush1.bf16.xpose.msra.mxu0 0
        %2874 = vmatprep.subr.bf16.mxu0 0
        %2875 = vmatpush1.bf16.xpose.msra.mxu0 0
        %2876 = vmatprep.subr.bf16.mxu0 0
        %2877 = vmatpush1.bf16.xpose.msra.mxu0 0
        %2878 = vmatprep.mubr.bf16.mxu0 0
        %2879 = vmatmul.mubr.bf16.gmra.mrb[0].mxu0 %v2841
        %v2880 = vpop.f32.mrb[0].mxu0
        %v2881 = vadd.f32 0.0, %v2880
        %v2882 = vpop.f32.mrb[0].mxu0
        %v2883 = vpop.f32.mrb[0].mxu0
        %v2884 = vpop.f32.mrb[0].mxu0
        %2885 = vdwg.mxu0
        %v2886 = vmul.f32 %v2743, 0.35355338
        %v2887 = vmul.f32 %v2789, 0.35355338
        %v2888 = vmul.f32 %v2835, 0.35355338
        %v2889 = vmul.f32 %v2881, 0.35355338
        %v2890 = vsel %vm1117, %v2886, -inf
        %2891 = vmax.xlane.f32.xlu0 %v2890
        %v2892 = vpop.xlane.xlu0 %2891
        %v2893 = vsel %vm1117, %v2887, -inf
        %2894 = vmax.xlane.f32.xlu0 %v2893
        %v2895 = vpop.xlane.xlu0 %2894
        %v2896 = vsel %vm1117, %v2888, -inf
        %2897 = vmax.xlane.f32.xlu0 %v2896
        %v2898 = vpop.xlane.xlu0 %2897
        %v2899 = vsel %vm1117, %v2889, -inf
        %2900 = vmax.xlane.f32.xlu0 %v2899
        %v2901 = vpop.xlane.xlu0 %2900
        %v2902 = vsub.f32 %v2886, %v2892
        %v2903 = vsub.f32 %v2887, %v2895
        %v2904 = vsub.f32 %v2888, %v2898
        %v2905 = vsub.f32 %v2889, %v2901
        %v2906 = vmul.f32 %v2902, 1.442695
        %v2907 = vpow.pop %v2906
        %v2908 = vmul.f32 %v2903, 1.442695
        %v2909 = vpow.pop %v2908
        %v2910 = vmul.f32 %v2904, 1.442695
        %v2911 = vpow.pop %v2910
        %v2912 = vmul.f32 %v2905, 1.442695
        %v2913 = vpow.pop %v2912
        %v2914 = vsel %vm1117, %v2907, 0.0
        %2915 = vadd.xlane.f32.xlu0 %v2914
        %v2916 = vpop.xlane.xlu0 %2915
        %v2917 = vsel %vm1117, %v2909, 0.0
        %2918 = vadd.xlane.f32.xlu0 %v2917
        %v2919 = vpop.xlane.xlu0 %2918
        %v2920 = vsel %vm1117, %v2911, 0.0
        %2921 = vadd.xlane.f32.xlu0 %v2920
        %v2922 = vpop.xlane.xlu0 %2921
        %v2923 = vsel %vm1117, %v2913, 0.0
        %2924 = vadd.xlane.f32.xlu0 %v2923
        %v2925 = vpop.xlane.xlu0 %2924
        %v2926 = vrcp.pop %v2916
        %v2927 = vrcp.pop %v2919
        %v2928 = vrcp.pop %v2922
        %v2929 = vrcp.pop %v2925
        %v2930 = vmul.f32 %v2907, %v2926
        %v2931 = vmul.f32 %v2909, %v2927
        %v2932 = vmul.f32 %v2911, %v2928
        %v2933 = vmul.f32 %v2913, %v2929
        %v2934 = vpack.c.bf16 %v2930, %v2930
        %v2935 = vpack.c.bf16 %v2931, %v2931
        %v2936 = vpack.c.bf16 %v2932, %v2932
        %v2937 = vpack.c.bf16 %v2933, %v2933
        %v2938 = vpack.c.bf16 %v2533, %v2533
        %v2939 = vpack.c.bf16 %v2585, %v2585
        %v2940 = vpack.c.bf16 %v2637, %v2637
        %v2941 = vpack.c.bf16 %v2689, %v2689
        %v2943 = vsel %vm1117, %v2934, 0
        %v2946 = vsel %vm1361, %v2938, 0
        %2948 = vmatprep.subr.bf16.mxu0 0
        %2949 = vmatpush1.bf16.msra.mxu0 %v2946
        %2950 = vmatprep.subr.bf16.mxu0 0
        %2951 = vmatpush1.bf16.msra.mxu0 0
        %2952 = vmatprep.subr.bf16.mxu0 0
        %2953 = vmatpush1.bf16.msra.mxu0 0
        %2954 = vmatprep.subr.bf16.mxu0 0
        %2955 = vmatpush1.bf16.msra.mxu0 0
        %2956 = vmatprep.subr.bf16.mxu0 0
        %2957 = vmatpush1.bf16.msra.mxu0 0
        %2958 = vmatprep.subr.bf16.mxu0 0
        %2959 = vmatpush1.bf16.msra.mxu0 0
        %2960 = vmatprep.subr.bf16.mxu0 0
        %2961 = vmatpush1.bf16.msra.mxu0 0
        %2962 = vmatprep.subr.bf16.mxu0 0
        %2963 = vmatpush1.bf16.msra.mxu0 0
        %2964 = vmatprep.subr.bf16.mxu0 0
        %2965 = vmatpush1.bf16.msra.mxu0 0
        %2966 = vmatprep.subr.bf16.mxu0 0
        %2967 = vmatpush1.bf16.msra.mxu0 0
        %2968 = vmatprep.subr.bf16.mxu0 0
        %2969 = vmatpush1.bf16.msra.mxu0 0
        %2970 = vmatprep.subr.bf16.mxu0 0
        %2971 = vmatpush1.bf16.msra.mxu0 0
        %2972 = vmatprep.subr.bf16.mxu0 0
        %2973 = vmatpush1.bf16.msra.mxu0 0
        %2974 = vmatprep.subr.bf16.mxu0 0
        %2975 = vmatpush1.bf16.msra.mxu0 0
        %2976 = vmatprep.subr.bf16.mxu0 0
        %2977 = vmatpush1.bf16.msra.mxu0 0
        %2978 = vmatprep.subr.bf16.mxu0 0
        %2979 = vmatpush1.bf16.msra.mxu0 0
        %2980 = vmatprep.mubr.bf16.mxu0 0
        %2981 = vmatmul.mubr.bf16.gmra.mrb[0].mxu0 %v2943
        %v2982 = vpop.f32.mrb[0].mxu0
        %v2983 = vadd.f32 0.0, %v2982
        %v2984 = vpop.f32.mrb[0].mxu0
        %v2985 = vpop.f32.mrb[0].mxu0
        %v2986 = vpop.f32.mrb[0].mxu0
        %2987 = vdwg.mxu0
        %v2989 = vsel %vm1117, %v2935, 0
        %v2992 = vsel %vm1361, %v2939, 0
        %2994 = vmatprep.subr.bf16.mxu0 0
        %2995 = vmatpush1.bf16.msra.mxu0 %v2992
        %2996 = vmatprep.subr.bf16.mxu0 0
        %2997 = vmatpush1.bf16.msra.mxu0 0
        %2998 = vmatprep.subr.bf16.mxu0 0
        %2999 = vmatpush1.bf16.msra.mxu0 0
        %3000 = vmatprep.subr.bf16.mxu0 0
        %3001 = vmatpush1.bf16.msra.mxu0 0
        %3002 = vmatprep.subr.bf16.mxu0 0
        %3003 = vmatpush1.bf16.msra.mxu0 0
        %3004 = vmatprep.subr.bf16.mxu0 0
        %3005 = vmatpush1.bf16.msra.mxu0 0
        %3006 = vmatprep.subr.bf16.mxu0 0
        %3007 = vmatpush1.bf16.msra.mxu0 0
        %3008 = vmatprep.subr.bf16.mxu0 0
        %3009 = vmatpush1.bf16.msra.mxu0 0
        %3010 = vmatprep.subr.bf16.mxu0 0
        %3011 = vmatpush1.bf16.msra.mxu0 0
        %3012 = vmatprep.subr.bf16.mxu0 0
        %3013 = vmatpush1.bf16.msra.mxu0 0
        %3014 = vmatprep.subr.bf16.mxu0 0
        %3015 = vmatpush1.bf16.msra.mxu0 0
        %3016 = vmatprep.subr.bf16.mxu0 0
        %3017 = vmatpush1.bf16.msra.mxu0 0
        %3018 = vmatprep.subr.bf16.mxu0 0
        %3019 = vmatpush1.bf16.msra.mxu0 0
        %3020 = vmatprep.subr.bf16.mxu0 0
        %3021 = vmatpush1.bf16.msra.mxu0 0
        %3022 = vmatprep.subr.bf16.mxu0 0
        %3023 = vmatpush1.bf16.msra.mxu0 0
        %3024 = vmatprep.subr.bf16.mxu0 0
        %3025 = vmatpush1.bf16.msra.mxu0 0
        %3026 = vmatprep.mubr.bf16.mxu0 0
        %3027 = vmatmul.mubr.bf16.gmra.mrb[0].mxu0 %v2989
        %v3028 = vpop.f32.mrb[0].mxu0
        %v3029 = vadd.f32 0.0, %v3028
        %v3030 = vpop.f32.mrb[0].mxu0
        %v3031 = vpop.f32.mrb[0].mxu0
        %v3032 = vpop.f32.mrb[0].mxu0
        %3033 = vdwg.mxu0
        %v3035 = vsel %vm1117, %v2936, 0
        %v3038 = vsel %vm1361, %v2940, 0
        %3040 = vmatprep.subr.bf16.mxu0 0
        %3041 = vmatpush1.bf16.msra.mxu0 %v3038
        %3042 = vmatprep.subr.bf16.mxu0 0
        %3043 = vmatpush1.bf16.msra.mxu0 0
        %3044 = vmatprep.subr.bf16.mxu0 0
        %3045 = vmatpush1.bf16.msra.mxu0 0
        %3046 = vmatprep.subr.bf16.mxu0 0
        %3047 = vmatpush1.bf16.msra.mxu0 0
        %3048 = vmatprep.subr.bf16.mxu0 0
        %3049 = vmatpush1.bf16.msra.mxu0 0
        %3050 = vmatprep.subr.bf16.mxu0 0
        %3051 = vmatpush1.bf16.msra.mxu0 0
        %3052 = vmatprep.subr.bf16.mxu0 0
        %3053 = vmatpush1.bf16.msra.mxu0 0
        %3054 = vmatprep.subr.bf16.mxu0 0
        %3055 = vmatpush1.bf16.msra.mxu0 0
        %3056 = vmatprep.subr.bf16.mxu0 0
        %3057 = vmatpush1.bf16.msra.mxu0 0
        %3058 = vmatprep.subr.bf16.mxu0 0
        %3059 = vmatpush1.bf16.msra.mxu0 0
        %3060 = vmatprep.subr.bf16.mxu0 0
        %3061 = vmatpush1.bf16.msra.mxu0 0
        %3062 = vmatprep.subr.bf16.mxu0 0
        %3063 = vmatpush1.bf16.msra.mxu0 0
        %3064 = vmatprep.subr.bf16.mxu0 0
        %3065 = vmatpush1.bf16.msra.mxu0 0
        %3066 = vmatprep.subr.bf16.mxu0 0
        %3067 = vmatpush1.bf16.msra.mxu0 0
        %3068 = vmatprep.subr.bf16.mxu0 0
        %3069 = vmatpush1.bf16.msra.mxu0 0
        %3070 = vmatprep.subr.bf16.mxu0 0
        %3071 = vmatpush1.bf16.msra.mxu0 0
        %3072 = vmatprep.mubr.bf16.mxu0 0
        %3073 = vmatmul.mubr.bf16.gmra.mrb[0].mxu0 %v3035
        %v3074 = vpop.f32.mrb[0].mxu0
        %v3075 = vadd.f32 0.0, %v3074
        %v3076 = vpop.f32.mrb[0].mxu0
        %v3077 = vpop.f32.mrb[0].mxu0
        %v3078 = vpop.f32.mrb[0].mxu0
        %3079 = vdwg.mxu0
        %v3081 = vsel %vm1117, %v2937, 0
        %v3084 = vsel %vm1361, %v2941, 0
        %3086 = vmatprep.subr.bf16.mxu0 0
        %3087 = vmatpush1.bf16.msra.mxu0 %v3084
        %3088 = vmatprep.subr.bf16.mxu0 0
        %3089 = vmatpush1.bf16.msra.mxu0 0
        %3090 = vmatprep.subr.bf16.mxu0 0
        %3091 = vmatpush1.bf16.msra.mxu0 0
        %3092 = vmatprep.subr.bf16.mxu0 0
        %3093 = vmatpush1.bf16.msra.mxu0 0
        %3094 = vmatprep.subr.bf16.mxu0 0
        %3095 = vmatpush1.bf16.msra.mxu0 0
        %3096 = vmatprep.subr.bf16.mxu0 0
        %3097 = vmatpush1.bf16.msra.mxu0 0
        %3098 = vmatprep.subr.bf16.mxu0 0
        %3099 = vmatpush1.bf16.msra.mxu0 0
        %3100 = vmatprep.subr.bf16.mxu0 0
        %3101 = vmatpush1.bf16.msra.mxu0 0
        %3102 = vmatprep.subr.bf16.mxu0 0
        %3103 = vmatpush1.bf16.msra.mxu0 0
        %3104 = vmatprep.subr.bf16.mxu0 0
        %3105 = vmatpush1.bf16.msra.mxu0 0
        %3106 = vmatprep.subr.bf16.mxu0 0
        %3107 = vmatpush1.bf16.msra.mxu0 0
        %3108 = vmatprep.subr.bf16.mxu0 0
        %3109 = vmatpush1.bf16.msra.mxu0 0
        %3110 = vmatprep.subr.bf16.mxu0 0
        %3111 = vmatpush1.bf16.msra.mxu0 0
        %3112 = vmatprep.subr.bf16.mxu0 0
        %3113 = vmatpush1.bf16.msra.mxu0 0
        %3114 = vmatprep.subr.bf16.mxu0 0
        %3115 = vmatpush1.bf16.msra.mxu0 0
        %3116 = vmatprep.subr.bf16.mxu0 0
        %3117 = vmatpush1.bf16.msra.mxu0 0
        %3118 = vmatprep.mubr.bf16.mxu0 0
        %3119 = vmatmul.mubr.bf16.gmra.mrb[0].mxu0 %v3081
        %v3120 = vpop.f32.mrb[0].mxu0
        %v3121 = vadd.f32 0.0, %v3120
        %v3122 = vpop.f32.mrb[0].mxu0
        %v3123 = vpop.f32.mrb[0].mxu0
        %v3124 = vpop.f32.mrb[0].mxu0
        %3125 = vdwg.mxu0
        %s3126 = scalar_lea.vmem %s4, 16
        %v3127 = vld [vmem:[%s3126] sm:$0xf]
        %v3128 = vld [vmem:[%s3126 + $0x4] sm:$0xf]
        %v3129 = vld [vmem:[%s3126 + $0x8] sm:$0xf]
        %v3130 = vld [vmem:[%s3126 + $0xc] sm:$0xf]
        %v3131 = vpack.c.bf16 %v2983, %v2983
        %v3132 = vpack.c.bf16 %v3029, %v3029
        %v3133 = vpack.c.bf16 %v3075, %v3075
        %v3134 = vpack.c.bf16 %v3121, %v3121
        %v3136 = vsel %vm1117, %v3131, 0
        %v3139 = vsel %vm1361, %v3127, 0
        %3141 = vmatprep.subr.bf16.mxu0 0
        %3142 = vmatpush1.bf16.msra.mxu0 %v3139
        %3143 = vmatprep.subr.bf16.mxu0 0
        %3144 = vmatpush1.bf16.msra.mxu0 0
        %3145 = vmatprep.subr.bf16.mxu0 0
        %3146 = vmatpush1.bf16.msra.mxu0 0
        %3147 = vmatprep.subr.bf16.mxu0 0
        %3148 = vmatpush1.bf16.msra.mxu0 0
        %3149 = vmatprep.subr.bf16.mxu0 0
        %3150 = vmatpush1.bf16.msra.mxu0 0
        %3151 = vmatprep.subr.bf16.mxu0 0
        %3152 = vmatpush1.bf16.msra.mxu0 0
        %3153 = vmatprep.subr.bf16.mxu0 0
        %3154 = vmatpush1.bf16.msra.mxu0 0
        %3155 = vmatprep.subr.bf16.mxu0 0
        %3156 = vmatpush1.bf16.msra.mxu0 0
        %3157 = vmatprep.subr.bf16.mxu0 0
        %3158 = vmatpush1.bf16.msra.mxu0 0
        %3159 = vmatprep.subr.bf16.mxu0 0
        %3160 = vmatpush1.bf16.msra.mxu0 0
        %3161 = vmatprep.subr.bf16.mxu0 0
        %3162 = vmatpush1.bf16.msra.mxu0 0
        %3163 = vmatprep.subr.bf16.mxu0 0
        %3164 = vmatpush1.bf16.msra.mxu0 0
        %3165 = vmatprep.subr.bf16.mxu0 0
        %3166 = vmatpush1.bf16.msra.mxu0 0
        %3167 = vmatprep.subr.bf16.mxu0 0
        %3168 = vmatpush1.bf16.msra.mxu0 0
        %3169 = vmatprep.subr.bf16.mxu0 0
        %3170 = vmatpush1.bf16.msra.mxu0 0
        %3171 = vmatprep.subr.bf16.mxu0 0
        %3172 = vmatpush1.bf16.msra.mxu0 0
        %3173 = vmatprep.mubr.bf16.mxu0 0
        %3174 = vmatmul.mubr.bf16.gmra.mrb[0].mxu0 %v3136
        %v3175 = vpop.f32.mrb[0].mxu0
        %v3176 = vadd.f32 0.0, %v3175
        %v3177 = vpop.f32.mrb[0].mxu0
        %v3178 = vpop.f32.mrb[0].mxu0
        %v3179 = vpop.f32.mrb[0].mxu0
        %3180 = vdwg.mxu0
        %v3182 = vsel %vm1117, %v3132, 0
        %v3185 = vsel %vm1361, %v3128, 0
        %3187 = vmatprep.subr.bf16.mxu0 0
        %3188 = vmatpush1.bf16.msra.mxu0 %v3185
        %3189 = vmatprep.subr.bf16.mxu0 0
        %3190 = vmatpush1.bf16.msra.mxu0 0
        %3191 = vmatprep.subr.bf16.mxu0 0
        %3192 = vmatpush1.bf16.msra.mxu0 0
        %3193 = vmatprep.subr.bf16.mxu0 0
        %3194 = vmatpush1.bf16.msra.mxu0 0
        %3195 = vmatprep.subr.bf16.mxu0 0
        %3196 = vmatpush1.bf16.msra.mxu0 0
        %3197 = vmatprep.subr.bf16.mxu0 0
        %3198 = vmatpush1.bf16.msra.mxu0 0
        %3199 = vmatprep.subr.bf16.mxu0 0
        %3200 = vmatpush1.bf16.msra.mxu0 0
        %3201 = vmatprep.subr.bf16.mxu0 0
        %3202 = vmatpush1.bf16.msra.mxu0 0
        %3203 = vmatprep.subr.bf16.mxu0 0
        %3204 = vmatpush1.bf16.msra.mxu0 0
        %3205 = vmatprep.subr.bf16.mxu0 0
        %3206 = vmatpush1.bf16.msra.mxu0 0
        %3207 = vmatprep.subr.bf16.mxu0 0
        %3208 = vmatpush1.bf16.msra.mxu0 0
        %3209 = vmatprep.subr.bf16.mxu0 0
        %3210 = vmatpush1.bf16.msra.mxu0 0
        %3211 = vmatprep.subr.bf16.mxu0 0
        %3212 = vmatpush1.bf16.msra.mxu0 0
        %3213 = vmatprep.subr.bf16.mxu0 0
        %3214 = vmatpush1.bf16.msra.mxu0 0
        %3215 = vmatprep.subr.bf16.mxu0 0
        %3216 = vmatpush1.bf16.msra.mxu0 0
        %3217 = vmatprep.subr.bf16.mxu0 0
        %3218 = vmatpush1.bf16.msra.mxu0 0
        %3219 = vmatprep.mubr.bf16.mxu0 0
        %3220 = vmatmul.mubr.bf16.gmra.mrb[0].mxu0 %v3182
        %v3221 = vpop.f32.mrb[0].mxu0
        %v3222 = vadd.f32 0.0, %v3221
        %v3223 = vpop.f32.mrb[0].mxu0
        %v3224 = vpop.f32.mrb[0].mxu0
        %v3225 = vpop.f32.mrb[0].mxu0
        %3226 = vdwg.mxu0
        %v3228 = vsel %vm1117, %v3133, 0
        %v3231 = vsel %vm1361, %v3129, 0
        %3233 = vmatprep.subr.bf16.mxu0 0
        %3234 = vmatpush1.bf16.msra.mxu0 %v3231
        %3235 = vmatprep.subr.bf16.mxu0 0
        %3236 = vmatpush1.bf16.msra.mxu0 0
        %3237 = vmatprep.subr.bf16.mxu0 0
        %3238 = vmatpush1.bf16.msra.mxu0 0
        %3239 = vmatprep.subr.bf16.mxu0 0
        %3240 = vmatpush1.bf16.msra.mxu0 0
        %3241 = vmatprep.subr.bf16.mxu0 0
        %3242 = vmatpush1.bf16.msra.mxu0 0
        %3243 = vmatprep.subr.bf16.mxu0 0
        %3244 = vmatpush1.bf16.msra.mxu0 0
        %3245 = vmatprep.subr.bf16.mxu0 0
        %3246 = vmatpush1.bf16.msra.mxu0 0
        %3247 = vmatprep.subr.bf16.mxu0 0
        %3248 = vmatpush1.bf16.msra.mxu0 0
        %3249 = vmatprep.subr.bf16.mxu0 0
        %3250 = vmatpush1.bf16.msra.mxu0 0
        %3251 = vmatprep.subr.bf16.mxu0 0
        %3252 = vmatpush1.bf16.msra.mxu0 0
        %3253 = vmatprep.subr.bf16.mxu0 0
        %3254 = vmatpush1.bf16.msra.mxu0 0
        %3255 = vmatprep.subr.bf16.mxu0 0
        %3256 = vmatpush1.bf16.msra.mxu0 0
        %3257 = vmatprep.subr.bf16.mxu0 0
        %3258 = vmatpush1.bf16.msra.mxu0 0
        %3259 = vmatprep.subr.bf16.mxu0 0
        %3260 = vmatpush1.bf16.msra.mxu0 0
        %3261 = vmatprep.subr.bf16.mxu0 0
        %3262 = vmatpush1.bf16.msra.mxu0 0
        %3263 = vmatprep.subr.bf16.mxu0 0
        %3264 = vmatpush1.bf16.msra.mxu0 0
        %3265 = vmatprep.mubr.bf16.mxu0 0
        %3266 = vmatmul.mubr.bf16.gmra.mrb[0].mxu0 %v3228
        %v3267 = vpop.f32.mrb[0].mxu0
        %v3268 = vadd.f32 0.0, %v3267
        %v3269 = vpop.f32.mrb[0].mxu0
        %v3270 = vpop.f32.mrb[0].mxu0
        %v3271 = vpop.f32.mrb[0].mxu0
        %3272 = vdwg.mxu0
        %v3274 = vsel %vm1117, %v3134, 0
        %v3277 = vsel %vm1361, %v3130, 0
        %3279 = vmatprep.subr.bf16.mxu0 0
        %3280 = vmatpush1.bf16.msra.mxu0 %v3277
        %3281 = vmatprep.subr.bf16.mxu0 0
        %3282 = vmatpush1.bf16.msra.mxu0 0
        %3283 = vmatprep.subr.bf16.mxu0 0
        %3284 = vmatpush1.bf16.msra.mxu0 0
        %3285 = vmatprep.subr.bf16.mxu0 0
        %3286 = vmatpush1.bf16.msra.mxu0 0
        %3287 = vmatprep.subr.bf16.mxu0 0
        %3288 = vmatpush1.bf16.msra.mxu0 0
        %3289 = vmatprep.subr.bf16.mxu0 0
        %3290 = vmatpush1.bf16.msra.mxu0 0
        %3291 = vmatprep.subr.bf16.mxu0 0
        %3292 = vmatpush1.bf16.msra.mxu0 0
        %3293 = vmatprep.subr.bf16.mxu0 0
        %3294 = vmatpush1.bf16.msra.mxu0 0
        %3295 = vmatprep.subr.bf16.mxu0 0
        %3296 = vmatpush1.bf16.msra.mxu0 0
        %3297 = vmatprep.subr.bf16.mxu0 0
        %3298 = vmatpush1.bf16.msra.mxu0 0
        %3299 = vmatprep.subr.bf16.mxu0 0
        %3300 = vmatpush1.bf16.msra.mxu0 0
        %3301 = vmatprep.subr.bf16.mxu0 0
        %3302 = vmatpush1.bf16.msra.mxu0 0
        %3303 = vmatprep.subr.bf16.mxu0 0
        %3304 = vmatpush1.bf16.msra.mxu0 0
        %3305 = vmatprep.subr.bf16.mxu0 0
        %3306 = vmatpush1.bf16.msra.mxu0 0
        %3307 = vmatprep.subr.bf16.mxu0 0
        %3308 = vmatpush1.bf16.msra.mxu0 0
        %3309 = vmatprep.subr.bf16.mxu0 0
        %3310 = vmatpush1.bf16.msra.mxu0 0
        %3311 = vmatprep.mubr.bf16.mxu0 0
        %3312 = vmatmul.mubr.bf16.gmra.mrb[0].mxu0 %v3274
        %v3313 = vpop.f32.mrb[0].mxu0
        %v3314 = vadd.f32 0.0, %v3313
        %v3315 = vpop.f32.mrb[0].mxu0
        %v3316 = vpop.f32.mrb[0].mxu0
        %v3317 = vpop.f32.mrb[0].mxu0
        %3318 = vdwg.mxu0
        %v3319 = vsel %vm493, %v3176, 0.0
        %v3320 = vsel %vm493, %v3222, 0.0
        %v3321 = vadd.f32 %v3319, %v3320
        %v3322 = vsel %vm493, %v3268, 0.0
        %v3323 = vadd.f32 %v3321, %v3322
        %v3324 = vsel %vm493, %v3314, 0.0
        %v3325 = vadd.f32 %v3323, %v3324
        %s3326 = scalar_lea.vmem %s7, 8
        %v3327 = vld [vmem:[%s3326] sm:$0x1]
        %v3328 = vlaneseq
        %v3329 = vshrl.u32 %v3328, 7
        %v3330 = vsub.s32 0, %v3329
        %v3331 = vrot.slane %v3327, %v3330
        %v3332 = vadd.f32 %v3325, %v3331
        %v3333 = vadd.f32 %v1931, %v3332
        %v3334 = vld [vmem:[%s3326 + $0x1] sm:$0x1]
        %v3335 = vld [vmem:[%s3326 + $0x2] sm:$0x1]
        %v3336 = vsel %vm493, %v3333, 0.0
        %3337 = vadd.xlane.f32.xlu0 %v3336
        %v3338 = vpop.xlane.xlu0 %3337
        %v3339 = vmul.f32 %v3338, %v1754
        %v3340 = vsub.f32 %v3333, %v3339
        %v3341 = vmul.f32 %v3340, %v3340
        %v3342 = vsel %vm493, %v3341, 0.0
        %3343 = vadd.xlane.f32.xlu0 %v3342
        %v3344 = vpop.xlane.xlu0 %3343
        %v3345 = vmul.f32 %v3344, %v1754
        %v3346 = vadd.f32 %v3345, 1e-05
        %v3347 = vrsqrt.pop %v3346
        %v3348 = vmul.f32 %v3340, %v3347
        %v3349 = vlaneseq
        %v3350 = vshrl.u32 %v3349, 7
        %v3351 = vsub.s32 0, %v3350
        %v3352 = vrot.slane %v3334, %v3351
        %v3353 = vmul.f32 %v3348, %v3352
        %v3354 = vlaneseq
        %v3355 = vshrl.u32 %v3354, 7
        %v3356 = vsub.s32 0, %v3355
        %v3357 = vrot.slane %v3335, %v3356
        %v3358 = vadd.f32 %v3353, %v3357
        %s3359 = scalar_lea.vmem %s5, 32
        %v3360 = vld [vmem:[%s3359] sm:$0xf]
        %v3361 = vld [vmem:[%s3359 + $0x4] sm:$0xf]
        %v3362 = vld [vmem:[%s3359 + $0x8] sm:$0xf]
        %v3363 = vld [vmem:[%s3359 + $0xc] sm:$0xf]
        %v3364 = vpack.c.bf16 %v3358, %v3358
        %s3365 = scalar_lea.vmem %s6, 1
        %v3366 = vld [vmem:[%s3365] sm:$0x1]
        %v3368 = vlaneseq
        %v3369 = vshrl.u32 %v3368, 7
        %v3370 = vsub.s32 0, %v3369
        %v3371 = vrot.slane %v3366, %v3370
        %v3377 = vunpack.c.l.b16 %v3360
        %v3378 = vunpack.c.l.b16 %v3361
        %v3379 = vunpack.c.l.b16 %v3362
        %v3380 = vunpack.c.l.b16 %v3363
        %v3381 = vpack.c.b16 %v3378, %v3377
        %v3382 = vpack.c.b16 %v3380, %v3379
        %v3386 = vsel %vm493, %v3364, 0
        %3388 = vmatprep.subr.bf16.mxu0 0
        %3389 = vmatpush1.bf16.msra.mxu0 %v3381
        %3390 = vmatprep.subr.bf16.mxu0 0
        %3391 = vmatpush1.bf16.msra.mxu0 %v3382
        %3392 = vmatprep.subr.bf16.mxu0 0
        %3393 = vmatpush1.bf16.msra.mxu0 0
        %3394 = vmatprep.subr.bf16.mxu0 0
        %3395 = vmatpush1.bf16.msra.mxu0 0
        %3396 = vmatprep.subr.bf16.mxu0 0
        %3397 = vmatpush1.bf16.msra.mxu0 0
        %3398 = vmatprep.subr.bf16.mxu0 0
        %3399 = vmatpush1.bf16.msra.mxu0 0
        %3400 = vmatprep.subr.bf16.mxu0 0
        %3401 = vmatpush1.bf16.msra.mxu0 0
        %3402 = vmatprep.subr.bf16.mxu0 0
        %3403 = vmatpush1.bf16.msra.mxu0 0
        %3404 = vmatprep.subr.bf16.mxu0 0
        %3405 = vmatpush1.bf16.msra.mxu0 0
        %3406 = vmatprep.subr.bf16.mxu0 0
        %3407 = vmatpush1.bf16.msra.mxu0 0
        %3408 = vmatprep.subr.bf16.mxu0 0
        %3409 = vmatpush1.bf16.msra.mxu0 0
        %3410 = vmatprep.subr.bf16.mxu0 0
        %3411 = vmatpush1.bf16.msra.mxu0 0
        %3412 = vmatprep.subr.bf16.mxu0 0
        %3413 = vmatpush1.bf16.msra.mxu0 0
        %3414 = vmatprep.subr.bf16.mxu0 0
        %3415 = vmatpush1.bf16.msra.mxu0 0
        %3416 = vmatprep.subr.bf16.mxu0 0
        %3417 = vmatpush1.bf16.msra.mxu0 0
        %3418 = vmatprep.subr.bf16.mxu0 0
        %3419 = vmatpush1.bf16.msra.mxu0 0
        %3420 = vmatprep.mubr.bf16.mxu0 0
        %3421 = vmatmul.mubr.bf16.gmra.mrb[0].mxu0 %v3386
        %v3422 = vpop.f32.mrb[0].mxu0
        %v3423 = vadd.f32 %v3371, %v3422
        %v3424 = vpop.f32.mrb[0].mxu0
        %v3425 = vpop.f32.mrb[0].mxu0
        %v3426 = vpop.f32.mrb[0].mxu0
        %3427 = vdwg.mxu0
        %v3428 = vmax.f32 %v3423, 0.0
        %s3429 = scalar_lea.vmem %s5, 48
        %v3430 = vld [vmem:[%s3429] sm:$0xf]
        %v3431 = vld [vmem:[%s3429 + $0x4] sm:$0xf]
        %v3432 = vld [vmem:[%s3429 + $0x8] sm:$0xf]
        %v3433 = vld [vmem:[%s3429 + $0xc] sm:$0xf]
        %v3434 = vpack.c.bf16 %v3428, %v3428
        %v3435 = vld [vmem:[%s3326 + $0x3] sm:$0x1]
        %v3436 = vlaneseq
        %v3437 = vshrl.u32 %v3436, 7
        %v3438 = vsub.s32 0, %v3437
        %v3439 = vrot.slane %v3435, %v3438
        %v3444 = vunpack.c.l.b16 %v3430
        %v3445 = vunpack.c.l.b16 %v3431
        %v3446 = vunpack.c.l.b16 %v3432
        %v3447 = vunpack.c.l.b16 %v3433
        %v3448 = vpack.c.b16 %v3445, %v3444
        %v3449 = vpack.c.b16 %v3447, %v3446
        %3452 = vmatprep.subr.bf16.mxu0 0
        %3453 = vmatpush1.bf16.xpose.msra.mxu0 %v3448
        %3454 = vmatprep.subr.bf16.mxu0 0
        %3455 = vmatpush1.bf16.xpose.msra.mxu0 %v3449
        %3456 = vmatprep.subr.bf16.mxu0 0
        %3457 = vmatpush1.bf16.xpose.msra.mxu0 0
        %3458 = vmatprep.subr.bf16.mxu0 0
        %3459 = vmatpush1.bf16.xpose.msra.mxu0 0
        %3460 = vmatprep.subr.bf16.mxu0 0
        %3461 = vmatpush1.bf16.xpose.msra.mxu0 0
        %3462 = vmatprep.subr.bf16.mxu0 0
        %3463 = vmatpush1.bf16.xpose.msra.mxu0 0
        %3464 = vmatprep.subr.bf16.mxu0 0
        %3465 = vmatpush1.bf16.xpose.msra.mxu0 0
        %3466 = vmatprep.subr.bf16.mxu0 0
        %3467 = vmatpush1.bf16.xpose.msra.mxu0 0
        %3468 = vmatprep.subr.bf16.mxu0 0
        %3469 = vmatpush1.bf16.xpose.msra.mxu0 0
        %3470 = vmatprep.subr.bf16.mxu0 0
        %3471 = vmatpush1.bf16.xpose.msra.mxu0 0
        %3472 = vmatprep.subr.bf16.mxu0 0
        %3473 = vmatpush1.bf16.xpose.msra.mxu0 0
        %3474 = vmatprep.subr.bf16.mxu0 0
        %3475 = vmatpush1.bf16.xpose.msra.mxu0 0
        %3476 = vmatprep.subr.bf16.mxu0 0
        %3477 = vmatpush1.bf16.xpose.msra.mxu0 0
        %3478 = vmatprep.subr.bf16.mxu0 0
        %3479 = vmatpush1.bf16.xpose.msra.mxu0 0
        %3480 = vmatprep.subr.bf16.mxu0 0
        %3481 = vmatpush1.bf16.xpose.msra.mxu0 0
        %3482 = vmatprep.subr.bf16.mxu0 0
        %3483 = vmatpush1.bf16.xpose.msra.mxu0 0
        %3484 = vmatprep.mubr.bf16.mxu0 0
        %3485 = vmatmul.mubr.bf16.gmra.mrb[0].mxu0 %v3434
        %v3486 = vpop.f32.mrb[0].mxu0
        %v3487 = vadd.f32 %v3439, %v3486
        %v3488 = vpop.f32.mrb[0].mxu0
        %v3489 = vpop.f32.mrb[0].mxu0
        %v3490 = vpop.f32.mrb[0].mxu0
        %3491 = vdwg.mxu0
        %v3492 = vadd.f32 %v3358, %v3487
        %v3493 = vld [vmem:[%s3326 + $0x4] sm:$0x1]
        %v3494 = vld [vmem:[%s3326 + $0x5] sm:$0x1]
        %v3495 = vsel %vm493, %v3492, 0.0
        %3496 = vadd.xlane.f32.xlu0 %v3495
        %v3497 = vpop.xlane.xlu0 %3496
        %v3498 = vmul.f32 %v3497, %v1754
        %v3499 = vsub.f32 %v3492, %v3498
        %v3500 = vmul.f32 %v3499, %v3499
        %v3501 = vsel %vm493, %v3500, 0.0
        %3502 = vadd.xlane.f32.xlu0 %v3501
        %v3503 = vpop.xlane.xlu0 %3502
        %v3504 = vmul.f32 %v3503, %v1754
        %v3505 = vadd.f32 %v3504, 1e-05
        %v3506 = vrsqrt.pop %v3505
        %v3507 = vmul.f32 %v3499, %v3506
        %v3508 = vlaneseq
        %v3509 = vshrl.u32 %v3508, 7
        %v3510 = vsub.s32 0, %v3509
        %v3511 = vrot.slane %v3493, %v3510
        %v3512 = vmul.f32 %v3507, %v3511
        %v3513 = vlaneseq
        %v3514 = vshrl.u32 %v3513, 7
        %v3515 = vsub.s32 0, %v3514
        %v3516 = vrot.slane %v3494, %v3515
        %v3517 = vadd.f32 %v3512, %v3516
        %v3518 = vld [vmem:[%s8] sm:$0xff]
        %v3519 = vld [vmem:[%s8 + $0x8] sm:$0xff]
        %v3520 = vld [vmem:[%s8 + $0x10] sm:$0xff]
        %v3521 = vld [vmem:[%s8 + $0x18] sm:$0xff]
        %v3522 = vpack.c.bf16 %v3517, %v3517
        %v3523 = vpack.c.bf16 %v3519, %v3518
        %v3524 = vpack.c.bf16 %v3521, %v3520
        %v3525 = vld [vmem:[%s8 + $0x20] sm:$0x1]
        %v3526 = vlaneseq
        %v3527 = vshrl.u32 %v3526, 7
        %v3528 = vsub.s32 0, %v3527
        %v3529 = vrot.slane %v3525, %v3528
        %v3531 = vsel %vm493, %v3522, 0
        %3533 = vmatprep.subr.bf16.mxu0 0
        %3534 = vmatpush1.bf16.msra.mxu0 %v3523
        %3535 = vmatprep.subr.bf16.mxu0 0
        %3536 = vmatpush1.bf16.msra.mxu0 %v3524
        %3537 = vmatprep.subr.bf16.mxu0 0
        %3538 = vmatpush1.bf16.msra.mxu0 0
        %3539 = vmatprep.subr.bf16.mxu0 0
        %3540 = vmatpush1.bf16.msra.mxu0 0
        %3541 = vmatprep.subr.bf16.mxu0 0
        %3542 = vmatpush1.bf16.msra.mxu0 0
        %3543 = vmatprep.subr.bf16.mxu0 0
        %3544 = vmatpush1.bf16.msra.mxu0 0
        %3545 = vmatprep.subr.bf16.mxu0 0
        %3546 = vmatpush1.bf16.msra.mxu0 0
        %3547 = vmatprep.subr.bf16.mxu0 0
        %3548 = vmatpush1.bf16.msra.mxu0 0
        %3549 = vmatprep.subr.bf16.mxu0 0
        %3550 = vmatpush1.bf16.msra.mxu0 0
        %3551 = vmatprep.subr.bf16.mxu0 0
        %3552 = vmatpush1.bf16.msra.mxu0 0
        %3553 = vmatprep.subr.bf16.mxu0 0
        %3554 = vmatpush1.bf16.msra.mxu0 0
        %3555 = vmatprep.subr.bf16.mxu0 0
        %3556 = vmatpush1.bf16.msra.mxu0 0
        %3557 = vmatprep.subr.bf16.mxu0 0
        %3558 = vmatpush1.bf16.msra.mxu0 0
        %3559 = vmatprep.subr.bf16.mxu0 0
        %3560 = vmatpush1.bf16.msra.mxu0 0
        %3561 = vmatprep.subr.bf16.mxu0 0
        %3562 = vmatpush1.bf16.msra.mxu0 0
        %3563 = vmatprep.subr.bf16.mxu0 0
        %3564 = vmatpush1.bf16.msra.mxu0 0
        %3565 = vmatprep.mubr.bf16.mxu0 0
        %3566 = vmatmul.mubr.bf16.gmra.mrb[0].mxu0 %v3531
        %v3567 = vpop.f32.mrb[0].mxu0
        %v3568 = vadd.f32 %v3529, %v3567
        %v3569 = vpop.f32.mrb[0].mxu0
        %v3570 = vpop.f32.mrb[0].mxu0
        %v3571 = vpop.f32.mrb[0].mxu0
        %3572 = vdwg.mxu0
        %v3573 = vtanh.pop %v3568
        %v3574 = vld [vmem:[%s8 + $0x28] sm:$0x1]
        %v3575 = vlaneseq
        %v3576 = vshrl.u32 %v3575, 7
        %v3577 = vsub.s32 0, %v3576
        %v3578 = vrot.slane %v3574, %v3577
        %v3579 = vmul.f32 %v3573, %v3578
        %v3580 = vsel %vm493, %v3579, 0.0
        %3581 = vadd.xlane.f32.xlu0 %v3580
        %v3582 = vpop.xlane.xlu0 %3581
        %v3583 = vrot.slane %v3582, 4
        %v3584 = vmax.f32 %v3582, %v3583
        %v3585 = vrot.slane %v3584, 2
        %v3586 = vmax.f32 %v3584, %v3585
        %v3587 = vrot.slane %v3586, 1
        %v3588 = vmax.f32 %v3586, %v3587
        %v3589 = vsub.f32 %v3582, %v3588
        %v3590 = vmul.f32 %v3589, 1.442695
        %v3591 = vpow.pop %v3590
        %v3592 = vrot.slane %v3591, 4
        %v3593 = vadd.f32 %v3591, %v3592
        %v3594 = vrot.slane %v3593, 2
        %v3595 = vadd.f32 %v3593, %v3594
        %v3596 = vrot.slane %v3595, 1
        %v3597 = vadd.f32 %v3595, %v3596
        %v3598 = vrcp.pop %v3597
        %v3599 = vmul.f32 %v3591, %v3598
        %v3600 = vmul.f32 %v3517, %v3599
        %3601 = vst.msk [vmem:[%s336] sm:$0xff] %vm493, %v3600
        %v3602 = vmul.f32 %v3517, %v347
        %v3603 = vsel %vm493, %v3602, 0.0
        %3604 = vadd.xlane.f32.xlu0 %v3603
        %v3605 = vpop.xlane.xlu0 %3604
        %v3606 = vmul.f32 %v3517, %v3517
        %v3607 = vsel %vm493, %v3606, 0.0
        %3608 = vadd.xlane.f32.xlu0 %v3607
        %v3609 = vpop.xlane.xlu0 %3608
        %v3610 = vrsqrt.pop %v3609
        %v3611 = vmul.f32 %v3609, %v3610
        %vm3612 = vcmp.eq.f32.partialorder %v3609, inf
        %v3613 = vsel %vm3612, %v3609, %v3611
        %vm3614 = vcmp.eq.f32.partialorder %v3609, 0.0
        %v3615 = vand.u32 %v3609, 2147483648
        %v3616 = vsel %vm3614, %v3615, %v3613
        %v3617 = vmul.f32 %v347, %v347
        %v3618 = vsel %vm493, %v3617, 0.0
        %3619 = vadd.xlane.f32.xlu0 %v3618
        %v3620 = vpop.xlane.xlu0 %3619
        %v3621 = vrsqrt.pop %v3620
        %v3622 = vmul.f32 %v3620, %v3621
        %vm3623 = vcmp.eq.f32.partialorder %v3620, inf
        %v3624 = vsel %vm3623, %v3620, %v3622
        %vm3625 = vcmp.eq.f32.partialorder %v3620, 0.0
        %v3626 = vand.u32 %v3620, 2147483648
        %v3627 = vsel %vm3625, %v3626, %v3624
        %v3628 = vmax.f32 %v3616, 1e-08
        %v3629 = vmax.f32 %v3627, 1e-08
        %v3630 = vmul.f32 %v3628, %v3629
        %v3631 = vrcp.pop %v3630
        %v3632 = vmul.f32 %v3605, %v3631
        %v3633 = vrot.slane %v3632, 4
        %v3634 = vmax.f32 %v3632, %v3633
        %v3635 = vrot.slane %v3634, 2
        %v3636 = vmax.f32 %v3634, %v3635
        %v3637 = vrot.slane %v3636, 1
        %v3638 = vmax.f32 %v3636, %v3637
        %s3639 = vtos %v3638
        %v3640 = vstv %s3639
        %v3641 = vsub.f32 %v3632, %v3640
        %v3642 = vmul.f32 %v3641, 1.442695
        %v3643 = vpow.pop %v3642
        %vm3644 = vcmask 7168
        %v3645 = vsel %vm3644, %v3643, 0.0
        %3646 = vadd.xlane.f32.xlu0 %v3645
        %v3647 = vpop.xlane.xlu0 %3646
        %v3648 = vrot.slane %v3647, 4
        %v3649 = vadd.f32 %v3647, %v3648
        %v3650 = vrot.slane %v3649, 2
        %v3651 = vadd.f32 %v3649, %v3650
        %v3652 = vrot.slane %v3651, 1
        %v3653 = vadd.f32 %v3651, %v3652
        %s3654 = vtos %v3653
        %v3655 = vstv %s3654
        %v3656 = vlog2.pop %v3655
        %v3657 = vmul.f32 %v3656, 0.6931472
        %s3658 = vtos %v3657
        %s3659 = sadd.f32 %s3639, %s3658
        %s3660 = vtos %v3632
        %s3661 = ssub.f32 %s3659, %s3660
        %v3662 = vstv %s3661
        %3663 = vst.msk [vmem:[%s336 + $0x8] sm:$0xff] %vm493, %v3662
        %s3664 = sand.u32 %s230, 1
        %s3665 = scalar_lea.sflag [#allocation3], %s3664
        %s3666 = sand.u32 %s230, 1
        %s3667 = smul.addr %s3666, 16
        %s3668 = scalar_lea.vmem [#allocation2], %s3667
        // Predicated region
        $region57: #{tpu_custom_call.1} parent=55 // pred_check
          %p3669 = pneg %p240
        $region58: #{tpu_custom_call.1} parent=55 // pred_check_branch
          %3671 = sbr.rel (%p3669) target = $region60
        $region59: #{tpu_custom_call.1} parent=55 // pred_region
          %s3673 = ssub.s32 256, 256
          %3674 = vsyncadd %s3665, %s3673
          %s3675 = smul.addr %s23, 2
          %s3676 = smul.addr %s3675, 128
          %s3677 = scalar_lea.hbm %s9, %s3676
          %s3678 = sshll.u32 %s3668, 4
          %s3679 = int_to_ptr.vmem [resolvable:$true] %s3678
          %3684 = dma.vmem_to_hbm [thread:$0]  %s3679, 256, %s3677, %s3665, 128, 128, 8
        $region60: #{tpu_custom_call.1} parent=55 // pred_fallthru
          _
      $region56: #{tpu_custom_call.1} parent=5 // pred_fallthru
        _
      %p3685 = scmp.le.s32.totalorder 2, %s18
      // Predicated region
      $region61: #{tpu_custom_call.1} parent=5 // pred_check
        %p3686 = pneg %p3685
      $region62: #{tpu_custom_call.1} parent=5 // pred_check_branch
        %3688 = sbr.rel (%p3686) target = $region64
      $region63: #{tpu_custom_call.1} parent=5 // pred_region
        %s3689 = ssub.s32 %s18, 2
        // Predicated region
        $region65: #{tpu_custom_call.1} parent=63 // pred_check
          %p3690 = pneg %p246
        $region66: #{tpu_custom_call.1} parent=63 // pred_check_branch
          %3692 = sbr.rel (%p3690) target = $region68
        $region67: #{tpu_custom_call.1} parent=63 // pred_region
          %s3693 = sand.u32 %s231, 1
          %s3694 = scalar_lea.sflag [#allocation3], %s3693
          %s3695 = sand.u32 %s231, 1
          %s3696 = smul.addr %s3695, 16
          %s3697 = scalar_lea.vmem [#allocation2], %s3696
          %3698 = dma.done %s3694, 256
        $region68: #{tpu_custom_call.1} parent=63 // pred_fallthru
          _
      $region64: #{tpu_custom_call.1} parent=5 // pred_fallthru
        _
    $region6: #{tpu_custom_call.1} parent=1 // loop_footer
      %s22 = sadd.s32 1, %s18
    $region7: #{tpu_custom_call.1} parent=1 // loop_footer_branch
      %17 = sbr.rel target = $region3
    $region8: #{tpu_custom_call.1} parent=1 // loop_exit
      _
    %3699 = vsyncpa [#allocation3], 1
    %s3700 = scalar_lea.sflag [#allocation3], 1
    %3701 = vsyncpa %s3700, 1

</llo_original>
